<compile_context>
chip_gen: v7x
topology: tpu7x:2x2x1
jax: 0.10.0
libtpu: 0.0.40
codegen_flags: <defaults>
</compile_context>

<pallas_src>
import math

import jax
import jax.numpy as jnp
from jax.experimental import pallas as pl
from jax.experimental.pallas import tpu as pltpu


# ---------------------------------------------------------------------------
# Kernel factory (shapes baked in as Python constants via closure)
# ---------------------------------------------------------------------------
def _make_kernel(B, M, R, Q, H1, H2, tile_n):
    RM = R * M          # accumulator width (r-major: acc[b, r*M + m])
    MQ = M * Q          # output width (lane-dense)
    MRQ = M * R * Q     # psi third-layer width

    def kernel(a_ref, w1_ref, w2_ref, bias_ref, sw3_ref,   # resident (fetched once)
               pw3_ref, pb3_ref, vrep_ref,                  # streamed along n
               out_ref,
               acc_ref, hphi_ref, hpsi_ref):                # VMEM scratch
        c = pl.program_id(0)

        # ---- chunk 0: layers 1-2 of BOTH MLPs (fused first layer), zero acc --
        @pl.when(c == 0)
        def _():
            a16 = a_ref[...].astype(jnp.bfloat16)                       # (B, 56)
            b1 = bias_ref[0:1, 0:2 * H1]                                # [pb1|sb1]
            h1 = jnp.dot(a16, w1_ref[...],
                         preferred_element_type=jnp.float32) + b1       # (B, 2*H1)
            h1 = jnp.maximum(h1, 0.0).astype(jnp.bfloat16)              # [phi|psi]
            b2p = bias_ref[0:1, 2 * H1:2 * H1 + H2]
            b2s = bias_ref[0:1, 2 * H1 + H2:2 * H1 + 2 * H2]
            h2p = jnp.dot(h1[:, :H1], w2_ref[:, :H2],
                          preferred_element_type=jnp.float32) + b2p
            h2s = jnp.dot(h1[:, H1:], w2_ref[:, H2:],
                          preferred_element_type=jnp.float32) + b2s
            hphi_ref[...] = jnp.maximum(h2p, 0.0).astype(jnp.bfloat16)  # (B, H2)
            hpsi_ref[...] = jnp.maximum(h2s, 0.0).astype(jnp.bfloat16)  # (B, H2)
            acc_ref[...] = jnp.zeros_like(acc_ref)

        # ---- every chunk: phi third layer on this n-slab, MAC against v ------
        # phi_chunk[b, ln*RM + r*M + m] = phi_eval[b, n, m, r],  n = c*tile_n+ln
        phi_chunk = jnp.dot(hphi_ref[...], pw3_ref[...],
                            preferred_element_type=jnp.float32) + pb3_ref[...]
        prod = phi_chunk * vrep_ref[...]            # (B, tile_n*RM), pure VPU
        part = prod[:, 0:RM]
        for t in range(1, tile_n):                  # 128-lane-aligned vreg slices
            part = part + prod[:, t * RM:(t + 1) * RM]
        acc_ref[...] += part                        # acc[b, r*M+m] = sum_n phi*v

        # ---- last chunk: psi third layer + rank contraction, lane-dense store -
        @pl.when(c == pl.num_programs(0) - 1)
        def _():
            sb3 = bias_ref[0:1, 2 * H1 + 2 * H2:2 * H1 + 2 * H2 + MRQ]
            # psi[b, r*M*Q + m*Q + q] = psi_eval[b, m, r, q]   (r-major, permuted)
            psi = jnp.dot(hpsi_ref[...], sw3_ref[...],
                          preferred_element_type=jnp.float32) + sb3     # (B, MRQ)
            acc = acc_ref[...]                                          # (B, RM)
            out = jnp.zeros((B, MQ), jnp.float32)
            for r in range(R):                       # rank small & static
                t_r = acc[:, r * M:(r + 1) * M]                         # (B, M)
                t_b = jnp.broadcast_to(t_r[:, :, None], (B, M, Q)).reshape(B, MQ)
                out = out + t_b * psi[:, r * MQ:(r + 1) * MQ]
            out_ref[...] = out                       # (B, M*Q) lane-dense store

    return kernel


# ---------------------------------------------------------------------------
# Host-side parameter packing (done once, outside the hot path)
# ---------------------------------------------------------------------------
def pack_params(phi_params, psi_params, N, M, R, Q, weight_dtype=jnp.bfloat16):
    pw1, pb1, pw2, pb2, pw3, pb3 = phi_params
    sw1, sb1, sw2, sb2, sw3, sb3 = psi_params
    H2 = pw2.shape[1]

    # Fused first layer + packed second layer (fewer DMAs, one fewer tiny matmul).
    w1_cat = jnp.concatenate([pw1, sw1], axis=1).astype(weight_dtype)   # (56, 2*H1)
    w2_cat = jnp.concatenate([pw2, sw2], axis=1).astype(weight_dtype)   # (H1, 2*H2)

    # Column-permute W3s so the kernel contraction is relayout-free:
    #   phi: (n, m, r) -> (n, r, m)      psi: (m, r, q) -> (r, m, q)
    pw3_perm = pw3.reshape(H2, N, M, R).transpose(0, 1, 3, 2) \
                  .reshape(H2, N * R * M).astype(weight_dtype)
    sw3_perm = sw3.reshape(H2, M, R, Q).transpose(0, 2, 1, 3) \
                  .reshape(H2, R * M * Q).astype(weight_dtype)
    pb3_perm = pb3.reshape(1, N, M, R).transpose(0, 1, 3, 2).reshape(1, N * R * M)
    sb3_perm = sb3.reshape(1, M, R, Q).transpose(0, 2, 1, 3).reshape(1, R * M * Q)

    # All f32 biases in one array: [pb1|sb1 | pb2 | sb2 | sb3_perm]
    bias_cat = jnp.concatenate([pb1, sb1, pb2, sb2, sb3_perm], axis=1)

    return w1_cat, w2_cat, bias_cat, sw3_perm, pw3_perm, pb3_perm


def _vmem_limit_bytes(B, N, M, R, Q, H1, H2, tile_n, a_dim=56):
    bf16, f32 = 2, 4
    chunk = tile_n * R * M
    streamed = 2 * (H2 * chunk * bf16 + chunk * f32 + B * chunk * f32)   # 2x: double-buffered
    resident = (B * a_dim * f32 + a_dim * 2 * H1 * bf16 + H1 * 2 * H2 * bf16
                + (2 * H1 + 2 * H2 + M * R * Q) * f32
                + H2 * M * R * Q * bf16 + B * M * Q * f32)
    scratch = B * R * M * f32 + 2 * B * H2 * bf16
    # 2x + 8 MiB headroom for (8,128) padding & compiler temporaries; cap at v7x VMEM.
    return int(min(64 * 1024 * 1024, 2 * (streamed + resident + scratch) + (8 << 20)))


# ---------------------------------------------------------------------------
# Forward wrapper
# ---------------------------------------------------------------------------
def lowrank1d_forward(v, a, packed, N, M, R, Q, tile_n=8):
    B = v.shape[0]
    w1_cat, w2_cat, bias_cat, sw3_perm, pw3_perm, pb3_perm = packed
    H1 = w1_cat.shape[1] // 2
    H2 = w2_cat.shape[1] // 2
    RM = R * M
    assert N % tile_n == 0, "tile_n must divide in_channels"
    num_chunks = N // tile_n
    chunk = tile_n * RM

    # Pre-tile v (free XLA broadcast): vrep[b, n*RM + r*M + m] = v[b, n, r]
    vrep = jnp.repeat(v, M, axis=-1).reshape(B, N * RM)

    kernel = _make_kernel(B, M, R, Q, H1, H2, tile_n)

    grid_spec = pltpu.PrefetchScalarGridSpec(
        num_scalar_prefetch=0,
        grid=(num_chunks,),
        in_specs=[
            # Constant-index blocks are fetched once and stay resident.
            pl.BlockSpec(a.shape,        lambda c: (0, 0)),    # a
            pl.BlockSpec(w1_cat.shape,   lambda c: (0, 0)),    # [pw1|sw1]
            pl.BlockSpec(w2_cat.shape,   lambda c: (0, 0)),    # [pw2|sw2]
            pl.BlockSpec(bias_cat.shape, lambda c: (0, 0)),    # all f32 biases
            pl.BlockSpec(sw3_perm.shape, lambda c: (0, 0)),    # psi W3 (small)
            # Streamed along n; default auto-pipelining double-buffers these
            # (equivalent to pl.Buffered(2)).  TODO(synk): raise buffer depth /
            # shrink chunk at production widths for v7x's 64 MiB VMEM.
            pl.BlockSpec((H2, chunk), lambda c: (0, c)),       # phi W3 chunk
            pl.BlockSpec((1, chunk),  lambda c: (0, c)),       # phi b3 chunk
            pl.BlockSpec((B, chunk),  lambda c: (0, c)),       # pre-tiled v chunk
        ],
        out_specs=pl.BlockSpec((B, M * Q), lambda c: (0, 0)),
        scratch_shapes=[
            pltpu.VMEM((B, RM), jnp.float32),     # accumulator t[b, r*M+m]
            pltpu.VMEM((B, H2), jnp.bfloat16),    # h_phi (layer-2 activation)
            pltpu.VMEM((B, H2), jnp.bfloat16),    # h_psi
        ],
    )

    out_flat = pl.pallas_call(
        kernel,
        out_shape=jax.ShapeDtypeStruct((B, M * Q), jnp.float32),
        grid_spec=grid_spec,
        compiler_params=pltpu.CompilerParams(
            dimension_semantics=("arbitrary",),
            vmem_limit_bytes=_vmem_limit_bytes(B, N, M, R, Q, H1, H2, tile_n,
                                               a_dim=a.shape[1])),
    )(a, w1_cat, w2_cat, bias_cat, sw3_perm, pw3_perm, pb3_perm, vrep)

    return out_flat.reshape(B, M, Q)   # free metadata reshape


# ---------------------------------------------------------------------------
# Deterministic parameter init (PyTorch-Linear-style uniform bounds) & reference
# ---------------------------------------------------------------------------
def dense_params(key, dims):
    params = []
    for i in range(len(dims) - 1):
        key, kw, kb = jax.random.split(key, 3)
        bound = 1.0 / math.sqrt(dims[i])
        w = jax.random.uniform(kw, (dims[i], dims[i + 1]), jnp.float32, -bound, bound)
        b = jax.random.uniform(kb, (1, dims[i + 1]), jnp.float32, -bound, bound)
        params += [w, b]
    return params, key


def mlp_reference(x, params):
    # Mirrors the in-kernel numerics: bf16 operands, f32 accumulation.
    n = len(params)
    for i in range(0, n, 2):
        x = jnp.dot(x.astype(jnp.bfloat16), params[i],
                    preferred_element_type=jnp.float32) + params[i + 1]
        if i < n - 2:
            x = jnp.maximum(x, 0.0)
    return x


if __name__ == "__main__":
    B = 2
    width = 32            # in_channels == out_channels == width
    rank = 4
    N = M = width
    R = Q = rank

    key = jax.random.PRNGKey(0)
    key, kv, ka = jax.random.split(key, 3)
    v = jax.random.normal(kv, (B, N, R), jnp.float32)
    a = jax.random.normal(ka, (B, 56), jnp.float32)

    phi_params, key = dense_params(key, [56, 64, 256, N * M * R])
    psi_params, key = dense_params(key, [56, 64, 256, M * R * Q])

    packed = pack_params(phi_params, psi_params, N, M, R, Q)
    out = lowrank1d_forward(v, a, packed, N, M, R, Q, tile_n=8)
    out = jax.block_until_ready(out)

    # pure-JAX reference (same bf16 weights / f32 accumulation as the kernel)
    phi_bf16 = [p.astype(jnp.bfloat16) if i % 2 == 0 else p
                for i, p in enumerate(phi_params)]
    psi_bf16 = [p.astype(jnp.bfloat16) if i % 2 == 0 else p
                for i, p in enumerate(psi_params)]
    phi_e = mlp_reference(a, phi_bf16).reshape(B, N, M, R)
    psi_e = mlp_reference(a, psi_bf16).reshape(B, M, R, Q)
    ref = jnp.einsum("bnmr,bnr,bmrq->bmq", phi_e, v, psi_e)

    assert out.shape == (B, M, Q)
    err = float(jnp.max(jnp.abs(out - ref)))
    assert jnp.allclose(out, ref, atol=2e-3, rtol=2e-3), err
    print("KERNEL_OK")
</pallas_src>

<mosaic_0001>
module attributes {stable_mosaic.version = 11 : i64} {
  func.func @kernel(%arg0: i32, %arg1: memref<2x56xf32, #tpu.memory_space<vmem>>, %arg2: memref<56x128xbf16, #tpu.memory_space<vmem>>, %arg3: memref<64x512xbf16, #tpu.memory_space<vmem>>, %arg4: memref<1x1152xf32, #tpu.memory_space<vmem>>, %arg5: memref<256x512xbf16, #tpu.memory_space<vmem>>, %arg6: memref<256x1024xbf16, #tpu.memory_space<vmem>>, %arg7: memref<1x1024xf32, #tpu.memory_space<vmem>>, %arg8: memref<2x1024xf32, #tpu.memory_space<vmem>>, %arg9: memref<2x128xf32, #tpu.memory_space<vmem>>, %arg10: memref<2x128xf32, #tpu.memory_space<vmem>>, %arg11: memref<2x256xbf16, #tpu.memory_space<vmem>>, %arg12: memref<2x256xbf16, #tpu.memory_space<vmem>>) attributes {dimension_semantics = [#tpu.dimension_semantics<arbitrary>], iteration_bounds = array<i64: 4>, scalar_prefetch = 0 : i64, scratch_operands = 3 : i64, tpu.core_type = #tpu.core_type<tc>, window_params = [{pipeline_mode = #tpu.pipeline_mode<synchronous>, transform_indices = @transform_0, window_bounds = array<i64: 2, 56>}, {pipeline_mode = #tpu.pipeline_mode<synchronous>, transform_indices = @transform_1, window_bounds = array<i64: 56, 128>}, {pipeline_mode = #tpu.pipeline_mode<synchronous>, transform_indices = @transform_2, window_bounds = array<i64: 64, 512>}, {pipeline_mode = #tpu.pipeline_mode<synchronous>, transform_indices = @transform_3, window_bounds = array<i64: 1, 1152>}, {pipeline_mode = #tpu.pipeline_mode<synchronous>, transform_indices = @transform_4, window_bounds = array<i64: 256, 512>}, {transform_indices = @transform_5, window_bounds = array<i64: 256, 1024>}, {transform_indices = @transform_6, window_bounds = array<i64: 1, 1024>}, {transform_indices = @transform_7, window_bounds = array<i64: 2, 1024>}, {pipeline_mode = #tpu.pipeline_mode<synchronous>, transform_indices = @transform_8, window_bounds = array<i64: 2, 128>}]} {
    %c0_i32 = arith.constant 0 : i32
    %0 = arith.cmpi eq, %arg0, %c0_i32 : i32
    %1 = arith.extui %0 : i1 to i32
    %c0_i32_0 = arith.constant 0 : i32
    %2 = arith.cmpi ne, %1, %c0_i32_0 : i32
    scf.if %2 {
      %c0_13 = arith.constant 0 : index
      %c0_14 = arith.constant 0 : index
      %32 = vector.load %arg1[%c0_13, %c0_14] : memref<2x56xf32, #tpu.memory_space<vmem>>, vector<2x56xf32>
      %33 = arith.truncf %32 : vector<2x56xf32> to vector<2x56xbf16>
      %c0_15 = arith.constant 0 : index
      %c0_16 = arith.constant 0 : index
      %34 = vector.load %arg4[%c0_15, %c0_16] : memref<1x1152xf32, #tpu.memory_space<vmem>>, vector<1x128xf32>
      %c0_17 = arith.constant 0 : index
      %c0_18 = arith.constant 0 : index
      %35 = vector.load %arg2[%c0_17, %c0_18] : memref<56x128xbf16, #tpu.memory_space<vmem>>, vector<56x128xbf16>
      %cst_19 = arith.constant dense<0.000000e+00> : vector<2x128xf32>
      %36 = tpu.matmul %33, %35, %cst_19 {dimension_numbers = #tpu.dot_dimension_numbers<[1], [0], [0], [1], [0, 0, 1, 1], [], []>} : vector<2x56xbf16>, vector<56x128xbf16>, vector<2x128xf32> -> vector<2x128xf32>
      %37 = vector.broadcast %34 : vector<1x128xf32> to vector<2x128xf32>
      %38 = arith.addf %36, %37 : vector<2x128xf32>
      %cst_20 = arith.constant 0.000000e+00 : f32
      %39 = vector.broadcast %cst_20 : f32 to vector<2x128xf32>
      %40 = arith.maximumf %38, %39 : vector<2x128xf32>
      %41 = arith.truncf %40 : vector<2x128xf32> to vector<2x128xbf16>
      %c0_21 = arith.constant 0 : index
      %c128 = arith.constant 128 : index
      %42 = vector.load %arg4[%c0_21, %c128] : memref<1x1152xf32, #tpu.memory_space<vmem>>, vector<1x256xf32>
      %c0_22 = arith.constant 0 : index
      %c384 = arith.constant 384 : index
      %43 = vector.load %arg4[%c0_22, %c384] : memref<1x1152xf32, #tpu.memory_space<vmem>>, vector<1x256xf32>
      %44 = vector.extract_strided_slice %41 {offsets = [0, 0], sizes = [2, 64], strides = [1, 1]} : vector<2x128xbf16> to vector<2x64xbf16>
      %c0_23 = arith.constant 0 : index
      %c0_24 = arith.constant 0 : index
      %45 = vector.load %arg3[%c0_23, %c0_24] : memref<64x512xbf16, #tpu.memory_space<vmem>>, vector<64x256xbf16>
      %cst_25 = arith.constant dense<0.000000e+00> : vector<2x256xf32>
      %46 = tpu.matmul %44, %45, %cst_25 {dimension_numbers = #tpu.dot_dimension_numbers<[1], [0], [0], [1], [0, 0, 1, 1], [], []>} : vector<2x64xbf16>, vector<64x256xbf16>, vector<2x256xf32> -> vector<2x256xf32>
      %47 = vector.broadcast %42 : vector<1x256xf32> to vector<2x256xf32>
      %48 = arith.addf %46, %47 : vector<2x256xf32>
      %49 = vector.extract_strided_slice %41 {offsets = [0, 64], sizes = [2, 64], strides = [1, 1]} : vector<2x128xbf16> to vector<2x64xbf16>
      %c0_26 = arith.constant 0 : index
      %c256 = arith.constant 256 : index
      %50 = vector.load %arg3[%c0_26, %c256] : memref<64x512xbf16, #tpu.memory_space<vmem>>, vector<64x256xbf16>
      %cst_27 = arith.constant dense<0.000000e+00> : vector<2x256xf32>
      %51 = tpu.matmul %49, %50, %cst_27 {dimension_numbers = #tpu.dot_dimension_numbers<[1], [0], [0], [1], [0, 0, 1, 1], [], []>} : vector<2x64xbf16>, vector<64x256xbf16>, vector<2x256xf32> -> vector<2x256xf32>
      %52 = vector.broadcast %43 : vector<1x256xf32> to vector<2x256xf32>
      %53 = arith.addf %51, %52 : vector<2x256xf32>
      %cst_28 = arith.constant 0.000000e+00 : f32
      %54 = vector.broadcast %cst_28 : f32 to vector<2x256xf32>
      %55 = arith.maximumf %48, %54 : vector<2x256xf32>
      %56 = arith.truncf %55 : vector<2x256xf32> to vector<2x256xbf16>
      %c0_29 = arith.constant 0 : index
      %c0_30 = arith.constant 0 : index
      %57 = vector.load %arg11[%c0_29, %c0_30] : memref<2x256xbf16, #tpu.memory_space<vmem>>, vector<2x256xbf16>
      tpu.vector_store %arg11[%c0_29, %c0_30], %56 {strides = array<i32>} : memref<2x256xbf16, #tpu.memory_space<vmem>>, vector<2x256xbf16>,
      %cst_31 = arith.constant 0.000000e+00 : f32
      %58 = vector.broadcast %cst_31 : f32 to vector<2x256xf32>
      %59 = arith.maximumf %53, %58 : vector<2x256xf32>
      %60 = arith.truncf %59 : vector<2x256xf32> to vector<2x256xbf16>
      %c0_32 = arith.constant 0 : index
      %c0_33 = arith.constant 0 : index
      %61 = vector.load %arg12[%c0_32, %c0_33] : memref<2x256xbf16, #tpu.memory_space<vmem>>, vector<2x256xbf16>
      tpu.vector_store %arg12[%c0_32, %c0_33], %60 {strides = array<i32>} : memref<2x256xbf16, #tpu.memory_space<vmem>>, vector<2x256xbf16>,
      %cst_34 = arith.constant 0.000000e+00 : f32
      %62 = vector.broadcast %cst_34 : f32 to vector<2x128xf32>
      %c0_35 = arith.constant 0 : index
      %c0_36 = arith.constant 0 : index
      %63 = vector.load %arg10[%c0_35, %c0_36] : memref<2x128xf32, #tpu.memory_space<vmem>>, vector<2x128xf32>
      tpu.vector_store %arg10[%c0_35, %c0_36], %62 {strides = array<i32>} : memref<2x128xf32, #tpu.memory_space<vmem>>, vector<2x128xf32>,
    } else {
    }
    %c0 = arith.constant 0 : index
    %c0_1 = arith.constant 0 : index
    %3 = vector.load %arg11[%c0, %c0_1] : memref<2x256xbf16, #tpu.memory_space<vmem>>, vector<2x256xbf16>
    %c0_2 = arith.constant 0 : index
    %c0_3 = arith.constant 0 : index
    %4 = vector.load %arg6[%c0_2, %c0_3] : memref<256x1024xbf16, #tpu.memory_space<vmem>>, vector<256x1024xbf16>
    %cst = arith.constant dense<0.000000e+00> : vector<2x1024xf32>
    %5 = tpu.matmul %3, %4, %cst {dimension_numbers = #tpu.dot_dimension_numbers<[1], [0], [0], [1], [0, 0, 1, 1], [], []>} : vector<2x256xbf16>, vector<256x1024xbf16>, vector<2x1024xf32> -> vector<2x1024xf32>
    %c0_4 = arith.constant 0 : index
    %c0_5 = arith.constant 0 : index
    %6 = vector.load %arg7[%c0_4, %c0_5] : memref<1x1024xf32, #tpu.memory_space<vmem>>, vector<1x1024xf32>
    %7 = vector.broadcast %6 : vector<1x1024xf32> to vector<2x1024xf32>
    %8 = arith.addf %5, %7 : vector<2x1024xf32>
    %c0_6 = arith.constant 0 : index
    %c0_7 = arith.constant 0 : index
    %9 = vector.load %arg8[%c0_6, %c0_7] : memref<2x1024xf32, #tpu.memory_space<vmem>>, vector<2x1024xf32>
    %10 = arith.mulf %8, %9 : vector<2x1024xf32>
    %11 = vector.extract_strided_slice %10 {offsets = [0, 0], sizes = [2, 128], strides = [1, 1]} : vector<2x1024xf32> to vector<2x128xf32>
    %12 = vector.extract_strided_slice %10 {offsets = [0, 128], sizes = [2, 128], strides = [1, 1]} : vector<2x1024xf32> to vector<2x128xf32>
    %13 = arith.addf %11, %12 : vector<2x128xf32>
    %14 = vector.extract_strided_slice %10 {offsets = [0, 256], sizes = [2, 128], strides = [1, 1]} : vector<2x1024xf32> to vector<2x128xf32>
    %15 = arith.addf %13, %14 : vector<2x128xf32>
    %16 = vector.extract_strided_slice %10 {offsets = [0, 384], sizes = [2, 128], strides = [1, 1]} : vector<2x1024xf32> to vector<2x128xf32>
    %17 = arith.addf %15, %16 : vector<2x128xf32>
    %18 = vector.extract_strided_slice %10 {offsets = [0, 512], sizes = [2, 128], strides = [1, 1]} : vector<2x1024xf32> to vector<2x128xf32>
    %19 = arith.addf %17, %18 : vector<2x128xf32>
    %20 = vector.extract_strided_slice %10 {offsets = [0, 640], sizes = [2, 128], strides = [1, 1]} : vector<2x1024xf32> to vector<2x128xf32>
    %21 = arith.addf %19, %20 : vector<2x128xf32>
    %22 = vector.extract_strided_slice %10 {offsets = [0, 768], sizes = [2, 128], strides = [1, 1]} : vector<2x1024xf32> to vector<2x128xf32>
    %23 = arith.addf %21, %22 : vector<2x128xf32>
    %24 = vector.extract_strided_slice %10 {offsets = [0, 896], sizes = [2, 128], strides = [1, 1]} : vector<2x1024xf32> to vector<2x128xf32>
    %25 = arith.addf %23, %24 : vector<2x128xf32>
    %c0_8 = arith.constant 0 : index
    %c0_9 = arith.constant 0 : index
    %26 = vector.load %arg10[%c0_8, %c0_9] : memref<2x128xf32, #tpu.memory_space<vmem>>, vector<2x128xf32>
    %27 = arith.addf %26, %25 : vector<2x128xf32>
    %c0_10 = arith.constant 0 : index
    %c0_11 = arith.constant 0 : index
    %28 = vector.load %arg10[%c0_10, %c0_11] : memref<2x128xf32, #tpu.memory_space<vmem>>, vector<2x128xf32>
    tpu.vector_store %arg10[%c0_10, %c0_11], %27 {strides = array<i32>} : memref<2x128xf32, #tpu.memory_space<vmem>>, vector<2x128xf32>,
    %c3_i32 = arith.constant 3 : i32
    %29 = arith.cmpi eq, %arg0, %c3_i32 : i32
    %30 = arith.extui %29 : i1 to i32
    %c0_i32_12 = arith.constant 0 : i32
    %31 = arith.cmpi ne, %30, %c0_i32_12 : i32
    scf.if %31 {
      %c0_13 = arith.constant 0 : index
      %c640 = arith.constant 640 : index
      %32 = vector.load %arg4[%c0_13, %c640] : memref<1x1152xf32, #tpu.memory_space<vmem>>, vector<1x512xf32>
      %c0_14 = arith.constant 0 : index
      %c0_15 = arith.constant 0 : index
      %33 = vector.load %arg12[%c0_14, %c0_15] : memref<2x256xbf16, #tpu.memory_space<vmem>>, vector<2x256xbf16>
      %c0_16 = arith.constant 0 : index
      %c0_17 = arith.constant 0 : index
      %34 = vector.load %arg5[%c0_16, %c0_17] : memref<256x512xbf16, #tpu.memory_space<vmem>>, vector<256x512xbf16>
      %cst_18 = arith.constant dense<0.000000e+00> : vector<2x512xf32>
      %35 = tpu.matmul %33, %34, %cst_18 {dimension_numbers = #tpu.dot_dimension_numbers<[1], [0], [0], [1], [0, 0, 1, 1], [], []>} : vector<2x256xbf16>, vector<256x512xbf16>, vector<2x512xf32> -> vector<2x512xf32>
      %36 = vector.broadcast %32 : vector<1x512xf32> to vector<2x512xf32>
      %37 = arith.addf %35, %36 : vector<2x512xf32>
      %c0_19 = arith.constant 0 : index
      %c0_20 = arith.constant 0 : index
      %38 = vector.load %arg10[%c0_19, %c0_20] : memref<2x128xf32, #tpu.memory_space<vmem>>, vector<2x128xf32>
      %cst_21 = arith.constant 0.000000e+00 : f32
      %39 = vector.broadcast %cst_21 : f32 to vector<2x128xf32>
      %40 = vector.extract_strided_slice %38 {offsets = [0, 0], sizes = [2, 32], strides = [1, 1]} : vector<2x128xf32> to vector<2x32xf32>
      %41 = vector.shape_cast %40 : vector<2x32xf32> to vector<2x32x1xf32>
      %42 = vector.shape_cast %41 : vector<2x32x1xf32> to vector<2x32x1xf32>
      %43 = vector.broadcast %42 : vector<2x32x1xf32> to vector<2x32x4xf32>
      %44 = vector.shape_cast %43 : vector<2x32x4xf32> to vector<2x128xf32>
      %45 = vector.extract_strided_slice %37 {offsets = [0, 0], sizes = [2, 128], strides = [1, 1]} : vector<2x512xf32> to vector<2x128xf32>
      %46 = arith.mulf %44, %45 : vector<2x128xf32>
      %47 = arith.addf %39, %46 : vector<2x128xf32>
      %48 = vector.extract_strided_slice %38 {offsets = [0, 32], sizes = [2, 32], strides = [1, 1]} : vector<2x128xf32> to vector<2x32xf32>
      %49 = vector.shape_cast %48 : vector<2x32xf32> to vector<2x32x1xf32>
      %50 = vector.shape_cast %49 : vector<2x32x1xf32> to vector<2x32x1xf32>
      %51 = vector.broadcast %50 : vector<2x32x1xf32> to vector<2x32x4xf32>
      %52 = vector.shape_cast %51 : vector<2x32x4xf32> to vector<2x128xf32>
      %53 = vector.extract_strided_slice %37 {offsets = [0, 128], sizes = [2, 128], strides = [1, 1]} : vector<2x512xf32> to vector<2x128xf32>
      %54 = arith.mulf %52, %53 : vector<2x128xf32>
      %55 = arith.addf %47, %54 : vector<2x128xf32>
      %56 = vector.extract_strided_slice %38 {offsets = [0, 64], sizes = [2, 32], strides = [1, 1]} : vector<2x128xf32> to vector<2x32xf32>
      %57 = vector.shape_cast %56 : vector<2x32xf32> to vector<2x32x1xf32>
      %58 = vector.shape_cast %57 : vector<2x32x1xf32> to vector<2x32x1xf32>
      %59 = vector.broadcast %58 : vector<2x32x1xf32> to vector<2x32x4xf32>
      %60 = vector.shape_cast %59 : vector<2x32x4xf32> to vector<2x128xf32>
      %61 = vector.extract_strided_slice %37 {offsets = [0, 256], sizes = [2, 128], strides = [1, 1]} : vector<2x512xf32> to vector<2x128xf32>
      %62 = arith.mulf %60, %61 : vector<2x128xf32>
      %63 = arith.addf %55, %62 : vector<2x128xf32>
      %64 = vector.extract_strided_slice %38 {offsets = [0, 96], sizes = [2, 32], strides = [1, 1]} : vector<2x128xf32> to vector<2x32xf32>
      %65 = vector.shape_cast %64 : vector<2x32xf32> to vector<2x32x1xf32>
      %66 = vector.shape_cast %65 : vector<2x32x1xf32> to vector<2x32x1xf32>
      %67 = vector.broadcast %66 : vector<2x32x1xf32> to vector<2x32x4xf32>
      %68 = vector.shape_cast %67 : vector<2x32x4xf32> to vector<2x128xf32>
      %69 = vector.extract_strided_slice %37 {offsets = [0, 384], sizes = [2, 128], strides = [1, 1]} : vector<2x512xf32> to vector<2x128xf32>
      %70 = arith.mulf %68, %69 : vector<2x128xf32>
      %71 = arith.addf %63, %70 : vector<2x128xf32>
      %c0_22 = arith.constant 0 : index
      %c0_23 = arith.constant 0 : index
      %72 = vector.load %arg9[%c0_22, %c0_23] : memref<2x128xf32, #tpu.memory_space<vmem>>, vector<2x128xf32>
      tpu.vector_store %arg9[%c0_22, %c0_23], %71 {strides = array<i32>} : memref<2x128xf32, #tpu.memory_space<vmem>>, vector<2x128xf32>,
    } else {
    }
    return
  }
  func.func @transform_0(%arg0: i32) -> (i32, i32) {
    %c0_i32 = arith.constant 0 : i32
    %c0_i32_0 = arith.constant 0 : i32
    %c0_i32_1 = arith.constant 0 : i32
    return %c0_i32, %c0_i32_0 : i32, i32
  }
  func.func @transform_1(%arg0: i32) -> (i32, i32) {
    %c0_i32 = arith.constant 0 : i32
    %c0_i32_0 = arith.constant 0 : i32
    %c0_i32_1 = arith.constant 0 : i32
    return %c0_i32, %c0_i32_0 : i32, i32
  }
  func.func @transform_2(%arg0: i32) -> (i32, i32) {
    %c0_i32 = arith.constant 0 : i32
    %c0_i32_0 = arith.constant 0 : i32
    %c0_i32_1 = arith.constant 0 : i32
    return %c0_i32, %c0_i32_0 : i32, i32
  }
  func.func @transform_3(%arg0: i32) -> (i32, i32) {
    %c0_i32 = arith.constant 0 : i32
    %c0_i32_0 = arith.constant 0 : i32
    %c0_i32_1 = arith.constant 0 : i32
    return %c0_i32, %c0_i32_0 : i32, i32
  }
  func.func @transform_4(%arg0: i32) -> (i32, i32) {
    %c0_i32 = arith.constant 0 : i32
    %c0_i32_0 = arith.constant 0 : i32
    %c0_i32_1 = arith.constant 0 : i32
    return %c0_i32, %c0_i32_0 : i32, i32
  }
  func.func @transform_5(%arg0: i32) -> (i32, i32) {
    %c0_i32 = arith.constant 0 : i32
    %c0_i32_0 = arith.constant 0 : i32
    return %c0_i32, %arg0 : i32, i32
  }
  func.func @transform_6(%arg0: i32) -> (i32, i32) {
    %c0_i32 = arith.constant 0 : i32
    %c0_i32_0 = arith.constant 0 : i32
    return %c0_i32, %arg0 : i32, i32
  }
  func.func @transform_7(%arg0: i32) -> (i32, i32) {
    %c0_i32 = arith.constant 0 : i32
    %c0_i32_0 = arith.constant 0 : i32
    return %c0_i32, %arg0 : i32, i32
  }
  func.func @transform_8(%arg0: i32) -> (i32, i32) {
    %c0_i32 = arith.constant 0 : i32
    %c0_i32_0 = arith.constant 0 : i32
    %c0_i32_1 = arith.constant 0 : i32
    return %c0_i32, %c0_i32_0 : i32, i32
  }
}

</mosaic_0001>

<llo_original>
// kernel: tpu_custom_call.1
$region0: #{tpu_custom_call.1}
  #allocation0 [shape = 'u32[]', space=smem, size = 0x4, offset = 0x4, fixed_abs, tag = 'smem constant byte address 0x4 - core index']
  #allocation1 [shape = 'u32[144,128]{1,0:T(1,128)}', space=vmem, size = 0x12000, scoped, tag = 'internal scratch']
  #allocation2 [shape = 'f32[2,128]{1,0:T(2,128)}', space=vmem, size = 0x400, scoped, tag = 'scratch operand']
  #allocation3 [shape = 'bf16[2,256]{1,0:T(2,128)(2,1)}', space=vmem, size = 0x400, scoped, tag = 'scratch operand']
  #allocation4 [shape = 'bf16[2,256]{1,0:T(2,128)(2,1)}', space=vmem, size = 0x400, scoped, tag = 'scratch operand']
  %s0 = inlined_call_operand.hbm [shape: f32[2,56], index: 0, kind: input, shape index: {}]
  %s1 = inlined_call_operand.hbm [shape: bf16[56,128], index: 1, kind: input, shape index: {}]
  %s2 = inlined_call_operand.hbm [shape: bf16[64,512], index: 2, kind: input, shape index: {}]
  %s3 = inlined_call_operand.hbm [shape: f32[1,1152], index: 3, kind: input, shape index: {}]
  %s4 = inlined_call_operand.hbm [shape: bf16[256,512], index: 4, kind: input, shape index: {}]
  %s5 = inlined_call_operand.hbm [shape: bf16[256,4096], index: 5, kind: input, shape index: {}]
  %s6 = inlined_call_operand.hbm [shape: f32[1,4096], index: 6, kind: input, shape index: {}]
  %s7 = inlined_call_operand.hbm [shape: f32[2,4096], index: 7, kind: input, shape index: {}]
  %s8 = inlined_call_operand.hbm [shape: f32[2,128], index: 8, kind: output, shape index: {}]
  %s9 = sld [smem:[#allocation0]]
  $region105: #{tpu_custom_call.1} parent=0
    _
  %s11 = ssub.s32 1, %s9
  %s12 = scalar_select 0, %s11, %s9
  $region1: #{tpu_custom_call.1} parent=0
    #allocation5 [shape = 'u8[1024]{0}', space=vmem, size = 0x400, scoped, tag = 'input window, operand 0, single buffered']
    #allocation6 [shape = 's32[2]{0}', space=sflag, size = 0x8, scoped, tag = 'scoped memory for tpu_custom_call.1']
    #allocation7 [shape = 's32[2]{0}', space=sflag, size = 0x8, scoped, tag = 'scoped memory for tpu_custom_call.1']
    #allocation8 [shape = 'u8[14336]{0}', space=vmem, size = 0x3800, scoped, tag = 'input window, operand 1, single buffered']
    #allocation9 [shape = 's32[1]{0}', space=sflag, size = 0x4, scoped, tag = 'scoped memory for tpu_custom_call.1']
    #allocation10 [shape = 'u8[65536]{0}', space=vmem, size = 0x10000, scoped, tag = 'input window, operand 2, single buffered']
    #allocation11 [shape = 'u8[4608]{0}', space=vmem, size = 0x1400, scoped, tag = 'input window, operand 3, single buffered']
    #allocation12 [shape = 's32[1]{0}', space=sflag, size = 0x4, scoped, tag = 'scoped memory for tpu_custom_call.1']
    #allocation13 [shape = 'u8[262144]{0}', space=vmem, size = 0x40000, scoped, tag = 'input window, operand 4, single buffered']
    #allocation14 [shape = 'u8[1048576]{0}', space=vmem, size = 0x100000, scoped, tag = 'input window, operand 5']
    #allocation15 [shape = 's32[2]{0}', space=sflag, size = 0x8, scoped, tag = 'scoped memory for tpu_custom_call.1']
    #allocation16 [shape = 'u8[8192]{0}', space=vmem, size = 0x2000, scoped, tag = 'input window, operand 6']
    #allocation17 [shape = 'u8[16384]{0}', space=vmem, size = 0x4000, scoped, tag = 'input window, operand 7']
    #allocation18 [shape = 's32[2]{0}', space=sflag, size = 0x8, scoped, tag = 'scoped memory for tpu_custom_call.1']
    #allocation19 [shape = 'u8[1024]{0}', space=vmem, size = 0x400, scoped, tag = 'output window, operand 0, single buffered']
    %13 = vsyncpa [#allocation6], 0
    %14 = vsyncpa [#allocation9], 0
    %15 = vsyncpa [#allocation12], 0
    %16 = vsyncpa [#allocation15], 0
    %s17 = scalar_lea.sflag [#allocation15], 1
    %18 = vsyncpa %s17, 0
    %19 = vsyncpa [#allocation18], 0
    %s20 = scalar_lea.sflag [#allocation18], 1
    %21 = vsyncpa %s20, 0
    %22 = vsyncpa [#allocation7], 0
    loop: start=0, step=1, limit=6
    $region2: #{tpu_custom_call.1} parent=1 // loop_pre_header
      _
    $region3: #{tpu_custom_call.1} parent=1 // loop_header
      %s24 = sphi 0, %s28
      %p25 = scmp.ge.s32.totalorder %s24, 6
      %s32 = sphi 0, %s32
      %s34 = sphi 0, %s32
      %s35 = sphi 0, %s34
      %s49 = sphi 0, %s35
      %s53 = sphi 0, %s53
      %s55 = sphi 0, %s53
      %s56 = sphi 0, %s55
      %s70 = sphi 0, %s56
      %s74 = sphi 0, %s74
      %s76 = sphi 0, %s74
      %s77 = sphi 0, %s76
      %s91 = sphi 0, %s77
      %s95 = sphi 0, %s95
      %s97 = sphi 0, %s95
      %s98 = sphi 0, %s97
      %s112 = sphi 0, %s98
      %s116 = sphi 0, %s116
      %s118 = sphi 0, %s116
      %s119 = sphi 0, %s118
      %s133 = sphi 0, %s119
      %s139 = sphi 0, %s141
      %s142 = sphi 0, %s139
      %s143 = sphi 0, %s142
      %s159 = sphi 0, %s143
      %s165 = sphi 0, %s167
      %s168 = sphi 0, %s165
      %s169 = sphi 0, %s168
      %s185 = sphi 0, %s169
      %s191 = sphi 0, %s193
      %s194 = sphi 0, %s191
      %s195 = sphi 0, %s194
      %s211 = sphi 0, %s195
      %s215 = sphi 0, %s215
      %s217 = sphi 0, %s215
      %s218 = sphi 0, %s217
      %s232 = sphi 0, %s218
    $region4: #{tpu_custom_call.1} parent=1 // loop_header_branch
      %27 = sbr.rel (%p25) target = $region8
    $region5: #{tpu_custom_call.1} parent=1 // loop_body
      %s29 = ssub.s32 %s24, 1
      %s30 = ssub.s32 %s24, 2
      %s31 = sadd.s32 %s24, 1
      %s33 = sadd.s32 %s32, 1
      %p36 = scmp.eq.s32.totalorder %s24, 3
      %p37 = scmp.ne.s32.totalorder %s32, %s34
      %p38 = scmp.eq.s32.totalorder %s24, 0
      %p39 = por %p37, %p38
      %p40 = scmp.ne.s32.totalorder %s32, %s34
      %p41 = scmp.eq.s32.totalorder %s29, 3
      %p42 = por %p40, %p41
      %p43 = scmp.ne.s32.totalorder %s34, %s35
      %p44 = scmp.eq.s32.totalorder %s29, 0
      %p45 = por %p43, %p44
      %p46 = scmp.ne.s32.totalorder %s34, %s35
      %p47 = scmp.eq.s32.totalorder %s30, 3
      %p48 = por %p46, %p47
      %p50 = scmp.ne.s32.totalorder %s35, %s49
      %p51 = scmp.eq.s32.totalorder %s30, 0
      %p52 = por %p50, %p51
      %s54 = sadd.s32 %s53, 1
      %p57 = scmp.eq.s32.totalorder %s24, 3
      %p58 = scmp.ne.s32.totalorder %s53, %s55
      %p59 = scmp.eq.s32.totalorder %s24, 0
      %p60 = por %p58, %p59
      %p61 = scmp.ne.s32.totalorder %s53, %s55
      %p62 = scmp.eq.s32.totalorder %s29, 3
      %p63 = por %p61, %p62
      %p64 = scmp.ne.s32.totalorder %s55, %s56
      %p65 = scmp.eq.s32.totalorder %s29, 0
      %p66 = por %p64, %p65
      %p67 = scmp.ne.s32.totalorder %s55, %s56
      %p68 = scmp.eq.s32.totalorder %s30, 3
      %p69 = por %p67, %p68
      %p71 = scmp.ne.s32.totalorder %s56, %s70
      %p72 = scmp.eq.s32.totalorder %s30, 0
      %p73 = por %p71, %p72
      %s75 = sadd.s32 %s74, 1
      %p78 = scmp.eq.s32.totalorder %s24, 3
      %p79 = scmp.ne.s32.totalorder %s74, %s76
      %p80 = scmp.eq.s32.totalorder %s24, 0
      %p81 = por %p79, %p80
      %p82 = scmp.ne.s32.totalorder %s74, %s76
      %p83 = scmp.eq.s32.totalorder %s29, 3
      %p84 = por %p82, %p83
      %p85 = scmp.ne.s32.totalorder %s76, %s77
      %p86 = scmp.eq.s32.totalorder %s29, 0
      %p87 = por %p85, %p86
      %p88 = scmp.ne.s32.totalorder %s76, %s77
      %p89 = scmp.eq.s32.totalorder %s30, 3
      %p90 = por %p88, %p89
      %p92 = scmp.ne.s32.totalorder %s77, %s91
      %p93 = scmp.eq.s32.totalorder %s30, 0
      %p94 = por %p92, %p93
      %s96 = sadd.s32 %s95, 1
      %p99 = scmp.eq.s32.totalorder %s24, 3
      %p100 = scmp.ne.s32.totalorder %s95, %s97
      %p101 = scmp.eq.s32.totalorder %s24, 0
      %p102 = por %p100, %p101
      %p103 = scmp.ne.s32.totalorder %s95, %s97
      %p104 = scmp.eq.s32.totalorder %s29, 3
      %p105 = por %p103, %p104
      %p106 = scmp.ne.s32.totalorder %s97, %s98
      %p107 = scmp.eq.s32.totalorder %s29, 0
      %p108 = por %p106, %p107
      %p109 = scmp.ne.s32.totalorder %s97, %s98
      %p110 = scmp.eq.s32.totalorder %s30, 3
      %p111 = por %p109, %p110
      %p113 = scmp.ne.s32.totalorder %s98, %s112
      %p114 = scmp.eq.s32.totalorder %s30, 0
      %p115 = por %p113, %p114
      %s117 = sadd.s32 %s116, 1
      %p120 = scmp.eq.s32.totalorder %s24, 3
      %p121 = scmp.ne.s32.totalorder %s116, %s118
      %p122 = scmp.eq.s32.totalorder %s24, 0
      %p123 = por %p121, %p122
      %p124 = scmp.ne.s32.totalorder %s116, %s118
      %p125 = scmp.eq.s32.totalorder %s29, 3
      %p126 = por %p124, %p125
      %p127 = scmp.ne.s32.totalorder %s118, %s119
      %p128 = scmp.eq.s32.totalorder %s29, 0
      %p129 = por %p127, %p128
      %p130 = scmp.ne.s32.totalorder %s118, %s119
      %p131 = scmp.eq.s32.totalorder %s30, 3
      %p132 = por %p130, %p131
      %p134 = scmp.ne.s32.totalorder %s119, %s133
      %p135 = scmp.eq.s32.totalorder %s30, 0
      %p136 = por %p134, %p135
      %s137 = ssub.s32 %s24, %s31
      %p138 = scmp.eq.s32.totalorder %s137, 0
      %s140 = sadd.s32 %s139, 1
      %s141 = scalar_select %p138, %s139, %s140
      %p144 = pneg %p138
      %p145 = scmp.eq.s32.totalorder %s24, 3
      %p146 = por %p144, %p145
      %p147 = scmp.ne.s32.totalorder %s139, %s142
      %p148 = scmp.eq.s32.totalorder %s24, 0
      %p149 = por %p147, %p148
      %p150 = scmp.ne.s32.totalorder %s139, %s142
      %p151 = scmp.eq.s32.totalorder %s29, 3
      %p152 = por %p150, %p151
      %p153 = scmp.ne.s32.totalorder %s142, %s143
      %p154 = scmp.eq.s32.totalorder %s29, 0
      %p155 = por %p153, %p154
      %p156 = scmp.ne.s32.totalorder %s142, %s143
      %p157 = scmp.eq.s32.totalorder %s30, 3
      %p158 = por %p156, %p157
      %p160 = scmp.ne.s32.totalorder %s143, %s159
      %p161 = scmp.eq.s32.totalorder %s30, 0
      %p162 = por %p160, %p161
      %s163 = ssub.s32 %s24, %s31
      %p164 = scmp.eq.s32.totalorder %s163, 0
      %s166 = sadd.s32 %s165, 1
      %s167 = scalar_select %p164, %s165, %s166
      %p170 = pneg %p164
      %p171 = scmp.eq.s32.totalorder %s24, 3
      %p172 = por %p170, %p171
      %p173 = scmp.ne.s32.totalorder %s165, %s168
      %p174 = scmp.eq.s32.totalorder %s24, 0
      %p175 = por %p173, %p174
      %p176 = scmp.ne.s32.totalorder %s165, %s168
      %p177 = scmp.eq.s32.totalorder %s29, 3
      %p178 = por %p176, %p177
      %p179 = scmp.ne.s32.totalorder %s168, %s169
      %p180 = scmp.eq.s32.totalorder %s29, 0
      %p181 = por %p179, %p180
      %p182 = scmp.ne.s32.totalorder %s168, %s169
      %p183 = scmp.eq.s32.totalorder %s30, 3
      %p184 = por %p182, %p183
      %p186 = scmp.ne.s32.totalorder %s169, %s185
      %p187 = scmp.eq.s32.totalorder %s30, 0
      %p188 = por %p186, %p187
      %s189 = ssub.s32 %s24, %s31
      %p190 = scmp.eq.s32.totalorder %s189, 0
      %s192 = sadd.s32 %s191, 1
      %s193 = scalar_select %p190, %s191, %s192
      %p196 = pneg %p190
      %p197 = scmp.eq.s32.totalorder %s24, 3
      %p198 = por %p196, %p197
      %p199 = scmp.ne.s32.totalorder %s191, %s194
      %p200 = scmp.eq.s32.totalorder %s24, 0
      %p201 = por %p199, %p200
      %p202 = scmp.ne.s32.totalorder %s191, %s194
      %p203 = scmp.eq.s32.totalorder %s29, 3
      %p204 = por %p202, %p203
      %p205 = scmp.ne.s32.totalorder %s194, %s195
      %p206 = scmp.eq.s32.totalorder %s29, 0
      %p207 = por %p205, %p206
      %p208 = scmp.ne.s32.totalorder %s194, %s195
      %p209 = scmp.eq.s32.totalorder %s30, 3
      %p210 = por %p208, %p209
      %p212 = scmp.ne.s32.totalorder %s195, %s211
      %p213 = scmp.eq.s32.totalorder %s30, 0
      %p214 = por %p212, %p213
      %s216 = sadd.s32 %s215, 1
      %p219 = scmp.eq.s32.totalorder %s24, 3
      %p220 = scmp.ne.s32.totalorder %s215, %s217
      %p221 = scmp.eq.s32.totalorder %s24, 0
      %p222 = por %p220, %p221
      %p223 = scmp.ne.s32.totalorder %s215, %s217
      %p224 = scmp.eq.s32.totalorder %s29, 3
      %p225 = por %p223, %p224
      %p226 = scmp.ne.s32.totalorder %s217, %s218
      %p227 = scmp.eq.s32.totalorder %s29, 0
      %p228 = por %p226, %p227
      %p229 = scmp.ne.s32.totalorder %s217, %s218
      %p230 = scmp.eq.s32.totalorder %s30, 3
      %p231 = por %p229, %p230
      %p233 = scmp.ne.s32.totalorder %s218, %s232
      %p234 = scmp.eq.s32.totalorder %s30, 0
      %p235 = por %p233, %p234
      %p236 = scmp.le.s32.totalorder 1, %s24
      %p237 = scmp.lt.s32.totalorder %s24, 5
      %p238 = pnand %p236, %p237
      %p239 = pneg %p238
      // Predicated region
      $region9: #{tpu_custom_call.1} parent=5 // pred_check
        _
      $region10: #{tpu_custom_call.1} parent=5 // pred_check_branch
        %241 = sbr.rel (%p238) target = $region12
      $region11: #{tpu_custom_call.1} parent=5 // pred_region
        %s242 = ssub.s32 %s24, 1
        // Predicated region
        $region13: #{tpu_custom_call.1} parent=11 // pred_check
          %p243 = pneg %p45
        $region14: #{tpu_custom_call.1} parent=11 // pred_check_branch
          %245 = sbr.rel (%p243) target = $region16
        $region15: #{tpu_custom_call.1} parent=11 // pred_region
          %s247 = ssub.s32 32, 32
          %248 = vsyncadd [#allocation6], %s247
          %s250 = sshll.u32 [#allocation5], 4
          %s251 = int_to_ptr.vmem [resolvable:$true] %s250
          %253 = dma.hbm_to_vmem [thread:$0]  %s0, 32, %s251, [#allocation6]
        $region16: #{tpu_custom_call.1} parent=11 // pred_fallthru
          _
        // Predicated region
        $region17: #{tpu_custom_call.1} parent=11 // pred_check
          %p254 = pneg %p66
        $region18: #{tpu_custom_call.1} parent=11 // pred_check_branch
          %256 = sbr.rel (%p254) target = $region20
        $region19: #{tpu_custom_call.1} parent=11 // pred_region
          %s258 = ssub.s32 448, 448
          %259 = vsyncadd [#allocation9], %s258
          %s260 = sshll.u32 [#allocation8], 4
          %s261 = int_to_ptr.vmem [resolvable:$true] %s260
          %266 = dma.hbm_to_vmem [thread:$0]  %s1, 448, %s261, [#allocation9], 64, 64, 4
        $region20: #{tpu_custom_call.1} parent=11 // pred_fallthru
          _
        // Predicated region
        $region21: #{tpu_custom_call.1} parent=11 // pred_check
          %p267 = pneg %p87
        $region22: #{tpu_custom_call.1} parent=11 // pred_check_branch
          %269 = sbr.rel (%p267) target = $region24
        $region23: #{tpu_custom_call.1} parent=11 // pred_region
          %s271 = ssub.s32 2048, 2048
          %272 = vsyncadd [#allocation9], %s271
          %s273 = sshll.u32 [#allocation10], 4
          %s274 = int_to_ptr.vmem [resolvable:$true] %s273
          %279 = dma.hbm_to_vmem [thread:$0]  %s2, 2048, %s274, [#allocation9], 256, 256, 16
        $region24: #{tpu_custom_call.1} parent=11 // pred_fallthru
          _
        // Predicated region
        $region25: #{tpu_custom_call.1} parent=11 // pred_check
          %p280 = pneg %p108
        $region26: #{tpu_custom_call.1} parent=11 // pred_check_branch
          %282 = sbr.rel (%p280) target = $region28
        $region27: #{tpu_custom_call.1} parent=11 // pred_region
          %s284 = ssub.s32 144, 144
          %285 = vsyncadd [#allocation12], %s284
          %s287 = sshll.u32 [#allocation11], 4
          %s288 = int_to_ptr.vmem [resolvable:$true] %s287
          %290 = dma.hbm_to_vmem [thread:$0]  %s3, 144, %s288, [#allocation12]
        $region28: #{tpu_custom_call.1} parent=11 // pred_fallthru
          _
        // Predicated region
        $region29: #{tpu_custom_call.1} parent=11 // pred_check
          %p291 = pneg %p129
        $region30: #{tpu_custom_call.1} parent=11 // pred_check_branch
          %293 = sbr.rel (%p291) target = $region32
        $region31: #{tpu_custom_call.1} parent=11 // pred_region
          %s295 = ssub.s32 8192, 8192
          %296 = vsyncadd [#allocation12], %s295
          %s297 = sshll.u32 [#allocation13], 4
          %s298 = int_to_ptr.vmem [resolvable:$true] %s297
          %303 = dma.hbm_to_vmem [thread:$0]  %s4, 8192, %s298, [#allocation12], 256, 256, 16
        $region32: #{tpu_custom_call.1} parent=11 // pred_fallthru
          _
      $region12: #{tpu_custom_call.1} parent=5 // pred_fallthru
        _
      %p304 = scmp.lt.s32.totalorder %s24, 4
      // Predicated region
      $region33: #{tpu_custom_call.1} parent=5 // pred_check
        %p305 = pneg %p304
      $region34: #{tpu_custom_call.1} parent=5 // pred_check_branch
        %307 = sbr.rel (%p305) target = $region36
      $region35: #{tpu_custom_call.1} parent=5 // pred_region
        // Predicated region
        $region37: #{tpu_custom_call.1} parent=35 // pred_check
          %p308 = pneg %p149
        $region38: #{tpu_custom_call.1} parent=35 // pred_check_branch
          %310 = sbr.rel (%p308) target = $region40
        $region39: #{tpu_custom_call.1} parent=35 // pred_region
          %s311 = sand.u32 %s24, 1
          %s312 = scalar_lea.sflag [#allocation15], %s311
          %s313 = sand.u32 %s139, 1
          %s314 = smul.addr %s313, 1024
          %s315 = scalar_lea.vmem [#allocation14], %s314
          %s316 = smul.u32 8, %s24
          %s318 = ssub.s32 16384, 16384
          %319 = vsyncadd %s312, %s318
          %s320 = smul.addr %s316, 64
          %s321 = scalar_lea.hbm %s5, %s320
          %s322 = sshll.u32 %s315, 4
          %s323 = int_to_ptr.vmem [resolvable:$true] %s322
          %328 = dma.hbm_to_vmem [thread:$0]  %s321, 16384, %s323, %s312, 2048, 512, 32
        $region40: #{tpu_custom_call.1} parent=35 // pred_fallthru
          _
        // Predicated region
        $region41: #{tpu_custom_call.1} parent=35 // pred_check
          %p329 = pneg %p175
        $region42: #{tpu_custom_call.1} parent=35 // pred_check_branch
          %331 = sbr.rel (%p329) target = $region44
        $region43: #{tpu_custom_call.1} parent=35 // pred_region
          %s332 = sand.u32 %s24, 1
          %s333 = scalar_lea.sflag [#allocation15], %s332
          %s334 = sand.u32 %s165, 1
          %s335 = smul.addr %s334, 8
          %s336 = scalar_lea.vmem [#allocation16], %s335
          %s337 = smul.u32 8, %s24
          %s339 = ssub.s32 128, 128
          %340 = vsyncadd %s333, %s339
          %s341 = smul.addr %s337, 16
          %s342 = scalar_lea.hbm %s6, %s341
          %s344 = sshll.u32 %s336, 4
          %s345 = int_to_ptr.vmem [resolvable:$true] %s344
          %347 = dma.hbm_to_vmem [thread:$0]  %s342, 128, %s345, %s333
        $region44: #{tpu_custom_call.1} parent=35 // pred_fallthru
          _
        // Predicated region
        $region45: #{tpu_custom_call.1} parent=35 // pred_check
          %p348 = pneg %p201
        $region46: #{tpu_custom_call.1} parent=35 // pred_check_branch
          %350 = sbr.rel (%p348) target = $region48
        $region47: #{tpu_custom_call.1} parent=35 // pred_region
          %s351 = sand.u32 %s191, 1
          %s352 = scalar_lea.sflag [#allocation18], %s351
          %s353 = sand.u32 %s191, 1
          %s354 = smul.addr %s353, 16
          %s355 = scalar_lea.vmem [#allocation17], %s354
          %s356 = smul.u32 8, %s24
          %s358 = ssub.s32 256, 256
          %359 = vsyncadd %s352, %s358
          %s360 = smul.addr %s356, 32
          %s361 = scalar_lea.hbm %s7, %s360
          %s363 = sshll.u32 %s355, 4
          %s364 = int_to_ptr.vmem [resolvable:$true] %s363
          %366 = dma.hbm_to_vmem [thread:$0]  %s361, 256, %s364, %s352
        $region48: #{tpu_custom_call.1} parent=35 // pred_fallthru
          _
      $region36: #{tpu_custom_call.1} parent=5 // pred_fallthru
        _
      %p367 = scmp.le.s32.totalorder 1, %s24
      %p368 = scmp.lt.s32.totalorder %s24, 5
      %p369 = pnand %p367, %p368
      %p370 = pneg %p369
      // Predicated region
      $region49: #{tpu_custom_call.1} parent=5 // pred_check
        _
      $region50: #{tpu_custom_call.1} parent=5 // pred_check_branch
        %372 = sbr.rel (%p369) target = $region52
      $region51: #{tpu_custom_call.1} parent=5 // pred_region
        %s373 = ssub.s32 %s24, 1
        // Predicated region
        $region53: #{tpu_custom_call.1} parent=51 // pred_check
          %p374 = pneg %p45
        $region54: #{tpu_custom_call.1} parent=51 // pred_check_branch
          %376 = sbr.rel (%p374) target = $region56
        $region55: #{tpu_custom_call.1} parent=51 // pred_region
          %377 = dma.done [#allocation6], 32
        $region56: #{tpu_custom_call.1} parent=51 // pred_fallthru
          _
        // Predicated region
        $region57: #{tpu_custom_call.1} parent=51 // pred_check
          %p378 = pneg %p66
        $region58: #{tpu_custom_call.1} parent=51 // pred_check_branch
          %380 = sbr.rel (%p378) target = $region60
        $region59: #{tpu_custom_call.1} parent=51 // pred_region
          %381 = dma.done [#allocation9], 448
        $region60: #{tpu_custom_call.1} parent=51 // pred_fallthru
          _
        // Predicated region
        $region61: #{tpu_custom_call.1} parent=51 // pred_check
          %p382 = pneg %p87
        $region62: #{tpu_custom_call.1} parent=51 // pred_check_branch
          %384 = sbr.rel (%p382) target = $region64
        $region63: #{tpu_custom_call.1} parent=51 // pred_region
          %385 = dma.done [#allocation9], 2048
        $region64: #{tpu_custom_call.1} parent=51 // pred_fallthru
          _
        // Predicated region
        $region65: #{tpu_custom_call.1} parent=51 // pred_check
          %p386 = pneg %p108
        $region66: #{tpu_custom_call.1} parent=51 // pred_check_branch
          %388 = sbr.rel (%p386) target = $region68
        $region67: #{tpu_custom_call.1} parent=51 // pred_region
          %389 = dma.done [#allocation12], 144
        $region68: #{tpu_custom_call.1} parent=51 // pred_fallthru
          _
        // Predicated region
        $region69: #{tpu_custom_call.1} parent=51 // pred_check
          %p390 = pneg %p129
        $region70: #{tpu_custom_call.1} parent=51 // pred_check_branch
          %392 = sbr.rel (%p390) target = $region72
        $region71: #{tpu_custom_call.1} parent=51 // pred_region
          %393 = dma.done [#allocation12], 8192
        $region72: #{tpu_custom_call.1} parent=51 // pred_fallthru
          _
        %s394 = sand.u32 %s29, 1
        %s395 = scalar_lea.sflag [#allocation15], %s394
        %s396 = sand.u32 %s142, 1
        %s397 = smul.addr %s396, 1024
        %s398 = scalar_lea.vmem [#allocation14], %s397
        // Predicated region
        $region73: #{tpu_custom_call.1} parent=51 // pred_check
          %p399 = pneg %p155
        $region74: #{tpu_custom_call.1} parent=51 // pred_check_branch
          %401 = sbr.rel (%p399) target = $region76
        $region75: #{tpu_custom_call.1} parent=51 // pred_region
          %402 = dma.done %s395, 16384
        $region76: #{tpu_custom_call.1} parent=51 // pred_fallthru
          _
        %s403 = sand.u32 %s29, 1
        %s404 = scalar_lea.sflag [#allocation15], %s403
        %s405 = sand.u32 %s168, 1
        %s406 = smul.addr %s405, 8
        %s407 = scalar_lea.vmem [#allocation16], %s406
        // Predicated region
        $region77: #{tpu_custom_call.1} parent=51 // pred_check
          %p408 = pneg %p181
        $region78: #{tpu_custom_call.1} parent=51 // pred_check_branch
          %410 = sbr.rel (%p408) target = $region80
        $region79: #{tpu_custom_call.1} parent=51 // pred_region
          %411 = dma.done %s404, 128
        $region80: #{tpu_custom_call.1} parent=51 // pred_fallthru
          _
        %s412 = sand.u32 %s194, 1
        %s413 = scalar_lea.sflag [#allocation18], %s412
        %s414 = sand.u32 %s194, 1
        %s415 = smul.addr %s414, 16
        %s416 = scalar_lea.vmem [#allocation17], %s415
        // Predicated region
        $region81: #{tpu_custom_call.1} parent=51 // pred_check
          %p417 = pneg %p207
        $region82: #{tpu_custom_call.1} parent=51 // pred_check_branch
          %419 = sbr.rel (%p417) target = $region84
        $region83: #{tpu_custom_call.1} parent=51 // pred_region
          %420 = dma.done %s413, 256
        $region84: #{tpu_custom_call.1} parent=51 // pred_fallthru
          _
        %p421 = pneg %p45
        %p422 = pneg %p42
        %p423 = pneg %p66
        %p424 = pneg %p63
        %p425 = pneg %p87
        %p426 = pneg %p84
        %p427 = pneg %p108
        %p428 = pneg %p105
        %p429 = pneg %p129
        %p430 = pneg %p126
        %s431 = sand.u32 %s29, 1
        %s432 = scalar_lea.sflag [#allocation15], %s431
        %s433 = sand.u32 %s142, 1
        %s434 = smul.addr %s433, 1024
        %s435 = scalar_lea.vmem [#allocation14], %s434
        %p436 = pneg %p155
        %p437 = pneg %p152
        %s438 = sand.u32 %s29, 1
        %s439 = scalar_lea.sflag [#allocation15], %s438
        %s440 = sand.u32 %s168, 1
        %s441 = smul.addr %s440, 8
        %s442 = scalar_lea.vmem [#allocation16], %s441
        %p443 = pneg %p181
        %p444 = pneg %p178
        %s445 = sand.u32 %s194, 1
        %s446 = scalar_lea.sflag [#allocation18], %s445
        %s447 = sand.u32 %s194, 1
        %s448 = smul.addr %s447, 16
        %s449 = scalar_lea.vmem [#allocation17], %s448
        %p450 = pneg %p207
        %p451 = pneg %p204
        %p452 = pneg %p228
        %p453 = pneg %p225
        %s454 = smul.u32 8, %s29
        %s455 = smul.u32 8, %s29
        %s456 = smul.u32 8, %s29
        %p458 = scmp.eq.s32.totalorder %s29, 0
        // Predicated region
        $region85: #{tpu_custom_call.1} parent=51 // pred_check
          %p459 = pneg %p458
        $region86: #{tpu_custom_call.1} parent=51 // pred_check_branch
          %461 = sbr.rel (%p459) target = $region88
        $region87: #{tpu_custom_call.1} parent=51 // pred_region
          %v462 = vld [vmem:[#allocation5] sm:$0x3]
          %v463 = vpack.c.bf16 %v462, %v462
          %v464 = vld [vmem:[#allocation11] sm:$0x1]
          %v465 = vld [vmem:[#allocation8] sm:$0xf]
          %v466 = vld [vmem:[#allocation8 + $0x4] sm:$0xf]
          %v467 = vld [vmem:[#allocation8 + $0x8] sm:$0xf]
          %v468 = vld [vmem:[#allocation8 + $0xc] sm:$0xf]
          %v469 = vld [vmem:[#allocation8 + $0x10] sm:$0xf]
          %v470 = vld [vmem:[#allocation8 + $0x14] sm:$0xf]
          %v471 = vld [vmem:[#allocation8 + $0x18] sm:$0xf]
          %v473 = vlaneseq
          %v474 = vshrl.u32 %v473, 7
          %v475 = vsub.s32 0, %v474
          %v476 = vrot.slane %v464, %v475
          %v485 = vunpack.c.l.b16 %v465
          %v486 = vunpack.c.l.b16 %v466
          %v487 = vunpack.c.l.b16 %v467
          %v488 = vunpack.c.l.b16 %v468
          %v489 = vunpack.c.l.b16 %v469
          %v490 = vunpack.c.l.b16 %v470
          %v491 = vunpack.c.l.b16 %v471
          %v492 = vpack.c.b16 %v486, %v485
          %v493 = vpack.c.b16 %v488, %v487
          %v494 = vpack.c.b16 %v490, %v489
          %v495 = vpack.c.b16 %v491, %v491
          %vm499 = vcmask 457728
          %v501 = vsel %vm499, %v463, 0
          %vm503 = vcmask 1043456
          %v505 = vsel %vm503, %v495, 0
          %507 = vmatprep.subr.bf16.mxu0 0
          %508 = vmatpush1.bf16.msra.mxu0 %v492
          %509 = vmatprep.subr.bf16.mxu0 0
          %510 = vmatpush1.bf16.msra.mxu0 %v493
          %511 = vmatprep.subr.bf16.mxu0 0
          %512 = vmatpush1.bf16.msra.mxu0 %v494
          %513 = vmatprep.subr.bf16.mxu0 0
          %514 = vmatpush1.bf16.msra.mxu0 %v505
          %515 = vmatprep.subr.bf16.mxu0 0
          %516 = vmatpush1.bf16.msra.mxu0 0
          %517 = vmatprep.subr.bf16.mxu0 0
          %518 = vmatpush1.bf16.msra.mxu0 0
          %519 = vmatprep.subr.bf16.mxu0 0
          %520 = vmatpush1.bf16.msra.mxu0 0
          %521 = vmatprep.subr.bf16.mxu0 0
          %522 = vmatpush1.bf16.msra.mxu0 0
          %523 = vmatprep.subr.bf16.mxu0 0
          %524 = vmatpush1.bf16.msra.mxu0 0
          %525 = vmatprep.subr.bf16.mxu0 0
          %526 = vmatpush1.bf16.msra.mxu0 0
          %527 = vmatprep.subr.bf16.mxu0 0
          %528 = vmatpush1.bf16.msra.mxu0 0
          %529 = vmatprep.subr.bf16.mxu0 0
          %530 = vmatpush1.bf16.msra.mxu0 0
          %531 = vmatprep.subr.bf16.mxu0 0
          %532 = vmatpush1.bf16.msra.mxu0 0
          %533 = vmatprep.subr.bf16.mxu0 0
          %534 = vmatpush1.bf16.msra.mxu0 0
          %535 = vmatprep.subr.bf16.mxu0 0
          %536 = vmatpush1.bf16.msra.mxu0 0
          %537 = vmatprep.subr.bf16.mxu0 0
          %538 = vmatpush1.bf16.msra.mxu0 0
          %539 = vmatprep.mubr.bf16.mxu0 0
          %540 = vmatmul.mubr.bf16.gmra.mrb[0].mxu0 %v501
          %v541 = vpop.f32.mrb[0].mxu0
          %v542 = vadd.f32 %v476, %v541
          %v543 = vpop.f32.mrb[0].mxu0
          %v544 = vpop.f32.mrb[0].mxu0
          %v545 = vpop.f32.mrb[0].mxu0
          %546 = vdwg.mxu0
          %v547 = vmax.f32 %v542, 0.0
          %v548 = vpack.c.bf16 %v547, %v547
          %v549 = vld [vmem:[#allocation11 + $0x1] sm:$0x3]
          %v550 = vld [vmem:[#allocation11 + $0x3] sm:$0x3]
          %v551 = vld [vmem:[#allocation10] sm:$0xff]
          %v552 = vld [vmem:[#allocation10 + $0x10] sm:$0xff]
          %v553 = vld [vmem:[#allocation10 + $0x20] sm:$0xff]
          %v554 = vld [vmem:[#allocation10 + $0x30] sm:$0xff]
          %v555 = vld [vmem:[#allocation10 + $0x40] sm:$0xff]
          %v556 = vld [vmem:[#allocation10 + $0x50] sm:$0xff]
          %v557 = vld [vmem:[#allocation10 + $0x60] sm:$0xff]
          %v558 = vld [vmem:[#allocation10 + $0x70] sm:$0xff]
          %v560 = vlaneseq
          %v561 = vshrl.u32 %v560, 7
          %v562 = vsub.s32 0, %v561
          %v563 = vrot.slane %v549, %v562
          %v564 = vlaneseq
          %v565 = vshrl.u32 %v564, 7
          %v566 = vsub.s32 1, %v565
          %v567 = vrot.slane %v549, %v566
          %v578 = vunpack.c.l.b16 %v551
          %v579 = vunpack.c.h.b16 %v551
          %v580 = vunpack.c.l.b16 %v552
          %v581 = vunpack.c.h.b16 %v552
          %v582 = vunpack.c.l.b16 %v553
          %v583 = vunpack.c.h.b16 %v553
          %v584 = vunpack.c.l.b16 %v554
          %v585 = vunpack.c.h.b16 %v554
          %v586 = vunpack.c.l.b16 %v555
          %v587 = vunpack.c.h.b16 %v555
          %v588 = vunpack.c.l.b16 %v556
          %v589 = vunpack.c.h.b16 %v556
          %v590 = vunpack.c.l.b16 %v557
          %v591 = vunpack.c.h.b16 %v557
          %v592 = vunpack.c.l.b16 %v558
          %v593 = vunpack.c.h.b16 %v558
          %v594 = vpack.c.b16 %v580, %v578
          %v595 = vpack.c.b16 %v581, %v579
          %v596 = vpack.c.b16 %v584, %v582
          %v597 = vpack.c.b16 %v585, %v583
          %v598 = vpack.c.b16 %v588, %v586
          %v599 = vpack.c.b16 %v589, %v587
          %v600 = vpack.c.b16 %v592, %v590
          %v601 = vpack.c.b16 %v593, %v591
          %vm610 = vcmask 523264
          %v612 = vsel %vm610, %v548, 0
          %614 = vmatprep.subr.bf16.mxu0 %v595
          %615 = vmatpush1.bf16.msra.mxu0 %v594
          %616 = vmatprep.subr.bf16.mxu0 %v597
          %617 = vmatpush1.bf16.msra.mxu0 %v596
          %618 = vmatprep.subr.bf16.mxu0 %v599
          %619 = vmatpush1.bf16.msra.mxu0 %v598
          %620 = vmatprep.subr.bf16.mxu0 %v601
          %621 = vmatpush1.bf16.msra.mxu0 %v600
          %622 = vmatprep.subr.bf16.mxu0 0
          %623 = vmatpush1.bf16.msra.mxu0 0
          %624 = vmatprep.subr.bf16.mxu0 0
          %625 = vmatpush1.bf16.msra.mxu0 0
          %626 = vmatprep.subr.bf16.mxu0 0
          %627 = vmatpush1.bf16.msra.mxu0 0
          %628 = vmatprep.subr.bf16.mxu0 0
          %629 = vmatpush1.bf16.msra.mxu0 0
          %630 = vmatprep.subr.bf16.mxu0 0
          %631 = vmatpush1.bf16.msra.mxu0 0
          %632 = vmatprep.subr.bf16.mxu0 0
          %633 = vmatpush1.bf16.msra.mxu0 0
          %634 = vmatprep.subr.bf16.mxu0 0
          %635 = vmatpush1.bf16.msra.mxu0 0
          %636 = vmatprep.subr.bf16.mxu0 0
          %637 = vmatpush1.bf16.msra.mxu0 0
          %638 = vmatprep.subr.bf16.mxu0 0
          %639 = vmatpush1.bf16.msra.mxu0 0
          %640 = vmatprep.subr.bf16.mxu0 0
          %641 = vmatpush1.bf16.msra.mxu0 0
          %642 = vmatprep.subr.bf16.mxu0 0
          %643 = vmatpush1.bf16.msra.mxu0 0
          %644 = vmatprep.subr.bf16.mxu0 0
          %645 = vmatpush1.bf16.msra.mxu0 0
          %646 = vmatprep.mubr.bf16.mxu0 0
          %647 = vmatmul.mubr.bf16.gmra.mrb[0].mxu0 %v612
          %v648 = vpop.f32.mrb[0].mxu0
          %v649 = vadd.f32 %v563, %v648
          %v650 = vpop.f32.mrb[0].mxu0
          %v651 = vadd.f32 %v567, %v650
          %v652 = vpop.f32.mrb[0].mxu0
          %v653 = vpop.f32.mrb[0].mxu0
          %654 = vdwg.mxu0
          %v655 = vld [vmem:[#allocation10 + $0x8] sm:$0xff]
          %v656 = vld [vmem:[#allocation10 + $0x18] sm:$0xff]
          %v657 = vld [vmem:[#allocation10 + $0x28] sm:$0xff]
          %v658 = vld [vmem:[#allocation10 + $0x38] sm:$0xff]
          %v659 = vld [vmem:[#allocation10 + $0x48] sm:$0xff]
          %v660 = vld [vmem:[#allocation10 + $0x58] sm:$0xff]
          %v661 = vld [vmem:[#allocation10 + $0x68] sm:$0xff]
          %v662 = vld [vmem:[#allocation10 + $0x78] sm:$0xff]
          %v664 = vlaneseq
          %v665 = vshrl.u32 %v664, 7
          %v666 = vsub.s32 0, %v665
          %v667 = vrot.slane %v550, %v666
          %v668 = vlaneseq
          %v669 = vshrl.u32 %v668, 7
          %v670 = vsub.s32 1, %v669
          %v671 = vrot.slane %v550, %v670
          %675 = vrot.lane.b32.xlu0 %v548, 64
          %v676 = vpop.permute.xlu0 %675
          %v685 = vunpack.c.l.b16 %v655
          %v686 = vunpack.c.h.b16 %v655
          %v687 = vunpack.c.l.b16 %v656
          %v688 = vunpack.c.h.b16 %v656
          %v689 = vunpack.c.l.b16 %v657
          %v690 = vunpack.c.h.b16 %v657
          %v691 = vunpack.c.l.b16 %v658
          %v692 = vunpack.c.h.b16 %v658
          %v693 = vunpack.c.l.b16 %v659
          %v694 = vunpack.c.h.b16 %v659
          %v695 = vunpack.c.l.b16 %v660
          %v696 = vunpack.c.h.b16 %v660
          %v697 = vunpack.c.l.b16 %v661
          %v698 = vunpack.c.h.b16 %v661
          %v699 = vunpack.c.l.b16 %v662
          %v700 = vunpack.c.h.b16 %v662
          %v701 = vpack.c.b16 %v687, %v685
          %v702 = vpack.c.b16 %v688, %v686
          %v703 = vpack.c.b16 %v691, %v689
          %v704 = vpack.c.b16 %v692, %v690
          %v705 = vpack.c.b16 %v695, %v693
          %v706 = vpack.c.b16 %v696, %v694
          %v707 = vpack.c.b16 %v699, %v697
          %v708 = vpack.c.b16 %v700, %v698
          %v718 = vsel %vm610, %v676, 0
          %720 = vmatprep.subr.bf16.mxu0 %v702
          %721 = vmatpush1.bf16.msra.mxu0 %v701
          %722 = vmatprep.subr.bf16.mxu0 %v704
          %723 = vmatpush1.bf16.msra.mxu0 %v703
          %724 = vmatprep.subr.bf16.mxu0 %v706
          %725 = vmatpush1.bf16.msra.mxu0 %v705
          %726 = vmatprep.subr.bf16.mxu0 %v708
          %727 = vmatpush1.bf16.msra.mxu0 %v707
          %728 = vmatprep.subr.bf16.mxu0 0
          %729 = vmatpush1.bf16.msra.mxu0 0
          %730 = vmatprep.subr.bf16.mxu0 0
          %731 = vmatpush1.bf16.msra.mxu0 0
          %732 = vmatprep.subr.bf16.mxu0 0
          %733 = vmatpush1.bf16.msra.mxu0 0
          %734 = vmatprep.subr.bf16.mxu0 0
          %735 = vmatpush1.bf16.msra.mxu0 0
          %736 = vmatprep.subr.bf16.mxu0 0
          %737 = vmatpush1.bf16.msra.mxu0 0
          %738 = vmatprep.subr.bf16.mxu0 0
          %739 = vmatpush1.bf16.msra.mxu0 0
          %740 = vmatprep.subr.bf16.mxu0 0
          %741 = vmatpush1.bf16.msra.mxu0 0
          %742 = vmatprep.subr.bf16.mxu0 0
          %743 = vmatpush1.bf16.msra.mxu0 0
          %744 = vmatprep.subr.bf16.mxu0 0
          %745 = vmatpush1.bf16.msra.mxu0 0
          %746 = vmatprep.subr.bf16.mxu0 0
          %747 = vmatpush1.bf16.msra.mxu0 0
          %748 = vmatprep.subr.bf16.mxu0 0
          %749 = vmatpush1.bf16.msra.mxu0 0
          %750 = vmatprep.subr.bf16.mxu0 0
          %751 = vmatpush1.bf16.msra.mxu0 0
          %752 = vmatprep.mubr.bf16.mxu0 0
          %753 = vmatmul.mubr.bf16.gmra.mrb[0].mxu0 %v718
          %v754 = vpop.f32.mrb[0].mxu0
          %v755 = vadd.f32 %v667, %v754
          %v756 = vpop.f32.mrb[0].mxu0
          %v757 = vadd.f32 %v671, %v756
          %v758 = vpop.f32.mrb[0].mxu0
          %v759 = vpop.f32.mrb[0].mxu0
          %760 = vdwg.mxu0
          %v761 = vmax.f32 %v649, 0.0
          %v762 = vmax.f32 %v651, 0.0
          %v763 = vpack.c.bf16 %v761, %v761
          %v764 = vpack.c.bf16 %v762, %v762
          %v767 = vcombine.low %v763, %v764
          %v769 = vunpack.c.l.s4 1966171168
          %v770 = vunpack.c.0.s8 %v769
          %v771 = vlaneseq
          %v772 = vshrl.u32 %v771, 7
          %v773 = vsub.s32 %v770, %v772
          %v774 = vrot.slane %v767, %v773
          %v776 = vunpack.c.l.s4 1966171168
          %v777 = vunpack.c.0.s8 %v776
          %v778 = vlaneseq
          %v779 = vshrl.u32 %v778, 7
          %v780 = vsub.s32 %v777, %v779
          %v781 = vrot.slane %v774, %v780
          %783 = vst [vmem:[#allocation3] sm:$0x3] %v781
          %v784 = vmax.f32 %v755, 0.0
          %v785 = vmax.f32 %v757, 0.0
          %v786 = vpack.c.bf16 %v784, %v784
          %v787 = vpack.c.bf16 %v785, %v785
          %v790 = vcombine.low %v786, %v787
          %v792 = vunpack.c.l.s4 1966171168
          %v793 = vunpack.c.0.s8 %v792
          %v794 = vlaneseq
          %v795 = vshrl.u32 %v794, 7
          %v796 = vsub.s32 %v793, %v795
          %v797 = vrot.slane %v790, %v796
          %v799 = vunpack.c.l.s4 1966171168
          %v800 = vunpack.c.0.s8 %v799
          %v801 = vlaneseq
          %v802 = vshrl.u32 %v801, 7
          %v803 = vsub.s32 %v800, %v802
          %v804 = vrot.slane %v797, %v803
          %806 = vst [vmem:[#allocation4] sm:$0x3] %v804
          %807 = vst [vmem:[#allocation2] sm:$0x3] 0.0
        $region88: #{tpu_custom_call.1} parent=51 // pred_fallthru
          _
        %v808 = vld [vmem:[#allocation3] sm:$0x3]
        %v809 = vld [vmem:[%s398] sm:$0xff]
        %v810 = vld [vmem:[%s398 + $0x8] sm:$0xff]
        %v811 = vld [vmem:[%s398 + $0x10] sm:$0xff]
        %v812 = vld [vmem:[%s398 + $0x18] sm:$0xff]
        %v813 = vld [vmem:[%s398 + $0x20] sm:$0xff]
        %v814 = vld [vmem:[%s398 + $0x28] sm:$0xff]
        %v815 = vld [vmem:[%s398 + $0x30] sm:$0xff]
        %v816 = vld [vmem:[%s398 + $0x38] sm:$0xff]
        %v817 = vld [vmem:[%s398 + $0x40] sm:$0xff]
        %v818 = vld [vmem:[%s398 + $0x48] sm:$0xff]
        %v819 = vld [vmem:[%s398 + $0x50] sm:$0xff]
        %v820 = vld [vmem:[%s398 + $0x58] sm:$0xff]
        %v821 = vld [vmem:[%s398 + $0x60] sm:$0xff]
        %v822 = vld [vmem:[%s398 + $0x68] sm:$0xff]
        %v823 = vld [vmem:[%s398 + $0x70] sm:$0xff]
        %v824 = vld [vmem:[%s398 + $0x78] sm:$0xff]
        %v825 = vld [vmem:[%s398 + $0x80] sm:$0xff]
        %v826 = vld [vmem:[%s398 + $0x88] sm:$0xff]
        %v827 = vld [vmem:[%s398 + $0x90] sm:$0xff]
        %v828 = vld [vmem:[%s398 + $0x98] sm:$0xff]
        %v829 = vld [vmem:[%s398 + $0xa0] sm:$0xff]
        %v830 = vld [vmem:[%s398 + $0xa8] sm:$0xff]
        %v831 = vld [vmem:[%s398 + $0xb0] sm:$0xff]
        %v832 = vld [vmem:[%s398 + $0xb8] sm:$0xff]
        %v833 = vld [vmem:[%s398 + $0xc0] sm:$0xff]
        %v834 = vld [vmem:[%s398 + $0xc8] sm:$0xff]
        %v835 = vld [vmem:[%s398 + $0xd0] sm:$0xff]
        %v836 = vld [vmem:[%s398 + $0xd8] sm:$0xff]
        %v837 = vld [vmem:[%s398 + $0xe0] sm:$0xff]
        %v838 = vld [vmem:[%s398 + $0xe8] sm:$0xff]
        %v839 = vld [vmem:[%s398 + $0xf0] sm:$0xff]
        %v840 = vld [vmem:[%s398 + $0xf8] sm:$0xff]
        %v841 = vld [vmem:[%s398 + $0x100] sm:$0xff]
        %v842 = vld [vmem:[%s398 + $0x108] sm:$0xff]
        %v843 = vld [vmem:[%s398 + $0x110] sm:$0xff]
        %v844 = vld [vmem:[%s398 + $0x118] sm:$0xff]
        %v845 = vld [vmem:[%s398 + $0x120] sm:$0xff]
        %v846 = vld [vmem:[%s398 + $0x128] sm:$0xff]
        %v847 = vld [vmem:[%s398 + $0x130] sm:$0xff]
        %v848 = vld [vmem:[%s398 + $0x138] sm:$0xff]
        %v849 = vld [vmem:[%s398 + $0x140] sm:$0xff]
        %v850 = vld [vmem:[%s398 + $0x148] sm:$0xff]
        %v851 = vld [vmem:[%s398 + $0x150] sm:$0xff]
        %v852 = vld [vmem:[%s398 + $0x158] sm:$0xff]
        %v853 = vld [vmem:[%s398 + $0x160] sm:$0xff]
        %v854 = vld [vmem:[%s398 + $0x168] sm:$0xff]
        %v855 = vld [vmem:[%s398 + $0x170] sm:$0xff]
        %v856 = vld [vmem:[%s398 + $0x178] sm:$0xff]
        %v857 = vld [vmem:[%s398 + $0x180] sm:$0xff]
        %v858 = vld [vmem:[%s398 + $0x188] sm:$0xff]
        %v859 = vld [vmem:[%s398 + $0x190] sm:$0xff]
        %v860 = vld [vmem:[%s398 + $0x198] sm:$0xff]
        %v861 = vld [vmem:[%s398 + $0x1a0] sm:$0xff]
        %v862 = vld [vmem:[%s398 + $0x1a8] sm:$0xff]
        %v863 = vld [vmem:[%s398 + $0x1b0] sm:$0xff]
        %v864 = vld [vmem:[%s398 + $0x1b8] sm:$0xff]
        %v865 = vld [vmem:[%s398 + $0x1c0] sm:$0xff]
        %v866 = vld [vmem:[%s398 + $0x1c8] sm:$0xff]
        %v867 = vld [vmem:[%s398 + $0x1d0] sm:$0xff]
        %v868 = vld [vmem:[%s398 + $0x1d8] sm:$0xff]
        %v869 = vld [vmem:[%s398 + $0x1e0] sm:$0xff]
        %v870 = vld [vmem:[%s398 + $0x1e8] sm:$0xff]
        %v871 = vld [vmem:[%s398 + $0x1f0] sm:$0xff]
        %v872 = vld [vmem:[%s398 + $0x1f8] sm:$0xff]
        %v873 = vld [vmem:[%s398 + $0x200] sm:$0xff]
        %v874 = vld [vmem:[%s398 + $0x208] sm:$0xff]
        %v875 = vld [vmem:[%s398 + $0x210] sm:$0xff]
        %v876 = vld [vmem:[%s398 + $0x218] sm:$0xff]
        %v877 = vld [vmem:[%s398 + $0x220] sm:$0xff]
        %v878 = vld [vmem:[%s398 + $0x228] sm:$0xff]
        %v879 = vld [vmem:[%s398 + $0x230] sm:$0xff]
        %v880 = vld [vmem:[%s398 + $0x238] sm:$0xff]
        %v881 = vld [vmem:[%s398 + $0x240] sm:$0xff]
        %v882 = vld [vmem:[%s398 + $0x248] sm:$0xff]
        %v883 = vld [vmem:[%s398 + $0x250] sm:$0xff]
        %v884 = vld [vmem:[%s398 + $0x258] sm:$0xff]
        %v885 = vld [vmem:[%s398 + $0x260] sm:$0xff]
        %v886 = vld [vmem:[%s398 + $0x268] sm:$0xff]
        %v887 = vld [vmem:[%s398 + $0x270] sm:$0xff]
        %v888 = vld [vmem:[%s398 + $0x278] sm:$0xff]
        %v889 = vld [vmem:[%s398 + $0x280] sm:$0xff]
        %v890 = vld [vmem:[%s398 + $0x288] sm:$0xff]
        %v891 = vld [vmem:[%s398 + $0x290] sm:$0xff]
        %v892 = vld [vmem:[%s398 + $0x298] sm:$0xff]
        %v893 = vld [vmem:[%s398 + $0x2a0] sm:$0xff]
        %v894 = vld [vmem:[%s398 + $0x2a8] sm:$0xff]
        %v895 = vld [vmem:[%s398 + $0x2b0] sm:$0xff]
        %v896 = vld [vmem:[%s398 + $0x2b8] sm:$0xff]
        %v897 = vld [vmem:[%s398 + $0x2c0] sm:$0xff]
        %v898 = vld [vmem:[%s398 + $0x2c8] sm:$0xff]
        %v899 = vld [vmem:[%s398 + $0x2d0] sm:$0xff]
        %v900 = vld [vmem:[%s398 + $0x2d8] sm:$0xff]
        %v901 = vld [vmem:[%s398 + $0x2e0] sm:$0xff]
        %v902 = vld [vmem:[%s398 + $0x2e8] sm:$0xff]
        %v903 = vld [vmem:[%s398 + $0x2f0] sm:$0xff]
        %v904 = vld [vmem:[%s398 + $0x2f8] sm:$0xff]
        %v905 = vld [vmem:[%s398 + $0x300] sm:$0xff]
        %v906 = vld [vmem:[%s398 + $0x308] sm:$0xff]
        %v907 = vld [vmem:[%s398 + $0x310] sm:$0xff]
        %v908 = vld [vmem:[%s398 + $0x318] sm:$0xff]
        %v909 = vld [vmem:[%s398 + $0x320] sm:$0xff]
        %v910 = vld [vmem:[%s398 + $0x328] sm:$0xff]
        %v911 = vld [vmem:[%s398 + $0x330] sm:$0xff]
        %v912 = vld [vmem:[%s398 + $0x338] sm:$0xff]
        %v913 = vld [vmem:[%s398 + $0x340] sm:$0xff]
        %v914 = vld [vmem:[%s398 + $0x348] sm:$0xff]
        %v915 = vld [vmem:[%s398 + $0x350] sm:$0xff]
        %v916 = vld [vmem:[%s398 + $0x358] sm:$0xff]
        %v917 = vld [vmem:[%s398 + $0x360] sm:$0xff]
        %v918 = vld [vmem:[%s398 + $0x368] sm:$0xff]
        %v919 = vld [vmem:[%s398 + $0x370] sm:$0xff]
        %v920 = vld [vmem:[%s398 + $0x378] sm:$0xff]
        %v921 = vld [vmem:[%s398 + $0x380] sm:$0xff]
        %v922 = vld [vmem:[%s398 + $0x388] sm:$0xff]
        %v923 = vld [vmem:[%s398 + $0x390] sm:$0xff]
        %v924 = vld [vmem:[%s398 + $0x398] sm:$0xff]
        %v925 = vld [vmem:[%s398 + $0x3a0] sm:$0xff]
        %v926 = vld [vmem:[%s398 + $0x3a8] sm:$0xff]
        %v927 = vld [vmem:[%s398 + $0x3b0] sm:$0xff]
        %v928 = vld [vmem:[%s398 + $0x3b8] sm:$0xff]
        %v929 = vld [vmem:[%s398 + $0x3c0] sm:$0xff]
        %v930 = vld [vmem:[%s398 + $0x3c8] sm:$0xff]
        %v931 = vld [vmem:[%s398 + $0x3d0] sm:$0xff]
        %v932 = vld [vmem:[%s398 + $0x3d8] sm:$0xff]
        %v933 = vld [vmem:[%s398 + $0x3e0] sm:$0xff]
        %v934 = vld [vmem:[%s398 + $0x3e8] sm:$0xff]
        %v935 = vld [vmem:[%s398 + $0x3f0] sm:$0xff]
        %v936 = vld [vmem:[%s398 + $0x3f8] sm:$0xff]
        %v937 = vld [vmem:[%s407] sm:$0xff]
        %v939 = vlaneseq
        %v940 = vshrl.u32 %v939, 7
        %v941 = vsub.s32 0, %v940
        %v942 = vrot.slane %v937, %v941
        %v943 = vlaneseq
        %v944 = vshrl.u32 %v943, 7
        %v945 = vsub.s32 1, %v944
        %v946 = vrot.slane %v937, %v945
        %v947 = vlaneseq
        %v948 = vshrl.u32 %v947, 7
        %v949 = vsub.s32 2, %v948
        %v950 = vrot.slane %v937, %v949
        %v951 = vlaneseq
        %v952 = vshrl.u32 %v951, 7
        %v953 = vsub.s32 3, %v952
        %v954 = vrot.slane %v937, %v953
        %v955 = vlaneseq
        %v956 = vshrl.u32 %v955, 7
        %v957 = vsub.s32 4, %v956
        %v958 = vrot.slane %v937, %v957
        %v959 = vlaneseq
        %v960 = vshrl.u32 %v959, 7
        %v961 = vsub.s32 5, %v960
        %v962 = vrot.slane %v937, %v961
        %v963 = vlaneseq
        %v964 = vshrl.u32 %v963, 7
        %v965 = vsub.s32 6, %v964
        %v966 = vrot.slane %v937, %v965
        %v967 = vlaneseq
        %v968 = vshrl.u32 %v967, 7
        %v969 = vsub.s32 7, %v968
        %v970 = vrot.slane %v937, %v969
        %v981 = vunpack.c.l.s4 1966171168
        %v982 = vunpack.c.0.s8 %v981
        %v983 = vlaneseq
        %v984 = vshrl.u32 %v983, 7
        %v985 = vsub.s32 %v982, %v984
        %v986 = vrot.slane %v808, %v985
        %v987 = vcombine.high %v986, %v986
        %v989 = vunpack.c.l.s4 1966171168
        %v990 = vunpack.c.0.s8 %v989
        %v991 = vlaneseq
        %v992 = vshrl.u32 %v991, 7
        %v993 = vsub.s32 %v990, %v992
        %v994 = vrot.slane %v986, %v993
        %v996 = vunpack.c.l.s4 1966171168
        %v997 = vunpack.c.0.s8 %v996
        %v998 = vlaneseq
        %v999 = vshrl.u32 %v998, 7
        %v1000 = vsub.s32 %v997, %v999
        %v1001 = vrot.slane %v987, %v1000
        %v1132 = vunpack.c.l.b16 %v809
        %v1133 = vunpack.c.h.b16 %v809
        %v1134 = vunpack.c.l.b16 %v810
        %v1135 = vunpack.c.h.b16 %v810
        %v1136 = vunpack.c.l.b16 %v811
        %v1137 = vunpack.c.h.b16 %v811
        %v1138 = vunpack.c.l.b16 %v812
        %v1139 = vunpack.c.h.b16 %v812
        %v1140 = vunpack.c.l.b16 %v813
        %v1141 = vunpack.c.h.b16 %v813
        %v1142 = vunpack.c.l.b16 %v814
        %v1143 = vunpack.c.h.b16 %v814
        %v1144 = vunpack.c.l.b16 %v815
        %v1145 = vunpack.c.h.b16 %v815
        %v1146 = vunpack.c.l.b16 %v816
        %v1147 = vunpack.c.h.b16 %v816
        %v1148 = vunpack.c.l.b16 %v817
        %v1149 = vunpack.c.h.b16 %v817
        %v1150 = vunpack.c.l.b16 %v818
        %v1151 = vunpack.c.h.b16 %v818
        %v1152 = vunpack.c.l.b16 %v819
        %v1153 = vunpack.c.h.b16 %v819
        %v1154 = vunpack.c.l.b16 %v820
        %v1155 = vunpack.c.h.b16 %v820
        %v1156 = vunpack.c.l.b16 %v821
        %v1157 = vunpack.c.h.b16 %v821
        %v1158 = vunpack.c.l.b16 %v822
        %v1159 = vunpack.c.h.b16 %v822
        %v1160 = vunpack.c.l.b16 %v823
        %v1161 = vunpack.c.h.b16 %v823
        %v1162 = vunpack.c.l.b16 %v824
        %v1163 = vunpack.c.h.b16 %v824
        %v1164 = vunpack.c.l.b16 %v825
        %v1165 = vunpack.c.h.b16 %v825
        %v1166 = vunpack.c.l.b16 %v826
        %v1167 = vunpack.c.h.b16 %v826
        %v1168 = vunpack.c.l.b16 %v827
        %v1169 = vunpack.c.h.b16 %v827
        %v1170 = vunpack.c.l.b16 %v828
        %v1171 = vunpack.c.h.b16 %v828
        %v1172 = vunpack.c.l.b16 %v829
        %v1173 = vunpack.c.h.b16 %v829
        %v1174 = vunpack.c.l.b16 %v830
        %v1175 = vunpack.c.h.b16 %v830
        %v1176 = vunpack.c.l.b16 %v831
        %v1177 = vunpack.c.h.b16 %v831
        %v1178 = vunpack.c.l.b16 %v832
        %v1179 = vunpack.c.h.b16 %v832
        %v1180 = vunpack.c.l.b16 %v833
        %v1181 = vunpack.c.h.b16 %v833
        %v1182 = vunpack.c.l.b16 %v834
        %v1183 = vunpack.c.h.b16 %v834
        %v1184 = vunpack.c.l.b16 %v835
        %v1185 = vunpack.c.h.b16 %v835
        %v1186 = vunpack.c.l.b16 %v836
        %v1187 = vunpack.c.h.b16 %v836
        %v1188 = vunpack.c.l.b16 %v837
        %v1189 = vunpack.c.h.b16 %v837
        %v1190 = vunpack.c.l.b16 %v838
        %v1191 = vunpack.c.h.b16 %v838
        %v1192 = vunpack.c.l.b16 %v839
        %v1193 = vunpack.c.h.b16 %v839
        %v1194 = vunpack.c.l.b16 %v840
        %v1195 = vunpack.c.h.b16 %v840
        %v1196 = vunpack.c.l.b16 %v841
        %v1197 = vunpack.c.h.b16 %v841
        %v1198 = vunpack.c.l.b16 %v842
        %v1199 = vunpack.c.h.b16 %v842
        %v1200 = vunpack.c.l.b16 %v843
        %v1201 = vunpack.c.h.b16 %v843
        %v1202 = vunpack.c.l.b16 %v844
        %v1203 = vunpack.c.h.b16 %v844
        %v1204 = vunpack.c.l.b16 %v845
        %v1205 = vunpack.c.h.b16 %v845
        %v1206 = vunpack.c.l.b16 %v846
        %v1207 = vunpack.c.h.b16 %v846
        %v1208 = vunpack.c.l.b16 %v847
        %v1209 = vunpack.c.h.b16 %v847
        %v1210 = vunpack.c.l.b16 %v848
        %v1211 = vunpack.c.h.b16 %v848
        %v1212 = vunpack.c.l.b16 %v849
        %v1213 = vunpack.c.h.b16 %v849
        %v1214 = vunpack.c.l.b16 %v850
        %v1215 = vunpack.c.h.b16 %v850
        %v1216 = vunpack.c.l.b16 %v851
        %v1217 = vunpack.c.h.b16 %v851
        %v1218 = vunpack.c.l.b16 %v852
        %v1219 = vunpack.c.h.b16 %v852
        %v1220 = vunpack.c.l.b16 %v853
        %v1221 = vunpack.c.h.b16 %v853
        %v1222 = vunpack.c.l.b16 %v854
        %v1223 = vunpack.c.h.b16 %v854
        %v1224 = vunpack.c.l.b16 %v855
        %v1225 = vunpack.c.h.b16 %v855
        %v1226 = vunpack.c.l.b16 %v856
        %v1227 = vunpack.c.h.b16 %v856
        %v1228 = vunpack.c.l.b16 %v857
        %v1229 = vunpack.c.h.b16 %v857
        %v1230 = vunpack.c.l.b16 %v858
        %v1231 = vunpack.c.h.b16 %v858
        %v1232 = vunpack.c.l.b16 %v859
        %v1233 = vunpack.c.h.b16 %v859
        %v1234 = vunpack.c.l.b16 %v860
        %v1235 = vunpack.c.h.b16 %v860
        %v1236 = vunpack.c.l.b16 %v861
        %v1237 = vunpack.c.h.b16 %v861
        %v1238 = vunpack.c.l.b16 %v862
        %v1239 = vunpack.c.h.b16 %v862
        %v1240 = vunpack.c.l.b16 %v863
        %v1241 = vunpack.c.h.b16 %v863
        %v1242 = vunpack.c.l.b16 %v864
        %v1243 = vunpack.c.h.b16 %v864
        %v1244 = vunpack.c.l.b16 %v865
        %v1245 = vunpack.c.h.b16 %v865
        %v1246 = vunpack.c.l.b16 %v866
        %v1247 = vunpack.c.h.b16 %v866
        %v1248 = vunpack.c.l.b16 %v867
        %v1249 = vunpack.c.h.b16 %v867
        %v1250 = vunpack.c.l.b16 %v868
        %v1251 = vunpack.c.h.b16 %v868
        %v1252 = vunpack.c.l.b16 %v869
        %v1253 = vunpack.c.h.b16 %v869
        %v1254 = vunpack.c.l.b16 %v870
        %v1255 = vunpack.c.h.b16 %v870
        %v1256 = vunpack.c.l.b16 %v871
        %v1257 = vunpack.c.h.b16 %v871
        %v1258 = vunpack.c.l.b16 %v872
        %v1259 = vunpack.c.h.b16 %v872
        %v1260 = vunpack.c.l.b16 %v873
        %v1261 = vunpack.c.h.b16 %v873
        %v1262 = vunpack.c.l.b16 %v874
        %v1263 = vunpack.c.h.b16 %v874
        %v1264 = vunpack.c.l.b16 %v875
        %v1265 = vunpack.c.h.b16 %v875
        %v1266 = vunpack.c.l.b16 %v876
        %v1267 = vunpack.c.h.b16 %v876
        %v1268 = vunpack.c.l.b16 %v877
        %v1269 = vunpack.c.h.b16 %v877
        %v1270 = vunpack.c.l.b16 %v878
        %v1271 = vunpack.c.h.b16 %v878
        %v1272 = vunpack.c.l.b16 %v879
        %v1273 = vunpack.c.h.b16 %v879
        %v1274 = vunpack.c.l.b16 %v880
        %v1275 = vunpack.c.h.b16 %v880
        %v1276 = vunpack.c.l.b16 %v881
        %v1277 = vunpack.c.h.b16 %v881
        %v1278 = vunpack.c.l.b16 %v882
        %v1279 = vunpack.c.h.b16 %v882
        %v1280 = vunpack.c.l.b16 %v883
        %v1281 = vunpack.c.h.b16 %v883
        %v1282 = vunpack.c.l.b16 %v884
        %v1283 = vunpack.c.h.b16 %v884
        %v1284 = vunpack.c.l.b16 %v885
        %v1285 = vunpack.c.h.b16 %v885
        %v1286 = vunpack.c.l.b16 %v886
        %v1287 = vunpack.c.h.b16 %v886
        %v1288 = vunpack.c.l.b16 %v887
        %v1289 = vunpack.c.h.b16 %v887
        %v1290 = vunpack.c.l.b16 %v888
        %v1291 = vunpack.c.h.b16 %v888
        %v1292 = vunpack.c.l.b16 %v889
        %v1293 = vunpack.c.h.b16 %v889
        %v1294 = vunpack.c.l.b16 %v890
        %v1295 = vunpack.c.h.b16 %v890
        %v1296 = vunpack.c.l.b16 %v891
        %v1297 = vunpack.c.h.b16 %v891
        %v1298 = vunpack.c.l.b16 %v892
        %v1299 = vunpack.c.h.b16 %v892
        %v1300 = vunpack.c.l.b16 %v893
        %v1301 = vunpack.c.h.b16 %v893
        %v1302 = vunpack.c.l.b16 %v894
        %v1303 = vunpack.c.h.b16 %v894
        %v1304 = vunpack.c.l.b16 %v895
        %v1305 = vunpack.c.h.b16 %v895
        %v1306 = vunpack.c.l.b16 %v896
        %v1307 = vunpack.c.h.b16 %v896
        %v1308 = vunpack.c.l.b16 %v897
        %v1309 = vunpack.c.h.b16 %v897
        %v1310 = vunpack.c.l.b16 %v898
        %v1311 = vunpack.c.h.b16 %v898
        %v1312 = vunpack.c.l.b16 %v899
        %v1313 = vunpack.c.h.b16 %v899
        %v1314 = vunpack.c.l.b16 %v900
        %v1315 = vunpack.c.h.b16 %v900
        %v1316 = vunpack.c.l.b16 %v901
        %v1317 = vunpack.c.h.b16 %v901
        %v1318 = vunpack.c.l.b16 %v902
        %v1319 = vunpack.c.h.b16 %v902
        %v1320 = vunpack.c.l.b16 %v903
        %v1321 = vunpack.c.h.b16 %v903
        %v1322 = vunpack.c.l.b16 %v904
        %v1323 = vunpack.c.h.b16 %v904
        %v1324 = vunpack.c.l.b16 %v905
        %v1325 = vunpack.c.h.b16 %v905
        %v1326 = vunpack.c.l.b16 %v906
        %v1327 = vunpack.c.h.b16 %v906
        %v1328 = vunpack.c.l.b16 %v907
        %v1329 = vunpack.c.h.b16 %v907
        %v1330 = vunpack.c.l.b16 %v908
        %v1331 = vunpack.c.h.b16 %v908
        %v1332 = vunpack.c.l.b16 %v909
        %v1333 = vunpack.c.h.b16 %v909
        %v1334 = vunpack.c.l.b16 %v910
        %v1335 = vunpack.c.h.b16 %v910
        %v1336 = vunpack.c.l.b16 %v911
        %v1337 = vunpack.c.h.b16 %v911
        %v1338 = vunpack.c.l.b16 %v912
        %v1339 = vunpack.c.h.b16 %v912
        %v1340 = vunpack.c.l.b16 %v913
        %v1341 = vunpack.c.h.b16 %v913
        %v1342 = vunpack.c.l.b16 %v914
        %v1343 = vunpack.c.h.b16 %v914
        %v1344 = vunpack.c.l.b16 %v915
        %v1345 = vunpack.c.h.b16 %v915
        %v1346 = vunpack.c.l.b16 %v916
        %v1347 = vunpack.c.h.b16 %v916
        %v1348 = vunpack.c.l.b16 %v917
        %v1349 = vunpack.c.h.b16 %v917
        %v1350 = vunpack.c.l.b16 %v918
        %v1351 = vunpack.c.h.b16 %v918
        %v1352 = vunpack.c.l.b16 %v919
        %v1353 = vunpack.c.h.b16 %v919
        %v1354 = vunpack.c.l.b16 %v920
        %v1355 = vunpack.c.h.b16 %v920
        %v1356 = vunpack.c.l.b16 %v921
        %v1357 = vunpack.c.h.b16 %v921
        %v1358 = vunpack.c.l.b16 %v922
        %v1359 = vunpack.c.h.b16 %v922
        %v1360 = vunpack.c.l.b16 %v923
        %v1361 = vunpack.c.h.b16 %v923
        %v1362 = vunpack.c.l.b16 %v924
        %v1363 = vunpack.c.h.b16 %v924
        %v1364 = vunpack.c.l.b16 %v925
        %v1365 = vunpack.c.h.b16 %v925
        %v1366 = vunpack.c.l.b16 %v926
        %v1367 = vunpack.c.h.b16 %v926
        %v1368 = vunpack.c.l.b16 %v927
        %v1369 = vunpack.c.h.b16 %v927
        %v1370 = vunpack.c.l.b16 %v928
        %v1371 = vunpack.c.h.b16 %v928
        %v1372 = vunpack.c.l.b16 %v929
        %v1373 = vunpack.c.h.b16 %v929
        %v1374 = vunpack.c.l.b16 %v930
        %v1375 = vunpack.c.h.b16 %v930
        %v1376 = vunpack.c.l.b16 %v931
        %v1377 = vunpack.c.h.b16 %v931
        %v1378 = vunpack.c.l.b16 %v932
        %v1379 = vunpack.c.h.b16 %v932
        %v1380 = vunpack.c.l.b16 %v933
        %v1381 = vunpack.c.h.b16 %v933
        %v1382 = vunpack.c.l.b16 %v934
        %v1383 = vunpack.c.h.b16 %v934
        %v1384 = vunpack.c.l.b16 %v935
        %v1385 = vunpack.c.h.b16 %v935
        %v1386 = vunpack.c.l.b16 %v936
        %v1387 = vunpack.c.h.b16 %v936
        %v1388 = vpack.c.b16 %v1140, %v1132
        %v1389 = vpack.c.b16 %v1141, %v1133
        %v1390 = vpack.c.b16 %v1142, %v1134
        %v1391 = vpack.c.b16 %v1143, %v1135
        %v1392 = vpack.c.b16 %v1144, %v1136
        %v1393 = vpack.c.b16 %v1145, %v1137
        %v1394 = vpack.c.b16 %v1146, %v1138
        %v1395 = vpack.c.b16 %v1147, %v1139
        %v1396 = vpack.c.b16 %v1156, %v1148
        %v1397 = vpack.c.b16 %v1157, %v1149
        %v1398 = vpack.c.b16 %v1158, %v1150
        %v1399 = vpack.c.b16 %v1159, %v1151
        %v1400 = vpack.c.b16 %v1160, %v1152
        %v1401 = vpack.c.b16 %v1161, %v1153
        %v1402 = vpack.c.b16 %v1162, %v1154
        %v1403 = vpack.c.b16 %v1163, %v1155
        %v1404 = vpack.c.b16 %v1172, %v1164
        %v1405 = vpack.c.b16 %v1173, %v1165
        %v1406 = vpack.c.b16 %v1174, %v1166
        %v1407 = vpack.c.b16 %v1175, %v1167
        %v1408 = vpack.c.b16 %v1176, %v1168
        %v1409 = vpack.c.b16 %v1177, %v1169
        %v1410 = vpack.c.b16 %v1178, %v1170
        %v1411 = vpack.c.b16 %v1179, %v1171
        %v1412 = vpack.c.b16 %v1188, %v1180
        %v1413 = vpack.c.b16 %v1189, %v1181
        %v1414 = vpack.c.b16 %v1190, %v1182
        %v1415 = vpack.c.b16 %v1191, %v1183
        %v1416 = vpack.c.b16 %v1192, %v1184
        %v1417 = vpack.c.b16 %v1193, %v1185
        %v1418 = vpack.c.b16 %v1194, %v1186
        %v1419 = vpack.c.b16 %v1195, %v1187
        %v1420 = vpack.c.b16 %v1204, %v1196
        %v1421 = vpack.c.b16 %v1205, %v1197
        %v1422 = vpack.c.b16 %v1206, %v1198
        %v1423 = vpack.c.b16 %v1207, %v1199
        %v1424 = vpack.c.b16 %v1208, %v1200
        %v1425 = vpack.c.b16 %v1209, %v1201
        %v1426 = vpack.c.b16 %v1210, %v1202
        %v1427 = vpack.c.b16 %v1211, %v1203
        %v1428 = vpack.c.b16 %v1220, %v1212
        %v1429 = vpack.c.b16 %v1221, %v1213
        %v1430 = vpack.c.b16 %v1222, %v1214
        %v1431 = vpack.c.b16 %v1223, %v1215
        %v1432 = vpack.c.b16 %v1224, %v1216
        %v1433 = vpack.c.b16 %v1225, %v1217
        %v1434 = vpack.c.b16 %v1226, %v1218
        %v1435 = vpack.c.b16 %v1227, %v1219
        %v1436 = vpack.c.b16 %v1236, %v1228
        %v1437 = vpack.c.b16 %v1237, %v1229
        %v1438 = vpack.c.b16 %v1238, %v1230
        %v1439 = vpack.c.b16 %v1239, %v1231
        %v1440 = vpack.c.b16 %v1240, %v1232
        %v1441 = vpack.c.b16 %v1241, %v1233
        %v1442 = vpack.c.b16 %v1242, %v1234
        %v1443 = vpack.c.b16 %v1243, %v1235
        %v1444 = vpack.c.b16 %v1252, %v1244
        %v1445 = vpack.c.b16 %v1253, %v1245
        %v1446 = vpack.c.b16 %v1254, %v1246
        %v1447 = vpack.c.b16 %v1255, %v1247
        %v1448 = vpack.c.b16 %v1256, %v1248
        %v1449 = vpack.c.b16 %v1257, %v1249
        %v1450 = vpack.c.b16 %v1258, %v1250
        %v1451 = vpack.c.b16 %v1259, %v1251
        %v1452 = vpack.c.b16 %v1268, %v1260
        %v1453 = vpack.c.b16 %v1269, %v1261
        %v1454 = vpack.c.b16 %v1270, %v1262
        %v1455 = vpack.c.b16 %v1271, %v1263
        %v1456 = vpack.c.b16 %v1272, %v1264
        %v1457 = vpack.c.b16 %v1273, %v1265
        %v1458 = vpack.c.b16 %v1274, %v1266
        %v1459 = vpack.c.b16 %v1275, %v1267
        %v1460 = vpack.c.b16 %v1284, %v1276
        %v1461 = vpack.c.b16 %v1285, %v1277
        %v1462 = vpack.c.b16 %v1286, %v1278
        %v1463 = vpack.c.b16 %v1287, %v1279
        %v1464 = vpack.c.b16 %v1288, %v1280
        %v1465 = vpack.c.b16 %v1289, %v1281
        %v1466 = vpack.c.b16 %v1290, %v1282
        %v1467 = vpack.c.b16 %v1291, %v1283
        %v1468 = vpack.c.b16 %v1300, %v1292
        %v1469 = vpack.c.b16 %v1301, %v1293
        %v1470 = vpack.c.b16 %v1302, %v1294
        %v1471 = vpack.c.b16 %v1303, %v1295
        %v1472 = vpack.c.b16 %v1304, %v1296
        %v1473 = vpack.c.b16 %v1305, %v1297
        %v1474 = vpack.c.b16 %v1306, %v1298
        %v1475 = vpack.c.b16 %v1307, %v1299
        %v1476 = vpack.c.b16 %v1316, %v1308
        %v1477 = vpack.c.b16 %v1317, %v1309
        %v1478 = vpack.c.b16 %v1318, %v1310
        %v1479 = vpack.c.b16 %v1319, %v1311
        %v1480 = vpack.c.b16 %v1320, %v1312
        %v1481 = vpack.c.b16 %v1321, %v1313
        %v1482 = vpack.c.b16 %v1322, %v1314
        %v1483 = vpack.c.b16 %v1323, %v1315
        %v1484 = vpack.c.b16 %v1332, %v1324
        %v1485 = vpack.c.b16 %v1333, %v1325
        %v1486 = vpack.c.b16 %v1334, %v1326
        %v1487 = vpack.c.b16 %v1335, %v1327
        %v1488 = vpack.c.b16 %v1336, %v1328
        %v1489 = vpack.c.b16 %v1337, %v1329
        %v1490 = vpack.c.b16 %v1338, %v1330
        %v1491 = vpack.c.b16 %v1339, %v1331
        %v1492 = vpack.c.b16 %v1348, %v1340
        %v1493 = vpack.c.b16 %v1349, %v1341
        %v1494 = vpack.c.b16 %v1350, %v1342
        %v1495 = vpack.c.b16 %v1351, %v1343
        %v1496 = vpack.c.b16 %v1352, %v1344
        %v1497 = vpack.c.b16 %v1353, %v1345
        %v1498 = vpack.c.b16 %v1354, %v1346
        %v1499 = vpack.c.b16 %v1355, %v1347
        %v1500 = vpack.c.b16 %v1364, %v1356
        %v1501 = vpack.c.b16 %v1365, %v1357
        %v1502 = vpack.c.b16 %v1366, %v1358
        %v1503 = vpack.c.b16 %v1367, %v1359
        %v1504 = vpack.c.b16 %v1368, %v1360
        %v1505 = vpack.c.b16 %v1369, %v1361
        %v1506 = vpack.c.b16 %v1370, %v1362
        %v1507 = vpack.c.b16 %v1371, %v1363
        %v1508 = vpack.c.b16 %v1380, %v1372
        %v1509 = vpack.c.b16 %v1381, %v1373
        %v1510 = vpack.c.b16 %v1382, %v1374
        %v1511 = vpack.c.b16 %v1383, %v1375
        %v1512 = vpack.c.b16 %v1384, %v1376
        %v1513 = vpack.c.b16 %v1385, %v1377
        %v1514 = vpack.c.b16 %v1386, %v1378
        %v1515 = vpack.c.b16 %v1387, %v1379
        %1644 = vmatprep.subr.bf16.mxu0 %v1389
        %1645 = vmatpush1.bf16.msra.mxu0 %v1388
        %1646 = vmatprep.subr.bf16.mxu0 %v1397
        %1647 = vmatpush1.bf16.msra.mxu0 %v1396
        %1648 = vmatprep.subr.bf16.mxu0 %v1405
        %1649 = vmatpush1.bf16.msra.mxu0 %v1404
        %1650 = vmatprep.subr.bf16.mxu0 %v1413
        %1651 = vmatpush1.bf16.msra.mxu0 %v1412
        %1652 = vmatprep.subr.bf16.mxu0 %v1421
        %1653 = vmatpush1.bf16.msra.mxu0 %v1420
        %1654 = vmatprep.subr.bf16.mxu0 %v1429
        %1655 = vmatpush1.bf16.msra.mxu0 %v1428
        %1656 = vmatprep.subr.bf16.mxu0 %v1437
        %1657 = vmatpush1.bf16.msra.mxu0 %v1436
        %1658 = vmatprep.subr.bf16.mxu0 %v1445
        %1659 = vmatpush1.bf16.msra.mxu0 %v1444
        %1660 = vmatprep.subr.bf16.mxu0 %v1453
        %1661 = vmatpush1.bf16.msra.mxu0 %v1452
        %1662 = vmatprep.subr.bf16.mxu0 %v1461
        %1663 = vmatpush1.bf16.msra.mxu0 %v1460
        %1664 = vmatprep.subr.bf16.mxu0 %v1469
        %1665 = vmatpush1.bf16.msra.mxu0 %v1468
        %1666 = vmatprep.subr.bf16.mxu0 %v1477
        %1667 = vmatpush1.bf16.msra.mxu0 %v1476
        %1668 = vmatprep.subr.bf16.mxu0 %v1485
        %1669 = vmatpush1.bf16.msra.mxu0 %v1484
        %1670 = vmatprep.subr.bf16.mxu0 %v1493
        %1671 = vmatpush1.bf16.msra.mxu0 %v1492
        %1672 = vmatprep.subr.bf16.mxu0 %v1501
        %1673 = vmatpush1.bf16.msra.mxu0 %v1500
        %1674 = vmatprep.subr.bf16.mxu0 %v1509
        %1675 = vmatpush1.bf16.msra.mxu0 %v1508
        %1676 = vmatprep.mubr.bf16.mxu0 %v1001
        %1677 = vmatmul.mubr.bf16.gmra.mrb[0].mxu0 %v994
        %v1678 = vpop.f32.mrb[0].mxu0
        %v1679 = vadd.f32 %v942, %v1678
        %v1680 = vpop.f32.mrb[0].mxu0
        %v1681 = vadd.f32 %v946, %v1680
        %v1682 = vpop.f32.mrb[0].mxu0
        %v1683 = vpop.f32.mrb[0].mxu0
        %1684 = vdwg.mxu0
        %1685 = vmatprep.subr.bf16.mxu0 %v1391
        %1686 = vmatpush1.bf16.msra.mxu0 %v1390
        %1687 = vmatprep.subr.bf16.mxu0 %v1399
        %1688 = vmatpush1.bf16.msra.mxu0 %v1398
        %1689 = vmatprep.subr.bf16.mxu0 %v1407
        %1690 = vmatpush1.bf16.msra.mxu0 %v1406
        %1691 = vmatprep.subr.bf16.mxu0 %v1415
        %1692 = vmatpush1.bf16.msra.mxu0 %v1414
        %1693 = vmatprep.subr.bf16.mxu0 %v1423
        %1694 = vmatpush1.bf16.msra.mxu0 %v1422
        %1695 = vmatprep.subr.bf16.mxu0 %v1431
        %1696 = vmatpush1.bf16.msra.mxu0 %v1430
        %1697 = vmatprep.subr.bf16.mxu0 %v1439
        %1698 = vmatpush1.bf16.msra.mxu0 %v1438
        %1699 = vmatprep.subr.bf16.mxu0 %v1447
        %1700 = vmatpush1.bf16.msra.mxu0 %v1446
        %1701 = vmatprep.subr.bf16.mxu0 %v1455
        %1702 = vmatpush1.bf16.msra.mxu0 %v1454
        %1703 = vmatprep.subr.bf16.mxu0 %v1463
        %1704 = vmatpush1.bf16.msra.mxu0 %v1462
        %1705 = vmatprep.subr.bf16.mxu0 %v1471
        %1706 = vmatpush1.bf16.msra.mxu0 %v1470
        %1707 = vmatprep.subr.bf16.mxu0 %v1479
        %1708 = vmatpush1.bf16.msra.mxu0 %v1478
        %1709 = vmatprep.subr.bf16.mxu0 %v1487
        %1710 = vmatpush1.bf16.msra.mxu0 %v1486
        %1711 = vmatprep.subr.bf16.mxu0 %v1495
        %1712 = vmatpush1.bf16.msra.mxu0 %v1494
        %1713 = vmatprep.subr.bf16.mxu0 %v1503
        %1714 = vmatpush1.bf16.msra.mxu0 %v1502
        %1715 = vmatprep.subr.bf16.mxu0 %v1511
        %1716 = vmatpush1.bf16.msra.mxu0 %v1510
        %1717 = vmatprep.mubr.bf16.mxu0 %v1001
        %1718 = vmatmul.mubr.bf16.gmra.mrb[0].mxu0 %v994
        %v1719 = vpop.f32.mrb[0].mxu0
        %v1720 = vadd.f32 %v950, %v1719
        %v1721 = vpop.f32.mrb[0].mxu0
        %v1722 = vadd.f32 %v954, %v1721
        %v1723 = vpop.f32.mrb[0].mxu0
        %v1724 = vpop.f32.mrb[0].mxu0
        %1725 = vdwg.mxu0
        %1726 = vmatprep.subr.bf16.mxu0 %v1393
        %1727 = vmatpush1.bf16.msra.mxu0 %v1392
        %1728 = vmatprep.subr.bf16.mxu0 %v1401
        %1729 = vmatpush1.bf16.msra.mxu0 %v1400
        %1730 = vmatprep.subr.bf16.mxu0 %v1409
        %1731 = vmatpush1.bf16.msra.mxu0 %v1408
        %1732 = vmatprep.subr.bf16.mxu0 %v1417
        %1733 = vmatpush1.bf16.msra.mxu0 %v1416
        %1734 = vmatprep.subr.bf16.mxu0 %v1425
        %1735 = vmatpush1.bf16.msra.mxu0 %v1424
        %1736 = vmatprep.subr.bf16.mxu0 %v1433
        %1737 = vmatpush1.bf16.msra.mxu0 %v1432
        %1738 = vmatprep.subr.bf16.mxu0 %v1441
        %1739 = vmatpush1.bf16.msra.mxu0 %v1440
        %1740 = vmatprep.subr.bf16.mxu0 %v1449
        %1741 = vmatpush1.bf16.msra.mxu0 %v1448
        %1742 = vmatprep.subr.bf16.mxu0 %v1457
        %1743 = vmatpush1.bf16.msra.mxu0 %v1456
        %1744 = vmatprep.subr.bf16.mxu0 %v1465
        %1745 = vmatpush1.bf16.msra.mxu0 %v1464
        %1746 = vmatprep.subr.bf16.mxu0 %v1473
        %1747 = vmatpush1.bf16.msra.mxu0 %v1472
        %1748 = vmatprep.subr.bf16.mxu0 %v1481
        %1749 = vmatpush1.bf16.msra.mxu0 %v1480
        %1750 = vmatprep.subr.bf16.mxu0 %v1489
        %1751 = vmatpush1.bf16.msra.mxu0 %v1488
        %1752 = vmatprep.subr.bf16.mxu0 %v1497
        %1753 = vmatpush1.bf16.msra.mxu0 %v1496
        %1754 = vmatprep.subr.bf16.mxu0 %v1505
        %1755 = vmatpush1.bf16.msra.mxu0 %v1504
        %1756 = vmatprep.subr.bf16.mxu0 %v1513
        %1757 = vmatpush1.bf16.msra.mxu0 %v1512
        %1758 = vmatprep.mubr.bf16.mxu0 %v1001
        %1759 = vmatmul.mubr.bf16.gmra.mrb[0].mxu0 %v994
        %v1760 = vpop.f32.mrb[0].mxu0
        %v1761 = vadd.f32 %v958, %v1760
        %v1762 = vpop.f32.mrb[0].mxu0
        %v1763 = vadd.f32 %v962, %v1762
        %v1764 = vpop.f32.mrb[0].mxu0
        %v1765 = vpop.f32.mrb[0].mxu0
        %1766 = vdwg.mxu0
        %1767 = vmatprep.subr.bf16.mxu0 %v1395
        %1768 = vmatpush1.bf16.msra.mxu0 %v1394
        %1769 = vmatprep.subr.bf16.mxu0 %v1403
        %1770 = vmatpush1.bf16.msra.mxu0 %v1402
        %1771 = vmatprep.subr.bf16.mxu0 %v1411
        %1772 = vmatpush1.bf16.msra.mxu0 %v1410
        %1773 = vmatprep.subr.bf16.mxu0 %v1419
        %1774 = vmatpush1.bf16.msra.mxu0 %v1418
        %1775 = vmatprep.subr.bf16.mxu0 %v1427
        %1776 = vmatpush1.bf16.msra.mxu0 %v1426
        %1777 = vmatprep.subr.bf16.mxu0 %v1435
        %1778 = vmatpush1.bf16.msra.mxu0 %v1434
        %1779 = vmatprep.subr.bf16.mxu0 %v1443
        %1780 = vmatpush1.bf16.msra.mxu0 %v1442
        %1781 = vmatprep.subr.bf16.mxu0 %v1451
        %1782 = vmatpush1.bf16.msra.mxu0 %v1450
        %1783 = vmatprep.subr.bf16.mxu0 %v1459
        %1784 = vmatpush1.bf16.msra.mxu0 %v1458
        %1785 = vmatprep.subr.bf16.mxu0 %v1467
        %1786 = vmatpush1.bf16.msra.mxu0 %v1466
        %1787 = vmatprep.subr.bf16.mxu0 %v1475
        %1788 = vmatpush1.bf16.msra.mxu0 %v1474
        %1789 = vmatprep.subr.bf16.mxu0 %v1483
        %1790 = vmatpush1.bf16.msra.mxu0 %v1482
        %1791 = vmatprep.subr.bf16.mxu0 %v1491
        %1792 = vmatpush1.bf16.msra.mxu0 %v1490
        %1793 = vmatprep.subr.bf16.mxu0 %v1499
        %1794 = vmatpush1.bf16.msra.mxu0 %v1498
        %1795 = vmatprep.subr.bf16.mxu0 %v1507
        %1796 = vmatpush1.bf16.msra.mxu0 %v1506
        %1797 = vmatprep.subr.bf16.mxu0 %v1515
        %1798 = vmatpush1.bf16.msra.mxu0 %v1514
        %1799 = vmatprep.mubr.bf16.mxu0 %v1001
        %1800 = vmatmul.mubr.bf16.gmra.mrb[0].mxu0 %v994
        %v1801 = vpop.f32.mrb[0].mxu0
        %v1802 = vadd.f32 %v966, %v1801
        %v1803 = vpop.f32.mrb[0].mxu0
        %v1804 = vadd.f32 %v970, %v1803
        %v1805 = vpop.f32.mrb[0].mxu0
        %v1806 = vpop.f32.mrb[0].mxu0
        %1807 = vdwg.mxu0
        %v1808 = vld [vmem:[%s416] sm:$0xff]
        %v1809 = vld [vmem:[%s416 + $0x8] sm:$0xff]
        %v1812 = vcombine.high %v1808, %v1808
        %v1814 = vunpack.c.l.s4 1983009808
        %v1815 = vunpack.c.0.s8 %v1814
        %v1816 = vlaneseq
        %v1817 = vshrl.u32 %v1816, 7
        %v1818 = vsub.s32 %v1815, %v1817
        %v1819 = vrot.slane %v1808, %v1818
        %v1821 = vunpack.c.l.s4 1983009808
        %v1822 = vunpack.c.0.s8 %v1821
        %v1823 = vlaneseq
        %v1824 = vshrl.u32 %v1823, 7
        %v1825 = vsub.s32 %v1822, %v1824
        %v1826 = vrot.slane %v1812, %v1825
        %v1827 = vcombine.high %v1819, %v1819
        %v1828 = vcombine.high %v1826, %v1826
        %v1829 = vcombine.high %v1809, %v1809
        %v1831 = vunpack.c.l.s4 1983009808
        %v1832 = vunpack.c.0.s8 %v1831
        %v1833 = vlaneseq
        %v1834 = vshrl.u32 %v1833, 7
        %v1835 = vsub.s32 %v1832, %v1834
        %v1836 = vrot.slane %v1809, %v1835
        %v1838 = vunpack.c.l.s4 1983009808
        %v1839 = vunpack.c.0.s8 %v1838
        %v1840 = vlaneseq
        %v1841 = vshrl.u32 %v1840, 7
        %v1842 = vsub.s32 %v1839, %v1841
        %v1843 = vrot.slane %v1829, %v1842
        %v1844 = vcombine.high %v1836, %v1836
        %v1845 = vcombine.high %v1843, %v1843
        %v1854 = vmul.f32 %v1679, %v1819
        %v1855 = vmul.f32 %v1681, %v1827
        %v1856 = vmul.f32 %v1720, %v1826
        %v1857 = vmul.f32 %v1722, %v1828
        %v1858 = vmul.f32 %v1761, %v1836
        %v1859 = vmul.f32 %v1763, %v1844
        %v1860 = vmul.f32 %v1802, %v1843
        %v1861 = vmul.f32 %v1804, %v1845
        %v1862 = vadd.f32 %v1854, %v1855
        %v1863 = vadd.f32 %v1862, %v1856
        %v1864 = vadd.f32 %v1863, %v1857
        %v1865 = vadd.f32 %v1864, %v1858
        %v1866 = vadd.f32 %v1865, %v1859
        %v1867 = vadd.f32 %v1866, %v1860
        %v1868 = vadd.f32 %v1867, %v1861
        %v1869 = vld [vmem:[#allocation2] sm:$0x3]
        %v1870 = vadd.f32 %v1869, %v1868
        %1871 = vst [vmem:[#allocation2] sm:$0x3] %v1870
        %p1872 = scmp.eq.s32.totalorder %s29, 3
        // Predicated region
        $region89: #{tpu_custom_call.1} parent=51 // pred_check
          %p1873 = pneg %p1872
        $region90: #{tpu_custom_call.1} parent=51 // pred_check_branch
          %1875 = sbr.rel (%p1873) target = $region92
        $region91: #{tpu_custom_call.1} parent=51 // pred_region
          %v1876 = vld [vmem:[#allocation11 + $0x5] sm:$0xf]
          %v1877 = vld [vmem:[#allocation4] sm:$0x3]
          %v1878 = vld [vmem:[#allocation13] sm:$0xff]
          %v1879 = vld [vmem:[#allocation13 + $0x8] sm:$0xff]
          %v1880 = vld [vmem:[#allocation13 + $0x10] sm:$0xff]
          %v1881 = vld [vmem:[#allocation13 + $0x18] sm:$0xff]
          %v1882 = vld [vmem:[#allocation13 + $0x20] sm:$0xff]
          %v1883 = vld [vmem:[#allocation13 + $0x28] sm:$0xff]
          %v1884 = vld [vmem:[#allocation13 + $0x30] sm:$0xff]
          %v1885 = vld [vmem:[#allocation13 + $0x38] sm:$0xff]
          %v1886 = vld [vmem:[#allocation13 + $0x40] sm:$0xff]
          %v1887 = vld [vmem:[#allocation13 + $0x48] sm:$0xff]
          %v1888 = vld [vmem:[#allocation13 + $0x50] sm:$0xff]
          %v1889 = vld [vmem:[#allocation13 + $0x58] sm:$0xff]
          %v1890 = vld [vmem:[#allocation13 + $0x60] sm:$0xff]
          %v1891 = vld [vmem:[#allocation13 + $0x68] sm:$0xff]
          %v1892 = vld [vmem:[#allocation13 + $0x70] sm:$0xff]
          %v1893 = vld [vmem:[#allocation13 + $0x78] sm:$0xff]
          %v1894 = vld [vmem:[#allocation13 + $0x80] sm:$0xff]
          %v1895 = vld [vmem:[#allocation13 + $0x88] sm:$0xff]
          %v1896 = vld [vmem:[#allocation13 + $0x90] sm:$0xff]
          %v1897 = vld [vmem:[#allocation13 + $0x98] sm:$0xff]
          %v1898 = vld [vmem:[#allocation13 + $0xa0] sm:$0xff]
          %v1899 = vld [vmem:[#allocation13 + $0xa8] sm:$0xff]
          %v1900 = vld [vmem:[#allocation13 + $0xb0] sm:$0xff]
          %v1901 = vld [vmem:[#allocation13 + $0xb8] sm:$0xff]
          %v1902 = vld [vmem:[#allocation13 + $0xc0] sm:$0xff]
          %v1903 = vld [vmem:[#allocation13 + $0xc8] sm:$0xff]
          %v1904 = vld [vmem:[#allocation13 + $0xd0] sm:$0xff]
          %v1905 = vld [vmem:[#allocation13 + $0xd8] sm:$0xff]
          %v1906 = vld [vmem:[#allocation13 + $0xe0] sm:$0xff]
          %v1907 = vld [vmem:[#allocation13 + $0xe8] sm:$0xff]
          %v1908 = vld [vmem:[#allocation13 + $0xf0] sm:$0xff]
          %v1909 = vld [vmem:[#allocation13 + $0xf8] sm:$0xff]
          %v1910 = vld [vmem:[#allocation13 + $0x100] sm:$0xff]
          %v1911 = vld [vmem:[#allocation13 + $0x108] sm:$0xff]
          %v1912 = vld [vmem:[#allocation13 + $0x110] sm:$0xff]
          %v1913 = vld [vmem:[#allocation13 + $0x118] sm:$0xff]
          %v1914 = vld [vmem:[#allocation13 + $0x120] sm:$0xff]
          %v1915 = vld [vmem:[#allocation13 + $0x128] sm:$0xff]
          %v1916 = vld [vmem:[#allocation13 + $0x130] sm:$0xff]
          %v1917 = vld [vmem:[#allocation13 + $0x138] sm:$0xff]
          %v1918 = vld [vmem:[#allocation13 + $0x140] sm:$0xff]
          %v1919 = vld [vmem:[#allocation13 + $0x148] sm:$0xff]
          %v1920 = vld [vmem:[#allocation13 + $0x150] sm:$0xff]
          %v1921 = vld [vmem:[#allocation13 + $0x158] sm:$0xff]
          %v1922 = vld [vmem:[#allocation13 + $0x160] sm:$0xff]
          %v1923 = vld [vmem:[#allocation13 + $0x168] sm:$0xff]
          %v1924 = vld [vmem:[#allocation13 + $0x170] sm:$0xff]
          %v1925 = vld [vmem:[#allocation13 + $0x178] sm:$0xff]
          %v1926 = vld [vmem:[#allocation13 + $0x180] sm:$0xff]
          %v1927 = vld [vmem:[#allocation13 + $0x188] sm:$0xff]
          %v1928 = vld [vmem:[#allocation13 + $0x190] sm:$0xff]
          %v1929 = vld [vmem:[#allocation13 + $0x198] sm:$0xff]
          %v1930 = vld [vmem:[#allocation13 + $0x1a0] sm:$0xff]
          %v1931 = vld [vmem:[#allocation13 + $0x1a8] sm:$0xff]
          %v1932 = vld [vmem:[#allocation13 + $0x1b0] sm:$0xff]
          %v1933 = vld [vmem:[#allocation13 + $0x1b8] sm:$0xff]
          %v1934 = vld [vmem:[#allocation13 + $0x1c0] sm:$0xff]
          %v1935 = vld [vmem:[#allocation13 + $0x1c8] sm:$0xff]
          %v1936 = vld [vmem:[#allocation13 + $0x1d0] sm:$0xff]
          %v1937 = vld [vmem:[#allocation13 + $0x1d8] sm:$0xff]
          %v1938 = vld [vmem:[#allocation13 + $0x1e0] sm:$0xff]
          %v1939 = vld [vmem:[#allocation13 + $0x1e8] sm:$0xff]
          %v1940 = vld [vmem:[#allocation13 + $0x1f0] sm:$0xff]
          %v1941 = vld [vmem:[#allocation13 + $0x1f8] sm:$0xff]
          %v1943 = vlaneseq
          %v1944 = vshrl.u32 %v1943, 7
          %v1945 = vsub.s32 0, %v1944
          %v1946 = vrot.slane %v1876, %v1945
          %v1947 = vlaneseq
          %v1948 = vshrl.u32 %v1947, 7
          %v1949 = vsub.s32 1, %v1948
          %v1950 = vrot.slane %v1876, %v1949
          %v1951 = vlaneseq
          %v1952 = vshrl.u32 %v1951, 7
          %v1953 = vsub.s32 2, %v1952
          %v1954 = vrot.slane %v1876, %v1953
          %v1955 = vlaneseq
          %v1956 = vshrl.u32 %v1955, 7
          %v1957 = vsub.s32 3, %v1956
          %v1958 = vrot.slane %v1876, %v1957
          %v1965 = vunpack.c.l.s4 1966171168
          %v1966 = vunpack.c.0.s8 %v1965
          %v1967 = vlaneseq
          %v1968 = vshrl.u32 %v1967, 7
          %v1969 = vsub.s32 %v1966, %v1968
          %v1970 = vrot.slane %v1877, %v1969
          %v1971 = vcombine.high %v1970, %v1970
          %v1973 = vunpack.c.l.s4 1966171168
          %v1974 = vunpack.c.0.s8 %v1973
          %v1975 = vlaneseq
          %v1976 = vshrl.u32 %v1975, 7
          %v1977 = vsub.s32 %v1974, %v1976
          %v1978 = vrot.slane %v1970, %v1977
          %v1980 = vunpack.c.l.s4 1966171168
          %v1981 = vunpack.c.0.s8 %v1980
          %v1982 = vlaneseq
          %v1983 = vshrl.u32 %v1982, 7
          %v1984 = vsub.s32 %v1981, %v1983
          %v1985 = vrot.slane %v1971, %v1984
          %v2052 = vunpack.c.l.b16 %v1878
          %v2053 = vunpack.c.h.b16 %v1878
          %v2054 = vunpack.c.l.b16 %v1879
          %v2055 = vunpack.c.h.b16 %v1879
          %v2056 = vunpack.c.l.b16 %v1880
          %v2057 = vunpack.c.h.b16 %v1880
          %v2058 = vunpack.c.l.b16 %v1881
          %v2059 = vunpack.c.h.b16 %v1881
          %v2060 = vunpack.c.l.b16 %v1882
          %v2061 = vunpack.c.h.b16 %v1882
          %v2062 = vunpack.c.l.b16 %v1883
          %v2063 = vunpack.c.h.b16 %v1883
          %v2064 = vunpack.c.l.b16 %v1884
          %v2065 = vunpack.c.h.b16 %v1884
          %v2066 = vunpack.c.l.b16 %v1885
          %v2067 = vunpack.c.h.b16 %v1885
          %v2068 = vunpack.c.l.b16 %v1886
          %v2069 = vunpack.c.h.b16 %v1886
          %v2070 = vunpack.c.l.b16 %v1887
          %v2071 = vunpack.c.h.b16 %v1887
          %v2072 = vunpack.c.l.b16 %v1888
          %v2073 = vunpack.c.h.b16 %v1888
          %v2074 = vunpack.c.l.b16 %v1889
          %v2075 = vunpack.c.h.b16 %v1889
          %v2076 = vunpack.c.l.b16 %v1890
          %v2077 = vunpack.c.h.b16 %v1890
          %v2078 = vunpack.c.l.b16 %v1891
          %v2079 = vunpack.c.h.b16 %v1891
          %v2080 = vunpack.c.l.b16 %v1892
          %v2081 = vunpack.c.h.b16 %v1892
          %v2082 = vunpack.c.l.b16 %v1893
          %v2083 = vunpack.c.h.b16 %v1893
          %v2084 = vunpack.c.l.b16 %v1894
          %v2085 = vunpack.c.h.b16 %v1894
          %v2086 = vunpack.c.l.b16 %v1895
          %v2087 = vunpack.c.h.b16 %v1895
          %v2088 = vunpack.c.l.b16 %v1896
          %v2089 = vunpack.c.h.b16 %v1896
          %v2090 = vunpack.c.l.b16 %v1897
          %v2091 = vunpack.c.h.b16 %v1897
          %v2092 = vunpack.c.l.b16 %v1898
          %v2093 = vunpack.c.h.b16 %v1898
          %v2094 = vunpack.c.l.b16 %v1899
          %v2095 = vunpack.c.h.b16 %v1899
          %v2096 = vunpack.c.l.b16 %v1900
          %v2097 = vunpack.c.h.b16 %v1900
          %v2098 = vunpack.c.l.b16 %v1901
          %v2099 = vunpack.c.h.b16 %v1901
          %v2100 = vunpack.c.l.b16 %v1902
          %v2101 = vunpack.c.h.b16 %v1902
          %v2102 = vunpack.c.l.b16 %v1903
          %v2103 = vunpack.c.h.b16 %v1903
          %v2104 = vunpack.c.l.b16 %v1904
          %v2105 = vunpack.c.h.b16 %v1904
          %v2106 = vunpack.c.l.b16 %v1905
          %v2107 = vunpack.c.h.b16 %v1905
          %v2108 = vunpack.c.l.b16 %v1906
          %v2109 = vunpack.c.h.b16 %v1906
          %v2110 = vunpack.c.l.b16 %v1907
          %v2111 = vunpack.c.h.b16 %v1907
          %v2112 = vunpack.c.l.b16 %v1908
          %v2113 = vunpack.c.h.b16 %v1908
          %v2114 = vunpack.c.l.b16 %v1909
          %v2115 = vunpack.c.h.b16 %v1909
          %v2116 = vunpack.c.l.b16 %v1910
          %v2117 = vunpack.c.h.b16 %v1910
          %v2118 = vunpack.c.l.b16 %v1911
          %v2119 = vunpack.c.h.b16 %v1911
          %v2120 = vunpack.c.l.b16 %v1912
          %v2121 = vunpack.c.h.b16 %v1912
          %v2122 = vunpack.c.l.b16 %v1913
          %v2123 = vunpack.c.h.b16 %v1913
          %v2124 = vunpack.c.l.b16 %v1914
          %v2125 = vunpack.c.h.b16 %v1914
          %v2126 = vunpack.c.l.b16 %v1915
          %v2127 = vunpack.c.h.b16 %v1915
          %v2128 = vunpack.c.l.b16 %v1916
          %v2129 = vunpack.c.h.b16 %v1916
          %v2130 = vunpack.c.l.b16 %v1917
          %v2131 = vunpack.c.h.b16 %v1917
          %v2132 = vunpack.c.l.b16 %v1918
          %v2133 = vunpack.c.h.b16 %v1918
          %v2134 = vunpack.c.l.b16 %v1919
          %v2135 = vunpack.c.h.b16 %v1919
          %v2136 = vunpack.c.l.b16 %v1920
          %v2137 = vunpack.c.h.b16 %v1920
          %v2138 = vunpack.c.l.b16 %v1921
          %v2139 = vunpack.c.h.b16 %v1921
          %v2140 = vunpack.c.l.b16 %v1922
          %v2141 = vunpack.c.h.b16 %v1922
          %v2142 = vunpack.c.l.b16 %v1923
          %v2143 = vunpack.c.h.b16 %v1923
          %v2144 = vunpack.c.l.b16 %v1924
          %v2145 = vunpack.c.h.b16 %v1924
          %v2146 = vunpack.c.l.b16 %v1925
          %v2147 = vunpack.c.h.b16 %v1925
          %v2148 = vunpack.c.l.b16 %v1926
          %v2149 = vunpack.c.h.b16 %v1926
          %v2150 = vunpack.c.l.b16 %v1927
          %v2151 = vunpack.c.h.b16 %v1927
          %v2152 = vunpack.c.l.b16 %v1928
          %v2153 = vunpack.c.h.b16 %v1928
          %v2154 = vunpack.c.l.b16 %v1929
          %v2155 = vunpack.c.h.b16 %v1929
          %v2156 = vunpack.c.l.b16 %v1930
          %v2157 = vunpack.c.h.b16 %v1930
          %v2158 = vunpack.c.l.b16 %v1931
          %v2159 = vunpack.c.h.b16 %v1931
          %v2160 = vunpack.c.l.b16 %v1932
          %v2161 = vunpack.c.h.b16 %v1932
          %v2162 = vunpack.c.l.b16 %v1933
          %v2163 = vunpack.c.h.b16 %v1933
          %v2164 = vunpack.c.l.b16 %v1934
          %v2165 = vunpack.c.h.b16 %v1934
          %v2166 = vunpack.c.l.b16 %v1935
          %v2167 = vunpack.c.h.b16 %v1935
          %v2168 = vunpack.c.l.b16 %v1936
          %v2169 = vunpack.c.h.b16 %v1936
          %v2170 = vunpack.c.l.b16 %v1937
          %v2171 = vunpack.c.h.b16 %v1937
          %v2172 = vunpack.c.l.b16 %v1938
          %v2173 = vunpack.c.h.b16 %v1938
          %v2174 = vunpack.c.l.b16 %v1939
          %v2175 = vunpack.c.h.b16 %v1939
          %v2176 = vunpack.c.l.b16 %v1940
          %v2177 = vunpack.c.h.b16 %v1940
          %v2178 = vunpack.c.l.b16 %v1941
          %v2179 = vunpack.c.h.b16 %v1941
          %v2180 = vpack.c.b16 %v2056, %v2052
          %v2181 = vpack.c.b16 %v2057, %v2053
          %v2182 = vpack.c.b16 %v2058, %v2054
          %v2183 = vpack.c.b16 %v2059, %v2055
          %v2184 = vpack.c.b16 %v2064, %v2060
          %v2185 = vpack.c.b16 %v2065, %v2061
          %v2186 = vpack.c.b16 %v2066, %v2062
          %v2187 = vpack.c.b16 %v2067, %v2063
          %v2188 = vpack.c.b16 %v2072, %v2068
          %v2189 = vpack.c.b16 %v2073, %v2069
          %v2190 = vpack.c.b16 %v2074, %v2070
          %v2191 = vpack.c.b16 %v2075, %v2071
          %v2192 = vpack.c.b16 %v2080, %v2076
          %v2193 = vpack.c.b16 %v2081, %v2077
          %v2194 = vpack.c.b16 %v2082, %v2078
          %v2195 = vpack.c.b16 %v2083, %v2079
          %v2196 = vpack.c.b16 %v2088, %v2084
          %v2197 = vpack.c.b16 %v2089, %v2085
          %v2198 = vpack.c.b16 %v2090, %v2086
          %v2199 = vpack.c.b16 %v2091, %v2087
          %v2200 = vpack.c.b16 %v2096, %v2092
          %v2201 = vpack.c.b16 %v2097, %v2093
          %v2202 = vpack.c.b16 %v2098, %v2094
          %v2203 = vpack.c.b16 %v2099, %v2095
          %v2204 = vpack.c.b16 %v2104, %v2100
          %v2205 = vpack.c.b16 %v2105, %v2101
          %v2206 = vpack.c.b16 %v2106, %v2102
          %v2207 = vpack.c.b16 %v2107, %v2103
          %v2208 = vpack.c.b16 %v2112, %v2108
          %v2209 = vpack.c.b16 %v2113, %v2109
          %v2210 = vpack.c.b16 %v2114, %v2110
          %v2211 = vpack.c.b16 %v2115, %v2111
          %v2212 = vpack.c.b16 %v2120, %v2116
          %v2213 = vpack.c.b16 %v2121, %v2117
          %v2214 = vpack.c.b16 %v2122, %v2118
          %v2215 = vpack.c.b16 %v2123, %v2119
          %v2216 = vpack.c.b16 %v2128, %v2124
          %v2217 = vpack.c.b16 %v2129, %v2125
          %v2218 = vpack.c.b16 %v2130, %v2126
          %v2219 = vpack.c.b16 %v2131, %v2127
          %v2220 = vpack.c.b16 %v2136, %v2132
          %v2221 = vpack.c.b16 %v2137, %v2133
          %v2222 = vpack.c.b16 %v2138, %v2134
          %v2223 = vpack.c.b16 %v2139, %v2135
          %v2224 = vpack.c.b16 %v2144, %v2140
          %v2225 = vpack.c.b16 %v2145, %v2141
          %v2226 = vpack.c.b16 %v2146, %v2142
          %v2227 = vpack.c.b16 %v2147, %v2143
          %v2228 = vpack.c.b16 %v2152, %v2148
          %v2229 = vpack.c.b16 %v2153, %v2149
          %v2230 = vpack.c.b16 %v2154, %v2150
          %v2231 = vpack.c.b16 %v2155, %v2151
          %v2232 = vpack.c.b16 %v2160, %v2156
          %v2233 = vpack.c.b16 %v2161, %v2157
          %v2234 = vpack.c.b16 %v2162, %v2158
          %v2235 = vpack.c.b16 %v2163, %v2159
          %v2236 = vpack.c.b16 %v2168, %v2164
          %v2237 = vpack.c.b16 %v2169, %v2165
          %v2238 = vpack.c.b16 %v2170, %v2166
          %v2239 = vpack.c.b16 %v2171, %v2167
          %v2240 = vpack.c.b16 %v2176, %v2172
          %v2241 = vpack.c.b16 %v2177, %v2173
          %v2242 = vpack.c.b16 %v2178, %v2174
          %v2243 = vpack.c.b16 %v2179, %v2175
          %2308 = vmatprep.subr.bf16.mxu0 %v2181
          %2309 = vmatpush1.bf16.msra.mxu0 %v2180
          %2310 = vmatprep.subr.bf16.mxu0 %v2185
          %2311 = vmatpush1.bf16.msra.mxu0 %v2184
          %2312 = vmatprep.subr.bf16.mxu0 %v2189
          %2313 = vmatpush1.bf16.msra.mxu0 %v2188
          %2314 = vmatprep.subr.bf16.mxu0 %v2193
          %2315 = vmatpush1.bf16.msra.mxu0 %v2192
          %2316 = vmatprep.subr.bf16.mxu0 %v2197
          %2317 = vmatpush1.bf16.msra.mxu0 %v2196
          %2318 = vmatprep.subr.bf16.mxu0 %v2201
          %2319 = vmatpush1.bf16.msra.mxu0 %v2200
          %2320 = vmatprep.subr.bf16.mxu0 %v2205
          %2321 = vmatpush1.bf16.msra.mxu0 %v2204
          %2322 = vmatprep.subr.bf16.mxu0 %v2209
          %2323 = vmatpush1.bf16.msra.mxu0 %v2208
          %2324 = vmatprep.subr.bf16.mxu0 %v2213
          %2325 = vmatpush1.bf16.msra.mxu0 %v2212
          %2326 = vmatprep.subr.bf16.mxu0 %v2217
          %2327 = vmatpush1.bf16.msra.mxu0 %v2216
          %2328 = vmatprep.subr.bf16.mxu0 %v2221
          %2329 = vmatpush1.bf16.msra.mxu0 %v2220
          %2330 = vmatprep.subr.bf16.mxu0 %v2225
          %2331 = vmatpush1.bf16.msra.mxu0 %v2224
          %2332 = vmatprep.subr.bf16.mxu0 %v2229
          %2333 = vmatpush1.bf16.msra.mxu0 %v2228
          %2334 = vmatprep.subr.bf16.mxu0 %v2233
          %2335 = vmatpush1.bf16.msra.mxu0 %v2232
          %2336 = vmatprep.subr.bf16.mxu0 %v2237
          %2337 = vmatpush1.bf16.msra.mxu0 %v2236
          %2338 = vmatprep.subr.bf16.mxu0 %v2241
          %2339 = vmatpush1.bf16.msra.mxu0 %v2240
          %2340 = vmatprep.mubr.bf16.mxu0 %v1985
          %2341 = vmatmul.mubr.bf16.gmra.mrb[0].mxu0 %v1978
          %v2342 = vpop.f32.mrb[0].mxu0
          %v2343 = vadd.f32 %v1946, %v2342
          %v2344 = vpop.f32.mrb[0].mxu0
          %v2345 = vadd.f32 %v1950, %v2344
          %v2346 = vpop.f32.mrb[0].mxu0
          %v2347 = vpop.f32.mrb[0].mxu0
          %2348 = vdwg.mxu0
          %2349 = vmatprep.subr.bf16.mxu0 %v2183
          %2350 = vmatpush1.bf16.msra.mxu0 %v2182
          %2351 = vmatprep.subr.bf16.mxu0 %v2187
          %2352 = vmatpush1.bf16.msra.mxu0 %v2186
          %2353 = vmatprep.subr.bf16.mxu0 %v2191
          %2354 = vmatpush1.bf16.msra.mxu0 %v2190
          %2355 = vmatprep.subr.bf16.mxu0 %v2195
          %2356 = vmatpush1.bf16.msra.mxu0 %v2194
          %2357 = vmatprep.subr.bf16.mxu0 %v2199
          %2358 = vmatpush1.bf16.msra.mxu0 %v2198
          %2359 = vmatprep.subr.bf16.mxu0 %v2203
          %2360 = vmatpush1.bf16.msra.mxu0 %v2202
          %2361 = vmatprep.subr.bf16.mxu0 %v2207
          %2362 = vmatpush1.bf16.msra.mxu0 %v2206
          %2363 = vmatprep.subr.bf16.mxu0 %v2211
          %2364 = vmatpush1.bf16.msra.mxu0 %v2210
          %2365 = vmatprep.subr.bf16.mxu0 %v2215
          %2366 = vmatpush1.bf16.msra.mxu0 %v2214
          %2367 = vmatprep.subr.bf16.mxu0 %v2219
          %2368 = vmatpush1.bf16.msra.mxu0 %v2218
          %2369 = vmatprep.subr.bf16.mxu0 %v2223
          %2370 = vmatpush1.bf16.msra.mxu0 %v2222
          %2371 = vmatprep.subr.bf16.mxu0 %v2227
          %2372 = vmatpush1.bf16.msra.mxu0 %v2226
          %2373 = vmatprep.subr.bf16.mxu0 %v2231
          %2374 = vmatpush1.bf16.msra.mxu0 %v2230
          %2375 = vmatprep.subr.bf16.mxu0 %v2235
          %2376 = vmatpush1.bf16.msra.mxu0 %v2234
          %2377 = vmatprep.subr.bf16.mxu0 %v2239
          %2378 = vmatpush1.bf16.msra.mxu0 %v2238
          %2379 = vmatprep.subr.bf16.mxu0 %v2243
          %2380 = vmatpush1.bf16.msra.mxu0 %v2242
          %2381 = vmatprep.mubr.bf16.mxu0 %v1985
          %2382 = vmatmul.mubr.bf16.gmra.mrb[0].mxu0 %v1978
          %v2383 = vpop.f32.mrb[0].mxu0
          %v2384 = vadd.f32 %v1954, %v2383
          %v2385 = vpop.f32.mrb[0].mxu0
          %v2386 = vadd.f32 %v1958, %v2385
          %v2387 = vpop.f32.mrb[0].mxu0
          %v2388 = vpop.f32.mrb[0].mxu0
          %2389 = vdwg.mxu0
          %v2390 = vld [vmem:[#allocation2] sm:$0x3]
          %v2391 = vlaneseq
          %v2392 = vshrl.u32 %v2391, 7
          %v2393 = vsub.s32 0, %v2392
          %v2394 = vrot.slane %v2390, %v2393
          %2396 = vbcast.lane.b32.xlu0 %v2394, 256
          %v2397 = vpop.permute.xlu0 %2396
          %s2399 = sor.u32 256, 8
          %2400 = vbcast.lane.b32.xlu0 %v2394, %s2399
          %v2401 = vpop.permute.xlu0 %2400
          %s2403 = sor.u32 256, 16
          %2404 = vbcast.lane.b32.xlu0 %v2394, %s2403
          %v2405 = vpop.permute.xlu0 %2404
          %s2407 = sor.u32 256, 24
          %2408 = vbcast.lane.b32.xlu0 %v2394, %s2407
          %v2409 = vpop.permute.xlu0 %2408
          %v2410 = vlaneseq
          %v2411 = vshrl.u32 %v2410, 7
          %v2412 = vsub.s32 1, %v2411
          %v2413 = vrot.slane %v2390, %v2412
          %2415 = vbcast.lane.b32.xlu0 %v2413, 256
          %v2416 = vpop.permute.xlu0 %2415
          %s2418 = sor.u32 256, 8
          %2419 = vbcast.lane.b32.xlu0 %v2413, %s2418
          %v2420 = vpop.permute.xlu0 %2419
          %s2422 = sor.u32 256, 16
          %2423 = vbcast.lane.b32.xlu0 %v2413, %s2422
          %v2424 = vpop.permute.xlu0 %2423
          %s2426 = sor.u32 256, 24
          %2427 = vbcast.lane.b32.xlu0 %v2413, %s2426
          %v2428 = vpop.permute.xlu0 %2427
          %v2429 = vcombine.high %v2397, 0.0
          %v2431 = vunpack.c.l.s4 1983009808
          %v2432 = vunpack.c.0.s8 %v2431
          %v2433 = vlaneseq
          %v2434 = vshrl.u32 %v2433, 7
          %v2435 = vsub.s32 %v2432, %v2434
          %v2436 = vrot.slane %v2397, %v2435
          %v2438 = vunpack.c.l.s4 1983009808
          %v2439 = vunpack.c.0.s8 %v2438
          %v2440 = vlaneseq
          %v2441 = vshrl.u32 %v2440, 7
          %v2442 = vsub.s32 %v2439, %v2441
          %v2443 = vrot.slane %v2429, %v2442
          %v2444 = vcombine.high %v2416, 0.0
          %v2446 = vunpack.c.l.s4 1983009808
          %v2447 = vunpack.c.0.s8 %v2446
          %v2448 = vlaneseq
          %v2449 = vshrl.u32 %v2448, 7
          %v2450 = vsub.s32 %v2447, %v2449
          %v2451 = vrot.slane %v2416, %v2450
          %v2453 = vunpack.c.l.s4 1983009808
          %v2454 = vunpack.c.0.s8 %v2453
          %v2455 = vlaneseq
          %v2456 = vshrl.u32 %v2455, 7
          %v2457 = vsub.s32 %v2454, %v2456
          %v2458 = vrot.slane %v2444, %v2457
          %v2459 = vcombine.low %v2436, %v2451
          %v2460 = vcombine.high %v2436, %v2451
          %v2462 = vunpack.c.l.s4 1934713408
          %v2463 = vunpack.c.0.s8 %v2462
          %v2464 = vlaneseq
          %v2465 = vshrl.u32 %v2464, 7
          %v2466 = vsub.s32 %v2463, %v2465
          %v2467 = vrot.slane %v2459, %v2466
          %v2469 = vunpack.c.l.s4 1934713408
          %v2470 = vunpack.c.0.s8 %v2469
          %v2471 = vlaneseq
          %v2472 = vshrl.u32 %v2471, 7
          %v2473 = vsub.s32 %v2470, %v2472
          %v2474 = vrot.slane %v2460, %v2473
          %v2475 = vcombine.low %v2443, %v2458
          %v2476 = vcombine.high %v2443, %v2458
          %v2478 = vunpack.c.l.s4 1934713408
          %v2479 = vunpack.c.0.s8 %v2478
          %v2480 = vlaneseq
          %v2481 = vshrl.u32 %v2480, 7
          %v2482 = vsub.s32 %v2479, %v2481
          %v2483 = vrot.slane %v2475, %v2482
          %v2485 = vunpack.c.l.s4 1934713408
          %v2486 = vunpack.c.0.s8 %v2485
          %v2487 = vlaneseq
          %v2488 = vshrl.u32 %v2487, 7
          %v2489 = vsub.s32 %v2486, %v2488
          %v2490 = vrot.slane %v2476, %v2489
          %v2491 = vcombine.high %v2467, 0.0
          %v2492 = vcombine.high %v2474, 0.0
          %v2493 = vcombine.high %v2483, 0.0
          %v2494 = vcombine.high %v2490, 0.0
          %v2495 = vcombine.high %v2401, 0.0
          %v2497 = vunpack.c.l.s4 1983009808
          %v2498 = vunpack.c.0.s8 %v2497
          %v2499 = vlaneseq
          %v2500 = vshrl.u32 %v2499, 7
          %v2501 = vsub.s32 %v2498, %v2500
          %v2502 = vrot.slane %v2401, %v2501
          %v2504 = vunpack.c.l.s4 1983009808
          %v2505 = vunpack.c.0.s8 %v2504
          %v2506 = vlaneseq
          %v2507 = vshrl.u32 %v2506, 7
          %v2508 = vsub.s32 %v2505, %v2507
          %v2509 = vrot.slane %v2495, %v2508
          %v2510 = vcombine.high %v2420, 0.0
          %v2512 = vunpack.c.l.s4 1983009808
          %v2513 = vunpack.c.0.s8 %v2512
          %v2514 = vlaneseq
          %v2515 = vshrl.u32 %v2514, 7
          %v2516 = vsub.s32 %v2513, %v2515
          %v2517 = vrot.slane %v2420, %v2516
          %v2519 = vunpack.c.l.s4 1983009808
          %v2520 = vunpack.c.0.s8 %v2519
          %v2521 = vlaneseq
          %v2522 = vshrl.u32 %v2521, 7
          %v2523 = vsub.s32 %v2520, %v2522
          %v2524 = vrot.slane %v2510, %v2523
          %v2525 = vcombine.low %v2502, %v2517
          %v2526 = vcombine.high %v2502, %v2517
          %v2528 = vunpack.c.l.s4 1934713408
          %v2529 = vunpack.c.0.s8 %v2528
          %v2530 = vlaneseq
          %v2531 = vshrl.u32 %v2530, 7
          %v2532 = vsub.s32 %v2529, %v2531
          %v2533 = vrot.slane %v2525, %v2532
          %v2535 = vunpack.c.l.s4 1934713408
          %v2536 = vunpack.c.0.s8 %v2535
          %v2537 = vlaneseq
          %v2538 = vshrl.u32 %v2537, 7
          %v2539 = vsub.s32 %v2536, %v2538
          %v2540 = vrot.slane %v2526, %v2539
          %v2541 = vcombine.low %v2509, %v2524
          %v2542 = vcombine.high %v2509, %v2524
          %v2544 = vunpack.c.l.s4 1934713408
          %v2545 = vunpack.c.0.s8 %v2544
          %v2546 = vlaneseq
          %v2547 = vshrl.u32 %v2546, 7
          %v2548 = vsub.s32 %v2545, %v2547
          %v2549 = vrot.slane %v2541, %v2548
          %v2551 = vunpack.c.l.s4 1934713408
          %v2552 = vunpack.c.0.s8 %v2551
          %v2553 = vlaneseq
          %v2554 = vshrl.u32 %v2553, 7
          %v2555 = vsub.s32 %v2552, %v2554
          %v2556 = vrot.slane %v2542, %v2555
          %v2557 = vcombine.high %v2533, 0.0
          %v2558 = vcombine.high %v2540, 0.0
          %v2559 = vcombine.high %v2549, 0.0
          %v2560 = vcombine.high %v2556, 0.0
          %v2561 = vcombine.high %v2405, 0.0
          %v2563 = vunpack.c.l.s4 1983009808
          %v2564 = vunpack.c.0.s8 %v2563
          %v2565 = vlaneseq
          %v2566 = vshrl.u32 %v2565, 7
          %v2567 = vsub.s32 %v2564, %v2566
          %v2568 = vrot.slane %v2405, %v2567
          %v2570 = vunpack.c.l.s4 1983009808
          %v2571 = vunpack.c.0.s8 %v2570
          %v2572 = vlaneseq
          %v2573 = vshrl.u32 %v2572, 7
          %v2574 = vsub.s32 %v2571, %v2573
          %v2575 = vrot.slane %v2561, %v2574
          %v2576 = vcombine.high %v2424, 0.0
          %v2578 = vunpack.c.l.s4 1983009808
          %v2579 = vunpack.c.0.s8 %v2578
          %v2580 = vlaneseq
          %v2581 = vshrl.u32 %v2580, 7
          %v2582 = vsub.s32 %v2579, %v2581
          %v2583 = vrot.slane %v2424, %v2582
          %v2585 = vunpack.c.l.s4 1983009808
          %v2586 = vunpack.c.0.s8 %v2585
          %v2587 = vlaneseq
          %v2588 = vshrl.u32 %v2587, 7
          %v2589 = vsub.s32 %v2586, %v2588
          %v2590 = vrot.slane %v2576, %v2589
          %v2591 = vcombine.low %v2568, %v2583
          %v2592 = vcombine.high %v2568, %v2583
          %v2594 = vunpack.c.l.s4 1934713408
          %v2595 = vunpack.c.0.s8 %v2594
          %v2596 = vlaneseq
          %v2597 = vshrl.u32 %v2596, 7
          %v2598 = vsub.s32 %v2595, %v2597
          %v2599 = vrot.slane %v2591, %v2598
          %v2601 = vunpack.c.l.s4 1934713408
          %v2602 = vunpack.c.0.s8 %v2601
          %v2603 = vlaneseq
          %v2604 = vshrl.u32 %v2603, 7
          %v2605 = vsub.s32 %v2602, %v2604
          %v2606 = vrot.slane %v2592, %v2605
          %v2607 = vcombine.low %v2575, %v2590
          %v2608 = vcombine.high %v2575, %v2590
          %v2610 = vunpack.c.l.s4 1934713408
          %v2611 = vunpack.c.0.s8 %v2610
          %v2612 = vlaneseq
          %v2613 = vshrl.u32 %v2612, 7
          %v2614 = vsub.s32 %v2611, %v2613
          %v2615 = vrot.slane %v2607, %v2614
          %v2617 = vunpack.c.l.s4 1934713408
          %v2618 = vunpack.c.0.s8 %v2617
          %v2619 = vlaneseq
          %v2620 = vshrl.u32 %v2619, 7
          %v2621 = vsub.s32 %v2618, %v2620
          %v2622 = vrot.slane %v2608, %v2621
          %v2623 = vcombine.high %v2599, 0.0
          %v2624 = vcombine.high %v2606, 0.0
          %v2625 = vcombine.high %v2615, 0.0
          %v2626 = vcombine.high %v2622, 0.0
          %v2627 = vcombine.high %v2409, 0.0
          %v2629 = vunpack.c.l.s4 1983009808
          %v2630 = vunpack.c.0.s8 %v2629
          %v2631 = vlaneseq
          %v2632 = vshrl.u32 %v2631, 7
          %v2633 = vsub.s32 %v2630, %v2632
          %v2634 = vrot.slane %v2409, %v2633
          %v2636 = vunpack.c.l.s4 1983009808
          %v2637 = vunpack.c.0.s8 %v2636
          %v2638 = vlaneseq
          %v2639 = vshrl.u32 %v2638, 7
          %v2640 = vsub.s32 %v2637, %v2639
          %v2641 = vrot.slane %v2627, %v2640
          %v2642 = vcombine.high %v2428, 0.0
          %v2644 = vunpack.c.l.s4 1983009808
          %v2645 = vunpack.c.0.s8 %v2644
          %v2646 = vlaneseq
          %v2647 = vshrl.u32 %v2646, 7
          %v2648 = vsub.s32 %v2645, %v2647
          %v2649 = vrot.slane %v2428, %v2648
          %v2651 = vunpack.c.l.s4 1983009808
          %v2652 = vunpack.c.0.s8 %v2651
          %v2653 = vlaneseq
          %v2654 = vshrl.u32 %v2653, 7
          %v2655 = vsub.s32 %v2652, %v2654
          %v2656 = vrot.slane %v2642, %v2655
          %v2657 = vcombine.low %v2634, %v2649
          %v2658 = vcombine.high %v2634, %v2649
          %v2660 = vunpack.c.l.s4 1934713408
          %v2661 = vunpack.c.0.s8 %v2660
          %v2662 = vlaneseq
          %v2663 = vshrl.u32 %v2662, 7
          %v2664 = vsub.s32 %v2661, %v2663
          %v2665 = vrot.slane %v2657, %v2664
          %v2667 = vunpack.c.l.s4 1934713408
          %v2668 = vunpack.c.0.s8 %v2667
          %v2669 = vlaneseq
          %v2670 = vshrl.u32 %v2669, 7
          %v2671 = vsub.s32 %v2668, %v2670
          %v2672 = vrot.slane %v2658, %v2671
          %v2673 = vcombine.low %v2641, %v2656
          %v2674 = vcombine.high %v2641, %v2656
          %v2676 = vunpack.c.l.s4 1934713408
          %v2677 = vunpack.c.0.s8 %v2676
          %v2678 = vlaneseq
          %v2679 = vshrl.u32 %v2678, 7
          %v2680 = vsub.s32 %v2677, %v2679
          %v2681 = vrot.slane %v2673, %v2680
          %v2683 = vunpack.c.l.s4 1934713408
          %v2684 = vunpack.c.0.s8 %v2683
          %v2685 = vlaneseq
          %v2686 = vshrl.u32 %v2685, 7
          %v2687 = vsub.s32 %v2684, %v2686
          %v2688 = vrot.slane %v2674, %v2687
          %v2689 = vcombine.high %v2665, 0.0
          %v2690 = vcombine.high %v2672, 0.0
          %v2691 = vcombine.high %v2681, 0.0
          %v2692 = vcombine.high %v2688, 0.0
          %2694 = vrot.lane.b32.xlu0 %v2491, 4
          %v2695 = vpop.permute.xlu0 %2694
          %2698 = vrot.lane.b32.xlu0 %v2474, 8
          %v2699 = vpop.permute.xlu0 %2698
          %2702 = vrot.lane.b32.xlu0 %v2492, 12
          %v2703 = vpop.permute.xlu0 %2702
          %2706 = vrot.lane.b32.xlu0 %v2483, 16
          %v2707 = vpop.permute.xlu0 %2706
          %2710 = vrot.lane.b32.xlu0 %v2493, 20
          %v2711 = vpop.permute.xlu0 %2710
          %2714 = vrot.lane.b32.xlu0 %v2490, 24
          %v2715 = vpop.permute.xlu0 %2714
          %2718 = vrot.lane.b32.xlu0 %v2494, 28
          %v2719 = vpop.permute.xlu0 %2718
          %2722 = vrot.lane.b32.xlu0 %v2533, 32
          %v2723 = vpop.permute.xlu0 %2722
          %2726 = vrot.lane.b32.xlu0 %v2557, 36
          %v2727 = vpop.permute.xlu0 %2726
          %2730 = vrot.lane.b32.xlu0 %v2540, 40
          %v2731 = vpop.permute.xlu0 %2730
          %2734 = vrot.lane.b32.xlu0 %v2558, 44
          %v2735 = vpop.permute.xlu0 %2734
          %2738 = vrot.lane.b32.xlu0 %v2549, 48
          %v2739 = vpop.permute.xlu0 %2738
          %2742 = vrot.lane.b32.xlu0 %v2559, 52
          %v2743 = vpop.permute.xlu0 %2742
          %2746 = vrot.lane.b32.xlu0 %v2556, 56
          %v2747 = vpop.permute.xlu0 %2746
          %2750 = vrot.lane.b32.xlu0 %v2560, 60
          %v2751 = vpop.permute.xlu0 %2750
          %2754 = vrot.lane.b32.xlu0 %v2599, 64
          %v2755 = vpop.permute.xlu0 %2754
          %2758 = vrot.lane.b32.xlu0 %v2623, 68
          %v2759 = vpop.permute.xlu0 %2758
          %2762 = vrot.lane.b32.xlu0 %v2606, 72
          %v2763 = vpop.permute.xlu0 %2762
          %2766 = vrot.lane.b32.xlu0 %v2624, 76
          %v2767 = vpop.permute.xlu0 %2766
          %2770 = vrot.lane.b32.xlu0 %v2615, 80
          %v2771 = vpop.permute.xlu0 %2770
          %2774 = vrot.lane.b32.xlu0 %v2625, 84
          %v2775 = vpop.permute.xlu0 %2774
          %2778 = vrot.lane.b32.xlu0 %v2622, 88
          %v2779 = vpop.permute.xlu0 %2778
          %2782 = vrot.lane.b32.xlu0 %v2626, 92
          %v2783 = vpop.permute.xlu0 %2782
          %2786 = vrot.lane.b32.xlu0 %v2665, 96
          %v2787 = vpop.permute.xlu0 %2786
          %2790 = vrot.lane.b32.xlu0 %v2689, 100
          %v2791 = vpop.permute.xlu0 %2790
          %2794 = vrot.lane.b32.xlu0 %v2672, 104
          %v2795 = vpop.permute.xlu0 %2794
          %2798 = vrot.lane.b32.xlu0 %v2690, 108
          %v2799 = vpop.permute.xlu0 %2798
          %2802 = vrot.lane.b32.xlu0 %v2681, 112
          %v2803 = vpop.permute.xlu0 %2802
          %2806 = vrot.lane.b32.xlu0 %v2691, 116
          %v2807 = vpop.permute.xlu0 %2806
          %2810 = vrot.lane.b32.xlu0 %v2688, 120
          %v2811 = vpop.permute.xlu0 %2810
          %2814 = vrot.lane.b32.xlu0 %v2692, 124
          %v2815 = vpop.permute.xlu0 %2814
          %vm2817 = vcmask 31744
          %v2818 = vsel %vm2817, %v2467, %v2695
          %vm2819 = vcmask 64512
          %v2820 = vsel %vm2819, %v2818, %v2699
          %vm2821 = vcmask 97280
          %v2822 = vsel %vm2821, %v2820, %v2703
          %vm2823 = vcmask 130048
          %v2824 = vsel %vm2823, %v2822, %v2707
          %vm2825 = vcmask 162816
          %v2826 = vsel %vm2825, %v2824, %v2711
          %vm2827 = vcmask 195584
          %v2828 = vsel %vm2827, %v2826, %v2715
          %vm2829 = vcmask 228352
          %v2830 = vsel %vm2829, %v2828, %v2719
          %vm2831 = vcmask 261120
          %v2832 = vsel %vm2831, %v2830, %v2723
          %vm2833 = vcmask 293888
          %v2834 = vsel %vm2833, %v2832, %v2727
          %vm2835 = vcmask 326656
          %v2836 = vsel %vm2835, %v2834, %v2731
          %vm2837 = vcmask 359424
          %v2838 = vsel %vm2837, %v2836, %v2735
          %vm2839 = vcmask 392192
          %v2840 = vsel %vm2839, %v2838, %v2739
          %vm2841 = vcmask 424960
          %v2842 = vsel %vm2841, %v2840, %v2743
          %vm2843 = vcmask 457728
          %v2844 = vsel %vm2843, %v2842, %v2747
          %vm2845 = vcmask 490496
          %v2846 = vsel %vm2845, %v2844, %v2751
          %vm2847 = vcmask 523264
          %v2848 = vsel %vm2847, %v2846, %v2755
          %vm2849 = vcmask 556032
          %v2850 = vsel %vm2849, %v2848, %v2759
          %vm2851 = vcmask 588800
          %v2852 = vsel %vm2851, %v2850, %v2763
          %vm2853 = vcmask 621568
          %v2854 = vsel %vm2853, %v2852, %v2767
          %vm2855 = vcmask 654336
          %v2856 = vsel %vm2855, %v2854, %v2771
          %vm2857 = vcmask 687104
          %v2858 = vsel %vm2857, %v2856, %v2775
          %vm2859 = vcmask 719872
          %v2860 = vsel %vm2859, %v2858, %v2779
          %vm2861 = vcmask 752640
          %v2862 = vsel %vm2861, %v2860, %v2783
          %vm2863 = vcmask 785408
          %v2864 = vsel %vm2863, %v2862, %v2787
          %vm2865 = vcmask 818176
          %v2866 = vsel %vm2865, %v2864, %v2791
          %vm2867 = vcmask 850944
          %v2868 = vsel %vm2867, %v2866, %v2795
          %vm2869 = vcmask 883712
          %v2870 = vsel %vm2869, %v2868, %v2799
          %vm2871 = vcmask 916480
          %v2872 = vsel %vm2871, %v2870, %v2803
          %vm2873 = vcmask 949248
          %v2874 = vsel %vm2873, %v2872, %v2807
          %vm2875 = vcmask 982016
          %v2876 = vsel %vm2875, %v2874, %v2811
          %vm2877 = vcmask 1014784
          %v2878 = vsel %vm2877, %v2876, %v2815
          %v2879 = vmul.f32 %v2878, %v2343
          %v2880 = vadd.f32 %v2879, 0.0
          %s2882 = sor.u32 256, 32
          %2883 = vbcast.lane.b32.xlu0 %v2394, %s2882
          %v2884 = vpop.permute.xlu0 %2883
          %s2886 = sor.u32 256, 40
          %2887 = vbcast.lane.b32.xlu0 %v2394, %s2886
          %v2888 = vpop.permute.xlu0 %2887
          %s2890 = sor.u32 256, 48
          %2891 = vbcast.lane.b32.xlu0 %v2394, %s2890
          %v2892 = vpop.permute.xlu0 %2891
          %s2894 = sor.u32 256, 56
          %2895 = vbcast.lane.b32.xlu0 %v2394, %s2894
          %v2896 = vpop.permute.xlu0 %2895
          %s2898 = sor.u32 256, 32
          %2899 = vbcast.lane.b32.xlu0 %v2413, %s2898
          %v2900 = vpop.permute.xlu0 %2899
          %s2902 = sor.u32 256, 40
          %2903 = vbcast.lane.b32.xlu0 %v2413, %s2902
          %v2904 = vpop.permute.xlu0 %2903
          %s2906 = sor.u32 256, 48
          %2907 = vbcast.lane.b32.xlu0 %v2413, %s2906
          %v2908 = vpop.permute.xlu0 %2907
          %s2910 = sor.u32 256, 56
          %2911 = vbcast.lane.b32.xlu0 %v2413, %s2910
          %v2912 = vpop.permute.xlu0 %2911
          %v2913 = vcombine.high %v2884, 0.0
          %v2915 = vunpack.c.l.s4 1983009808
          %v2916 = vunpack.c.0.s8 %v2915
          %v2917 = vlaneseq
          %v2918 = vshrl.u32 %v2917, 7
          %v2919 = vsub.s32 %v2916, %v2918
          %v2920 = vrot.slane %v2884, %v2919
          %v2922 = vunpack.c.l.s4 1983009808
          %v2923 = vunpack.c.0.s8 %v2922
          %v2924 = vlaneseq
          %v2925 = vshrl.u32 %v2924, 7
          %v2926 = vsub.s32 %v2923, %v2925
          %v2927 = vrot.slane %v2913, %v2926
          %v2928 = vcombine.high %v2900, 0.0
          %v2930 = vunpack.c.l.s4 1983009808
          %v2931 = vunpack.c.0.s8 %v2930
          %v2932 = vlaneseq
          %v2933 = vshrl.u32 %v2932, 7
          %v2934 = vsub.s32 %v2931, %v2933
          %v2935 = vrot.slane %v2900, %v2934
          %v2937 = vunpack.c.l.s4 1983009808
          %v2938 = vunpack.c.0.s8 %v2937
          %v2939 = vlaneseq
          %v2940 = vshrl.u32 %v2939, 7
          %v2941 = vsub.s32 %v2938, %v2940
          %v2942 = vrot.slane %v2928, %v2941
          %v2943 = vcombine.low %v2920, %v2935
          %v2944 = vcombine.high %v2920, %v2935
          %v2946 = vunpack.c.l.s4 1934713408
          %v2947 = vunpack.c.0.s8 %v2946
          %v2948 = vlaneseq
          %v2949 = vshrl.u32 %v2948, 7
          %v2950 = vsub.s32 %v2947, %v2949
          %v2951 = vrot.slane %v2943, %v2950
          %v2953 = vunpack.c.l.s4 1934713408
          %v2954 = vunpack.c.0.s8 %v2953
          %v2955 = vlaneseq
          %v2956 = vshrl.u32 %v2955, 7
          %v2957 = vsub.s32 %v2954, %v2956
          %v2958 = vrot.slane %v2944, %v2957
          %v2959 = vcombine.low %v2927, %v2942
          %v2960 = vcombine.high %v2927, %v2942
          %v2962 = vunpack.c.l.s4 1934713408
          %v2963 = vunpack.c.0.s8 %v2962
          %v2964 = vlaneseq
          %v2965 = vshrl.u32 %v2964, 7
          %v2966 = vsub.s32 %v2963, %v2965
          %v2967 = vrot.slane %v2959, %v2966
          %v2969 = vunpack.c.l.s4 1934713408
          %v2970 = vunpack.c.0.s8 %v2969
          %v2971 = vlaneseq
          %v2972 = vshrl.u32 %v2971, 7
          %v2973 = vsub.s32 %v2970, %v2972
          %v2974 = vrot.slane %v2960, %v2973
          %v2975 = vcombine.high %v2951, 0.0
          %v2976 = vcombine.high %v2958, 0.0
          %v2977 = vcombine.high %v2967, 0.0
          %v2978 = vcombine.high %v2974, 0.0
          %v2979 = vcombine.high %v2888, 0.0
          %v2981 = vunpack.c.l.s4 1983009808
          %v2982 = vunpack.c.0.s8 %v2981
          %v2983 = vlaneseq
          %v2984 = vshrl.u32 %v2983, 7
          %v2985 = vsub.s32 %v2982, %v2984
          %v2986 = vrot.slane %v2888, %v2985
          %v2988 = vunpack.c.l.s4 1983009808
          %v2989 = vunpack.c.0.s8 %v2988
          %v2990 = vlaneseq
          %v2991 = vshrl.u32 %v2990, 7
          %v2992 = vsub.s32 %v2989, %v2991
          %v2993 = vrot.slane %v2979, %v2992
          %v2994 = vcombine.high %v2904, 0.0
          %v2996 = vunpack.c.l.s4 1983009808
          %v2997 = vunpack.c.0.s8 %v2996
          %v2998 = vlaneseq
          %v2999 = vshrl.u32 %v2998, 7
          %v3000 = vsub.s32 %v2997, %v2999
          %v3001 = vrot.slane %v2904, %v3000
          %v3003 = vunpack.c.l.s4 1983009808
          %v3004 = vunpack.c.0.s8 %v3003
          %v3005 = vlaneseq
          %v3006 = vshrl.u32 %v3005, 7
          %v3007 = vsub.s32 %v3004, %v3006
          %v3008 = vrot.slane %v2994, %v3007
          %v3009 = vcombine.low %v2986, %v3001
          %v3010 = vcombine.high %v2986, %v3001
          %v3012 = vunpack.c.l.s4 1934713408
          %v3013 = vunpack.c.0.s8 %v3012
          %v3014 = vlaneseq
          %v3015 = vshrl.u32 %v3014, 7
          %v3016 = vsub.s32 %v3013, %v3015
          %v3017 = vrot.slane %v3009, %v3016
          %v3019 = vunpack.c.l.s4 1934713408
          %v3020 = vunpack.c.0.s8 %v3019
          %v3021 = vlaneseq
          %v3022 = vshrl.u32 %v3021, 7
          %v3023 = vsub.s32 %v3020, %v3022
          %v3024 = vrot.slane %v3010, %v3023
          %v3025 = vcombine.low %v2993, %v3008
          %v3026 = vcombine.high %v2993, %v3008
          %v3028 = vunpack.c.l.s4 1934713408
          %v3029 = vunpack.c.0.s8 %v3028
          %v3030 = vlaneseq
          %v3031 = vshrl.u32 %v3030, 7
          %v3032 = vsub.s32 %v3029, %v3031
          %v3033 = vrot.slane %v3025, %v3032
          %v3035 = vunpack.c.l.s4 1934713408
          %v3036 = vunpack.c.0.s8 %v3035
          %v3037 = vlaneseq
          %v3038 = vshrl.u32 %v3037, 7
          %v3039 = vsub.s32 %v3036, %v3038
          %v3040 = vrot.slane %v3026, %v3039
          %v3041 = vcombine.high %v3017, 0.0
          %v3042 = vcombine.high %v3024, 0.0
          %v3043 = vcombine.high %v3033, 0.0
          %v3044 = vcombine.high %v3040, 0.0
          %v3045 = vcombine.high %v2892, 0.0
          %v3047 = vunpack.c.l.s4 1983009808
          %v3048 = vunpack.c.0.s8 %v3047
          %v3049 = vlaneseq
          %v3050 = vshrl.u32 %v3049, 7
          %v3051 = vsub.s32 %v3048, %v3050
          %v3052 = vrot.slane %v2892, %v3051
          %v3054 = vunpack.c.l.s4 1983009808
          %v3055 = vunpack.c.0.s8 %v3054
          %v3056 = vlaneseq
          %v3057 = vshrl.u32 %v3056, 7
          %v3058 = vsub.s32 %v3055, %v3057
          %v3059 = vrot.slane %v3045, %v3058
          %v3060 = vcombine.high %v2908, 0.0
          %v3062 = vunpack.c.l.s4 1983009808
          %v3063 = vunpack.c.0.s8 %v3062
          %v3064 = vlaneseq
          %v3065 = vshrl.u32 %v3064, 7
          %v3066 = vsub.s32 %v3063, %v3065
          %v3067 = vrot.slane %v2908, %v3066
          %v3069 = vunpack.c.l.s4 1983009808
          %v3070 = vunpack.c.0.s8 %v3069
          %v3071 = vlaneseq
          %v3072 = vshrl.u32 %v3071, 7
          %v3073 = vsub.s32 %v3070, %v3072
          %v3074 = vrot.slane %v3060, %v3073
          %v3075 = vcombine.low %v3052, %v3067
          %v3076 = vcombine.high %v3052, %v3067
          %v3078 = vunpack.c.l.s4 1934713408
          %v3079 = vunpack.c.0.s8 %v3078
          %v3080 = vlaneseq
          %v3081 = vshrl.u32 %v3080, 7
          %v3082 = vsub.s32 %v3079, %v3081
          %v3083 = vrot.slane %v3075, %v3082
          %v3085 = vunpack.c.l.s4 1934713408
          %v3086 = vunpack.c.0.s8 %v3085
          %v3087 = vlaneseq
          %v3088 = vshrl.u32 %v3087, 7
          %v3089 = vsub.s32 %v3086, %v3088
          %v3090 = vrot.slane %v3076, %v3089
          %v3091 = vcombine.low %v3059, %v3074
          %v3092 = vcombine.high %v3059, %v3074
          %v3094 = vunpack.c.l.s4 1934713408
          %v3095 = vunpack.c.0.s8 %v3094
          %v3096 = vlaneseq
          %v3097 = vshrl.u32 %v3096, 7
          %v3098 = vsub.s32 %v3095, %v3097
          %v3099 = vrot.slane %v3091, %v3098
          %v3101 = vunpack.c.l.s4 1934713408
          %v3102 = vunpack.c.0.s8 %v3101
          %v3103 = vlaneseq
          %v3104 = vshrl.u32 %v3103, 7
          %v3105 = vsub.s32 %v3102, %v3104
          %v3106 = vrot.slane %v3092, %v3105
          %v3107 = vcombine.high %v3083, 0.0
          %v3108 = vcombine.high %v3090, 0.0
          %v3109 = vcombine.high %v3099, 0.0
          %v3110 = vcombine.high %v3106, 0.0
          %v3111 = vcombine.high %v2896, 0.0
          %v3113 = vunpack.c.l.s4 1983009808
          %v3114 = vunpack.c.0.s8 %v3113
          %v3115 = vlaneseq
          %v3116 = vshrl.u32 %v3115, 7
          %v3117 = vsub.s32 %v3114, %v3116
          %v3118 = vrot.slane %v2896, %v3117
          %v3120 = vunpack.c.l.s4 1983009808
          %v3121 = vunpack.c.0.s8 %v3120
          %v3122 = vlaneseq
          %v3123 = vshrl.u32 %v3122, 7
          %v3124 = vsub.s32 %v3121, %v3123
          %v3125 = vrot.slane %v3111, %v3124
          %v3126 = vcombine.high %v2912, 0.0
          %v3128 = vunpack.c.l.s4 1983009808
          %v3129 = vunpack.c.0.s8 %v3128
          %v3130 = vlaneseq
          %v3131 = vshrl.u32 %v3130, 7
          %v3132 = vsub.s32 %v3129, %v3131
          %v3133 = vrot.slane %v2912, %v3132
          %v3135 = vunpack.c.l.s4 1983009808
          %v3136 = vunpack.c.0.s8 %v3135
          %v3137 = vlaneseq
          %v3138 = vshrl.u32 %v3137, 7
          %v3139 = vsub.s32 %v3136, %v3138
          %v3140 = vrot.slane %v3126, %v3139
          %v3141 = vcombine.low %v3118, %v3133
          %v3142 = vcombine.high %v3118, %v3133
          %v3144 = vunpack.c.l.s4 1934713408
          %v3145 = vunpack.c.0.s8 %v3144
          %v3146 = vlaneseq
          %v3147 = vshrl.u32 %v3146, 7
          %v3148 = vsub.s32 %v3145, %v3147
          %v3149 = vrot.slane %v3141, %v3148
          %v3151 = vunpack.c.l.s4 1934713408
          %v3152 = vunpack.c.0.s8 %v3151
          %v3153 = vlaneseq
          %v3154 = vshrl.u32 %v3153, 7
          %v3155 = vsub.s32 %v3152, %v3154
          %v3156 = vrot.slane %v3142, %v3155
          %v3157 = vcombine.low %v3125, %v3140
          %v3158 = vcombine.high %v3125, %v3140
          %v3160 = vunpack.c.l.s4 1934713408
          %v3161 = vunpack.c.0.s8 %v3160
          %v3162 = vlaneseq
          %v3163 = vshrl.u32 %v3162, 7
          %v3164 = vsub.s32 %v3161, %v3163
          %v3165 = vrot.slane %v3157, %v3164
          %v3167 = vunpack.c.l.s4 1934713408
          %v3168 = vunpack.c.0.s8 %v3167
          %v3169 = vlaneseq
          %v3170 = vshrl.u32 %v3169, 7
          %v3171 = vsub.s32 %v3168, %v3170
          %v3172 = vrot.slane %v3158, %v3171
          %v3173 = vcombine.high %v3149, 0.0
          %v3174 = vcombine.high %v3156, 0.0
          %v3175 = vcombine.high %v3165, 0.0
          %v3176 = vcombine.high %v3172, 0.0
          %3178 = vrot.lane.b32.xlu0 %v2975, 4
          %v3179 = vpop.permute.xlu0 %3178
          %3182 = vrot.lane.b32.xlu0 %v2958, 8
          %v3183 = vpop.permute.xlu0 %3182
          %3186 = vrot.lane.b32.xlu0 %v2976, 12
          %v3187 = vpop.permute.xlu0 %3186
          %3190 = vrot.lane.b32.xlu0 %v2967, 16
          %v3191 = vpop.permute.xlu0 %3190
          %3194 = vrot.lane.b32.xlu0 %v2977, 20
          %v3195 = vpop.permute.xlu0 %3194
          %3198 = vrot.lane.b32.xlu0 %v2974, 24
          %v3199 = vpop.permute.xlu0 %3198
          %3202 = vrot.lane.b32.xlu0 %v2978, 28
          %v3203 = vpop.permute.xlu0 %3202
          %3206 = vrot.lane.b32.xlu0 %v3017, 32
          %v3207 = vpop.permute.xlu0 %3206
          %3210 = vrot.lane.b32.xlu0 %v3041, 36
          %v3211 = vpop.permute.xlu0 %3210
          %3214 = vrot.lane.b32.xlu0 %v3024, 40
          %v3215 = vpop.permute.xlu0 %3214
          %3218 = vrot.lane.b32.xlu0 %v3042, 44
          %v3219 = vpop.permute.xlu0 %3218
          %3222 = vrot.lane.b32.xlu0 %v3033, 48
          %v3223 = vpop.permute.xlu0 %3222
          %3226 = vrot.lane.b32.xlu0 %v3043, 52
          %v3227 = vpop.permute.xlu0 %3226
          %3230 = vrot.lane.b32.xlu0 %v3040, 56
          %v3231 = vpop.permute.xlu0 %3230
          %3234 = vrot.lane.b32.xlu0 %v3044, 60
          %v3235 = vpop.permute.xlu0 %3234
          %3238 = vrot.lane.b32.xlu0 %v3083, 64
          %v3239 = vpop.permute.xlu0 %3238
          %3242 = vrot.lane.b32.xlu0 %v3107, 68
          %v3243 = vpop.permute.xlu0 %3242
          %3246 = vrot.lane.b32.xlu0 %v3090, 72
          %v3247 = vpop.permute.xlu0 %3246
          %3250 = vrot.lane.b32.xlu0 %v3108, 76
          %v3251 = vpop.permute.xlu0 %3250
          %3254 = vrot.lane.b32.xlu0 %v3099, 80
          %v3255 = vpop.permute.xlu0 %3254
          %3258 = vrot.lane.b32.xlu0 %v3109, 84
          %v3259 = vpop.permute.xlu0 %3258
          %3262 = vrot.lane.b32.xlu0 %v3106, 88
          %v3263 = vpop.permute.xlu0 %3262
          %3266 = vrot.lane.b32.xlu0 %v3110, 92
          %v3267 = vpop.permute.xlu0 %3266
          %3270 = vrot.lane.b32.xlu0 %v3149, 96
          %v3271 = vpop.permute.xlu0 %3270
          %3274 = vrot.lane.b32.xlu0 %v3173, 100
          %v3275 = vpop.permute.xlu0 %3274
          %3278 = vrot.lane.b32.xlu0 %v3156, 104
          %v3279 = vpop.permute.xlu0 %3278
          %3282 = vrot.lane.b32.xlu0 %v3174, 108
          %v3283 = vpop.permute.xlu0 %3282
          %3286 = vrot.lane.b32.xlu0 %v3165, 112
          %v3287 = vpop.permute.xlu0 %3286
          %3290 = vrot.lane.b32.xlu0 %v3175, 116
          %v3291 = vpop.permute.xlu0 %3290
          %3294 = vrot.lane.b32.xlu0 %v3172, 120
          %v3295 = vpop.permute.xlu0 %3294
          %3298 = vrot.lane.b32.xlu0 %v3176, 124
          %v3299 = vpop.permute.xlu0 %3298
          %v3301 = vsel %vm2817, %v2951, %v3179
          %v3302 = vsel %vm2819, %v3301, %v3183
          %v3303 = vsel %vm2821, %v3302, %v3187
          %v3304 = vsel %vm2823, %v3303, %v3191
          %v3305 = vsel %vm2825, %v3304, %v3195
          %v3306 = vsel %vm2827, %v3305, %v3199
          %v3307 = vsel %vm2829, %v3306, %v3203
          %v3308 = vsel %vm2831, %v3307, %v3207
          %v3309 = vsel %vm2833, %v3308, %v3211
          %v3310 = vsel %vm2835, %v3309, %v3215
          %v3311 = vsel %vm2837, %v3310, %v3219
          %v3312 = vsel %vm2839, %v3311, %v3223
          %v3313 = vsel %vm2841, %v3312, %v3227
          %v3314 = vsel %vm2843, %v3313, %v3231
          %v3315 = vsel %vm2845, %v3314, %v3235
          %v3316 = vsel %vm2847, %v3315, %v3239
          %v3317 = vsel %vm2849, %v3316, %v3243
          %v3318 = vsel %vm2851, %v3317, %v3247
          %v3319 = vsel %vm2853, %v3318, %v3251
          %v3320 = vsel %vm2855, %v3319, %v3255
          %v3321 = vsel %vm2857, %v3320, %v3259
          %v3322 = vsel %vm2859, %v3321, %v3263
          %v3323 = vsel %vm2861, %v3322, %v3267
          %v3324 = vsel %vm2863, %v3323, %v3271
          %v3325 = vsel %vm2865, %v3324, %v3275
          %v3326 = vsel %vm2867, %v3325, %v3279
          %v3327 = vsel %vm2869, %v3326, %v3283
          %v3328 = vsel %vm2871, %v3327, %v3287
          %v3329 = vsel %vm2873, %v3328, %v3291
          %v3330 = vsel %vm2875, %v3329, %v3295
          %v3331 = vsel %vm2877, %v3330, %v3299
          %v3332 = vmul.f32 %v3331, %v2345
          %v3333 = vadd.f32 %v2880, %v3332
          %s3335 = sor.u32 256, 64
          %3336 = vbcast.lane.b32.xlu0 %v2394, %s3335
          %v3337 = vpop.permute.xlu0 %3336
          %s3339 = sor.u32 256, 72
          %3340 = vbcast.lane.b32.xlu0 %v2394, %s3339
          %v3341 = vpop.permute.xlu0 %3340
          %s3343 = sor.u32 256, 80
          %3344 = vbcast.lane.b32.xlu0 %v2394, %s3343
          %v3345 = vpop.permute.xlu0 %3344
          %s3347 = sor.u32 256, 88
          %3348 = vbcast.lane.b32.xlu0 %v2394, %s3347
          %v3349 = vpop.permute.xlu0 %3348
          %s3351 = sor.u32 256, 64
          %3352 = vbcast.lane.b32.xlu0 %v2413, %s3351
          %v3353 = vpop.permute.xlu0 %3352
          %s3355 = sor.u32 256, 72
          %3356 = vbcast.lane.b32.xlu0 %v2413, %s3355
          %v3357 = vpop.permute.xlu0 %3356
          %s3359 = sor.u32 256, 80
          %3360 = vbcast.lane.b32.xlu0 %v2413, %s3359
          %v3361 = vpop.permute.xlu0 %3360
          %s3363 = sor.u32 256, 88
          %3364 = vbcast.lane.b32.xlu0 %v2413, %s3363
          %v3365 = vpop.permute.xlu0 %3364
          %v3366 = vcombine.high %v3337, 0.0
          %v3368 = vunpack.c.l.s4 1983009808
          %v3369 = vunpack.c.0.s8 %v3368
          %v3370 = vlaneseq
          %v3371 = vshrl.u32 %v3370, 7
          %v3372 = vsub.s32 %v3369, %v3371
          %v3373 = vrot.slane %v3337, %v3372
          %v3375 = vunpack.c.l.s4 1983009808
          %v3376 = vunpack.c.0.s8 %v3375
          %v3377 = vlaneseq
          %v3378 = vshrl.u32 %v3377, 7
          %v3379 = vsub.s32 %v3376, %v3378
          %v3380 = vrot.slane %v3366, %v3379
          %v3381 = vcombine.high %v3353, 0.0
          %v3383 = vunpack.c.l.s4 1983009808
          %v3384 = vunpack.c.0.s8 %v3383
          %v3385 = vlaneseq
          %v3386 = vshrl.u32 %v3385, 7
          %v3387 = vsub.s32 %v3384, %v3386
          %v3388 = vrot.slane %v3353, %v3387
          %v3390 = vunpack.c.l.s4 1983009808
          %v3391 = vunpack.c.0.s8 %v3390
          %v3392 = vlaneseq
          %v3393 = vshrl.u32 %v3392, 7
          %v3394 = vsub.s32 %v3391, %v3393
          %v3395 = vrot.slane %v3381, %v3394
          %v3396 = vcombine.low %v3373, %v3388
          %v3397 = vcombine.high %v3373, %v3388
          %v3399 = vunpack.c.l.s4 1934713408
          %v3400 = vunpack.c.0.s8 %v3399
          %v3401 = vlaneseq
          %v3402 = vshrl.u32 %v3401, 7
          %v3403 = vsub.s32 %v3400, %v3402
          %v3404 = vrot.slane %v3396, %v3403
          %v3406 = vunpack.c.l.s4 1934713408
          %v3407 = vunpack.c.0.s8 %v3406
          %v3408 = vlaneseq
          %v3409 = vshrl.u32 %v3408, 7
          %v3410 = vsub.s32 %v3407, %v3409
          %v3411 = vrot.slane %v3397, %v3410
          %v3412 = vcombine.low %v3380, %v3395
          %v3413 = vcombine.high %v3380, %v3395
          %v3415 = vunpack.c.l.s4 1934713408
          %v3416 = vunpack.c.0.s8 %v3415
          %v3417 = vlaneseq
          %v3418 = vshrl.u32 %v3417, 7
          %v3419 = vsub.s32 %v3416, %v3418
          %v3420 = vrot.slane %v3412, %v3419
          %v3422 = vunpack.c.l.s4 1934713408
          %v3423 = vunpack.c.0.s8 %v3422
          %v3424 = vlaneseq
          %v3425 = vshrl.u32 %v3424, 7
          %v3426 = vsub.s32 %v3423, %v3425
          %v3427 = vrot.slane %v3413, %v3426
          %v3428 = vcombine.high %v3404, 0.0
          %v3429 = vcombine.high %v3411, 0.0
          %v3430 = vcombine.high %v3420, 0.0
          %v3431 = vcombine.high %v3427, 0.0
          %v3432 = vcombine.high %v3341, 0.0
          %v3434 = vunpack.c.l.s4 1983009808
          %v3435 = vunpack.c.0.s8 %v3434
          %v3436 = vlaneseq
          %v3437 = vshrl.u32 %v3436, 7
          %v3438 = vsub.s32 %v3435, %v3437
          %v3439 = vrot.slane %v3341, %v3438
          %v3441 = vunpack.c.l.s4 1983009808
          %v3442 = vunpack.c.0.s8 %v3441
          %v3443 = vlaneseq
          %v3444 = vshrl.u32 %v3443, 7
          %v3445 = vsub.s32 %v3442, %v3444
          %v3446 = vrot.slane %v3432, %v3445
          %v3447 = vcombine.high %v3357, 0.0
          %v3449 = vunpack.c.l.s4 1983009808
          %v3450 = vunpack.c.0.s8 %v3449
          %v3451 = vlaneseq
          %v3452 = vshrl.u32 %v3451, 7
          %v3453 = vsub.s32 %v3450, %v3452
          %v3454 = vrot.slane %v3357, %v3453
          %v3456 = vunpack.c.l.s4 1983009808
          %v3457 = vunpack.c.0.s8 %v3456
          %v3458 = vlaneseq
          %v3459 = vshrl.u32 %v3458, 7
          %v3460 = vsub.s32 %v3457, %v3459
          %v3461 = vrot.slane %v3447, %v3460
          %v3462 = vcombine.low %v3439, %v3454
          %v3463 = vcombine.high %v3439, %v3454
          %v3465 = vunpack.c.l.s4 1934713408
          %v3466 = vunpack.c.0.s8 %v3465
          %v3467 = vlaneseq
          %v3468 = vshrl.u32 %v3467, 7
          %v3469 = vsub.s32 %v3466, %v3468
          %v3470 = vrot.slane %v3462, %v3469
          %v3472 = vunpack.c.l.s4 1934713408
          %v3473 = vunpack.c.0.s8 %v3472
          %v3474 = vlaneseq
          %v3475 = vshrl.u32 %v3474, 7
          %v3476 = vsub.s32 %v3473, %v3475
          %v3477 = vrot.slane %v3463, %v3476
          %v3478 = vcombine.low %v3446, %v3461
          %v3479 = vcombine.high %v3446, %v3461
          %v3481 = vunpack.c.l.s4 1934713408
          %v3482 = vunpack.c.0.s8 %v3481
          %v3483 = vlaneseq
          %v3484 = vshrl.u32 %v3483, 7
          %v3485 = vsub.s32 %v3482, %v3484
          %v3486 = vrot.slane %v3478, %v3485
          %v3488 = vunpack.c.l.s4 1934713408
          %v3489 = vunpack.c.0.s8 %v3488
          %v3490 = vlaneseq
          %v3491 = vshrl.u32 %v3490, 7
          %v3492 = vsub.s32 %v3489, %v3491
          %v3493 = vrot.slane %v3479, %v3492
          %v3494 = vcombine.high %v3470, 0.0
          %v3495 = vcombine.high %v3477, 0.0
          %v3496 = vcombine.high %v3486, 0.0
          %v3497 = vcombine.high %v3493, 0.0
          %v3498 = vcombine.high %v3345, 0.0
          %v3500 = vunpack.c.l.s4 1983009808
          %v3501 = vunpack.c.0.s8 %v3500
          %v3502 = vlaneseq
          %v3503 = vshrl.u32 %v3502, 7
          %v3504 = vsub.s32 %v3501, %v3503
          %v3505 = vrot.slane %v3345, %v3504
          %v3507 = vunpack.c.l.s4 1983009808
          %v3508 = vunpack.c.0.s8 %v3507
          %v3509 = vlaneseq
          %v3510 = vshrl.u32 %v3509, 7
          %v3511 = vsub.s32 %v3508, %v3510
          %v3512 = vrot.slane %v3498, %v3511
          %v3513 = vcombine.high %v3361, 0.0
          %v3515 = vunpack.c.l.s4 1983009808
          %v3516 = vunpack.c.0.s8 %v3515
          %v3517 = vlaneseq
          %v3518 = vshrl.u32 %v3517, 7
          %v3519 = vsub.s32 %v3516, %v3518
          %v3520 = vrot.slane %v3361, %v3519
          %v3522 = vunpack.c.l.s4 1983009808
          %v3523 = vunpack.c.0.s8 %v3522
          %v3524 = vlaneseq
          %v3525 = vshrl.u32 %v3524, 7
          %v3526 = vsub.s32 %v3523, %v3525
          %v3527 = vrot.slane %v3513, %v3526
          %v3528 = vcombine.low %v3505, %v3520
          %v3529 = vcombine.high %v3505, %v3520
          %v3531 = vunpack.c.l.s4 1934713408
          %v3532 = vunpack.c.0.s8 %v3531
          %v3533 = vlaneseq
          %v3534 = vshrl.u32 %v3533, 7
          %v3535 = vsub.s32 %v3532, %v3534
          %v3536 = vrot.slane %v3528, %v3535
          %v3538 = vunpack.c.l.s4 1934713408
          %v3539 = vunpack.c.0.s8 %v3538
          %v3540 = vlaneseq
          %v3541 = vshrl.u32 %v3540, 7
          %v3542 = vsub.s32 %v3539, %v3541
          %v3543 = vrot.slane %v3529, %v3542
          %v3544 = vcombine.low %v3512, %v3527
          %v3545 = vcombine.high %v3512, %v3527
          %v3547 = vunpack.c.l.s4 1934713408
          %v3548 = vunpack.c.0.s8 %v3547
          %v3549 = vlaneseq
          %v3550 = vshrl.u32 %v3549, 7
          %v3551 = vsub.s32 %v3548, %v3550
          %v3552 = vrot.slane %v3544, %v3551
          %v3554 = vunpack.c.l.s4 1934713408
          %v3555 = vunpack.c.0.s8 %v3554
          %v3556 = vlaneseq
          %v3557 = vshrl.u32 %v3556, 7
          %v3558 = vsub.s32 %v3555, %v3557
          %v3559 = vrot.slane %v3545, %v3558
          %v3560 = vcombine.high %v3536, 0.0
          %v3561 = vcombine.high %v3543, 0.0
          %v3562 = vcombine.high %v3552, 0.0
          %v3563 = vcombine.high %v3559, 0.0
          %v3564 = vcombine.high %v3349, 0.0
          %v3566 = vunpack.c.l.s4 1983009808
          %v3567 = vunpack.c.0.s8 %v3566
          %v3568 = vlaneseq
          %v3569 = vshrl.u32 %v3568, 7
          %v3570 = vsub.s32 %v3567, %v3569
          %v3571 = vrot.slane %v3349, %v3570
          %v3573 = vunpack.c.l.s4 1983009808
          %v3574 = vunpack.c.0.s8 %v3573
          %v3575 = vlaneseq
          %v3576 = vshrl.u32 %v3575, 7
          %v3577 = vsub.s32 %v3574, %v3576
          %v3578 = vrot.slane %v3564, %v3577
          %v3579 = vcombine.high %v3365, 0.0
          %v3581 = vunpack.c.l.s4 1983009808
          %v3582 = vunpack.c.0.s8 %v3581
          %v3583 = vlaneseq
          %v3584 = vshrl.u32 %v3583, 7
          %v3585 = vsub.s32 %v3582, %v3584
          %v3586 = vrot.slane %v3365, %v3585
          %v3588 = vunpack.c.l.s4 1983009808
          %v3589 = vunpack.c.0.s8 %v3588
          %v3590 = vlaneseq
          %v3591 = vshrl.u32 %v3590, 7
          %v3592 = vsub.s32 %v3589, %v3591
          %v3593 = vrot.slane %v3579, %v3592
          %v3594 = vcombine.low %v3571, %v3586
          %v3595 = vcombine.high %v3571, %v3586
          %v3597 = vunpack.c.l.s4 1934713408
          %v3598 = vunpack.c.0.s8 %v3597
          %v3599 = vlaneseq
          %v3600 = vshrl.u32 %v3599, 7
          %v3601 = vsub.s32 %v3598, %v3600
          %v3602 = vrot.slane %v3594, %v3601
          %v3604 = vunpack.c.l.s4 1934713408
          %v3605 = vunpack.c.0.s8 %v3604
          %v3606 = vlaneseq
          %v3607 = vshrl.u32 %v3606, 7
          %v3608 = vsub.s32 %v3605, %v3607
          %v3609 = vrot.slane %v3595, %v3608
          %v3610 = vcombine.low %v3578, %v3593
          %v3611 = vcombine.high %v3578, %v3593
          %v3613 = vunpack.c.l.s4 1934713408
          %v3614 = vunpack.c.0.s8 %v3613
          %v3615 = vlaneseq
          %v3616 = vshrl.u32 %v3615, 7
          %v3617 = vsub.s32 %v3614, %v3616
          %v3618 = vrot.slane %v3610, %v3617
          %v3620 = vunpack.c.l.s4 1934713408
          %v3621 = vunpack.c.0.s8 %v3620
          %v3622 = vlaneseq
          %v3623 = vshrl.u32 %v3622, 7
          %v3624 = vsub.s32 %v3621, %v3623
          %v3625 = vrot.slane %v3611, %v3624
          %v3626 = vcombine.high %v3602, 0.0
          %v3627 = vcombine.high %v3609, 0.0
          %v3628 = vcombine.high %v3618, 0.0
          %v3629 = vcombine.high %v3625, 0.0
          %3631 = vrot.lane.b32.xlu0 %v3428, 4
          %v3632 = vpop.permute.xlu0 %3631
          %3635 = vrot.lane.b32.xlu0 %v3411, 8
          %v3636 = vpop.permute.xlu0 %3635
          %3639 = vrot.lane.b32.xlu0 %v3429, 12
          %v3640 = vpop.permute.xlu0 %3639
          %3643 = vrot.lane.b32.xlu0 %v3420, 16
          %v3644 = vpop.permute.xlu0 %3643
          %3647 = vrot.lane.b32.xlu0 %v3430, 20
          %v3648 = vpop.permute.xlu0 %3647
          %3651 = vrot.lane.b32.xlu0 %v3427, 24
          %v3652 = vpop.permute.xlu0 %3651
          %3655 = vrot.lane.b32.xlu0 %v3431, 28
          %v3656 = vpop.permute.xlu0 %3655
          %3659 = vrot.lane.b32.xlu0 %v3470, 32
          %v3660 = vpop.permute.xlu0 %3659
          %3663 = vrot.lane.b32.xlu0 %v3494, 36
          %v3664 = vpop.permute.xlu0 %3663
          %3667 = vrot.lane.b32.xlu0 %v3477, 40
          %v3668 = vpop.permute.xlu0 %3667
          %3671 = vrot.lane.b32.xlu0 %v3495, 44
          %v3672 = vpop.permute.xlu0 %3671
          %3675 = vrot.lane.b32.xlu0 %v3486, 48
          %v3676 = vpop.permute.xlu0 %3675
          %3679 = vrot.lane.b32.xlu0 %v3496, 52
          %v3680 = vpop.permute.xlu0 %3679
          %3683 = vrot.lane.b32.xlu0 %v3493, 56
          %v3684 = vpop.permute.xlu0 %3683
          %3687 = vrot.lane.b32.xlu0 %v3497, 60
          %v3688 = vpop.permute.xlu0 %3687
          %3691 = vrot.lane.b32.xlu0 %v3536, 64
          %v3692 = vpop.permute.xlu0 %3691
          %3695 = vrot.lane.b32.xlu0 %v3560, 68
          %v3696 = vpop.permute.xlu0 %3695
          %3699 = vrot.lane.b32.xlu0 %v3543, 72
          %v3700 = vpop.permute.xlu0 %3699
          %3703 = vrot.lane.b32.xlu0 %v3561, 76
          %v3704 = vpop.permute.xlu0 %3703
          %3707 = vrot.lane.b32.xlu0 %v3552, 80
          %v3708 = vpop.permute.xlu0 %3707
          %3711 = vrot.lane.b32.xlu0 %v3562, 84
          %v3712 = vpop.permute.xlu0 %3711
          %3715 = vrot.lane.b32.xlu0 %v3559, 88
          %v3716 = vpop.permute.xlu0 %3715
          %3719 = vrot.lane.b32.xlu0 %v3563, 92
          %v3720 = vpop.permute.xlu0 %3719
          %3723 = vrot.lane.b32.xlu0 %v3602, 96
          %v3724 = vpop.permute.xlu0 %3723
          %3727 = vrot.lane.b32.xlu0 %v3626, 100
          %v3728 = vpop.permute.xlu0 %3727
          %3731 = vrot.lane.b32.xlu0 %v3609, 104
          %v3732 = vpop.permute.xlu0 %3731
          %3735 = vrot.lane.b32.xlu0 %v3627, 108
          %v3736 = vpop.permute.xlu0 %3735
          %3739 = vrot.lane.b32.xlu0 %v3618, 112
          %v3740 = vpop.permute.xlu0 %3739
          %3743 = vrot.lane.b32.xlu0 %v3628, 116
          %v3744 = vpop.permute.xlu0 %3743
          %3747 = vrot.lane.b32.xlu0 %v3625, 120
          %v3748 = vpop.permute.xlu0 %3747
          %3751 = vrot.lane.b32.xlu0 %v3629, 124
          %v3752 = vpop.permute.xlu0 %3751
          %v3754 = vsel %vm2817, %v3404, %v3632
          %v3755 = vsel %vm2819, %v3754, %v3636
          %v3756 = vsel %vm2821, %v3755, %v3640
          %v3757 = vsel %vm2823, %v3756, %v3644
          %v3758 = vsel %vm2825, %v3757, %v3648
          %v3759 = vsel %vm2827, %v3758, %v3652
          %v3760 = vsel %vm2829, %v3759, %v3656
          %v3761 = vsel %vm2831, %v3760, %v3660
          %v3762 = vsel %vm2833, %v3761, %v3664
          %v3763 = vsel %vm2835, %v3762, %v3668
          %v3764 = vsel %vm2837, %v3763, %v3672
          %v3765 = vsel %vm2839, %v3764, %v3676
          %v3766 = vsel %vm2841, %v3765, %v3680
          %v3767 = vsel %vm2843, %v3766, %v3684
          %v3768 = vsel %vm2845, %v3767, %v3688
          %v3769 = vsel %vm2847, %v3768, %v3692
          %v3770 = vsel %vm2849, %v3769, %v3696
          %v3771 = vsel %vm2851, %v3770, %v3700
          %v3772 = vsel %vm2853, %v3771, %v3704
          %v3773 = vsel %vm2855, %v3772, %v3708
          %v3774 = vsel %vm2857, %v3773, %v3712
          %v3775 = vsel %vm2859, %v3774, %v3716
          %v3776 = vsel %vm2861, %v3775, %v3720
          %v3777 = vsel %vm2863, %v3776, %v3724
          %v3778 = vsel %vm2865, %v3777, %v3728
          %v3779 = vsel %vm2867, %v3778, %v3732
          %v3780 = vsel %vm2869, %v3779, %v3736
          %v3781 = vsel %vm2871, %v3780, %v3740
          %v3782 = vsel %vm2873, %v3781, %v3744
          %v3783 = vsel %vm2875, %v3782, %v3748
          %v3784 = vsel %vm2877, %v3783, %v3752
          %v3785 = vmul.f32 %v3784, %v2384
          %v3786 = vadd.f32 %v3333, %v3785
          %s3788 = sor.u32 256, 96
          %3789 = vbcast.lane.b32.xlu0 %v2394, %s3788
          %v3790 = vpop.permute.xlu0 %3789
          %s3792 = sor.u32 256, 104
          %3793 = vbcast.lane.b32.xlu0 %v2394, %s3792
          %v3794 = vpop.permute.xlu0 %3793
          %s3796 = sor.u32 256, 112
          %3797 = vbcast.lane.b32.xlu0 %v2394, %s3796
          %v3798 = vpop.permute.xlu0 %3797
          %s3800 = sor.u32 256, 120
          %3801 = vbcast.lane.b32.xlu0 %v2394, %s3800
          %v3802 = vpop.permute.xlu0 %3801
          %s3804 = sor.u32 256, 96
          %3805 = vbcast.lane.b32.xlu0 %v2413, %s3804
          %v3806 = vpop.permute.xlu0 %3805
          %s3808 = sor.u32 256, 104
          %3809 = vbcast.lane.b32.xlu0 %v2413, %s3808
          %v3810 = vpop.permute.xlu0 %3809
          %s3812 = sor.u32 256, 112
          %3813 = vbcast.lane.b32.xlu0 %v2413, %s3812
          %v3814 = vpop.permute.xlu0 %3813
          %s3816 = sor.u32 256, 120
          %3817 = vbcast.lane.b32.xlu0 %v2413, %s3816
          %v3818 = vpop.permute.xlu0 %3817
          %v3819 = vcombine.high %v3790, 0.0
          %v3821 = vunpack.c.l.s4 1983009808
          %v3822 = vunpack.c.0.s8 %v3821
          %v3823 = vlaneseq
          %v3824 = vshrl.u32 %v3823, 7
          %v3825 = vsub.s32 %v3822, %v3824
          %v3826 = vrot.slane %v3790, %v3825
          %v3828 = vunpack.c.l.s4 1983009808
          %v3829 = vunpack.c.0.s8 %v3828
          %v3830 = vlaneseq
          %v3831 = vshrl.u32 %v3830, 7
          %v3832 = vsub.s32 %v3829, %v3831
          %v3833 = vrot.slane %v3819, %v3832
          %v3834 = vcombine.high %v3806, 0.0
          %v3836 = vunpack.c.l.s4 1983009808
          %v3837 = vunpack.c.0.s8 %v3836
          %v3838 = vlaneseq
          %v3839 = vshrl.u32 %v3838, 7
          %v3840 = vsub.s32 %v3837, %v3839
          %v3841 = vrot.slane %v3806, %v3840
          %v3843 = vunpack.c.l.s4 1983009808
          %v3844 = vunpack.c.0.s8 %v3843
          %v3845 = vlaneseq
          %v3846 = vshrl.u32 %v3845, 7
          %v3847 = vsub.s32 %v3844, %v3846
          %v3848 = vrot.slane %v3834, %v3847
          %v3849 = vcombine.low %v3826, %v3841
          %v3850 = vcombine.high %v3826, %v3841
          %v3852 = vunpack.c.l.s4 1934713408
          %v3853 = vunpack.c.0.s8 %v3852
          %v3854 = vlaneseq
          %v3855 = vshrl.u32 %v3854, 7
          %v3856 = vsub.s32 %v3853, %v3855
          %v3857 = vrot.slane %v3849, %v3856
          %v3859 = vunpack.c.l.s4 1934713408
          %v3860 = vunpack.c.0.s8 %v3859
          %v3861 = vlaneseq
          %v3862 = vshrl.u32 %v3861, 7
          %v3863 = vsub.s32 %v3860, %v3862
          %v3864 = vrot.slane %v3850, %v3863
          %v3865 = vcombine.low %v3833, %v3848
          %v3866 = vcombine.high %v3833, %v3848
          %v3868 = vunpack.c.l.s4 1934713408
          %v3869 = vunpack.c.0.s8 %v3868
          %v3870 = vlaneseq
          %v3871 = vshrl.u32 %v3870, 7
          %v3872 = vsub.s32 %v3869, %v3871
          %v3873 = vrot.slane %v3865, %v3872
          %v3875 = vunpack.c.l.s4 1934713408
          %v3876 = vunpack.c.0.s8 %v3875
          %v3877 = vlaneseq
          %v3878 = vshrl.u32 %v3877, 7
          %v3879 = vsub.s32 %v3876, %v3878
          %v3880 = vrot.slane %v3866, %v3879
          %v3881 = vcombine.high %v3857, 0.0
          %v3882 = vcombine.high %v3864, 0.0
          %v3883 = vcombine.high %v3873, 0.0
          %v3884 = vcombine.high %v3880, 0.0
          %v3885 = vcombine.high %v3794, 0.0
          %v3887 = vunpack.c.l.s4 1983009808
          %v3888 = vunpack.c.0.s8 %v3887
          %v3889 = vlaneseq
          %v3890 = vshrl.u32 %v3889, 7
          %v3891 = vsub.s32 %v3888, %v3890
          %v3892 = vrot.slane %v3794, %v3891
          %v3894 = vunpack.c.l.s4 1983009808
          %v3895 = vunpack.c.0.s8 %v3894
          %v3896 = vlaneseq
          %v3897 = vshrl.u32 %v3896, 7
          %v3898 = vsub.s32 %v3895, %v3897
          %v3899 = vrot.slane %v3885, %v3898
          %v3900 = vcombine.high %v3810, 0.0
          %v3902 = vunpack.c.l.s4 1983009808
          %v3903 = vunpack.c.0.s8 %v3902
          %v3904 = vlaneseq
          %v3905 = vshrl.u32 %v3904, 7
          %v3906 = vsub.s32 %v3903, %v3905
          %v3907 = vrot.slane %v3810, %v3906
          %v3909 = vunpack.c.l.s4 1983009808
          %v3910 = vunpack.c.0.s8 %v3909
          %v3911 = vlaneseq
          %v3912 = vshrl.u32 %v3911, 7
          %v3913 = vsub.s32 %v3910, %v3912
          %v3914 = vrot.slane %v3900, %v3913
          %v3915 = vcombine.low %v3892, %v3907
          %v3916 = vcombine.high %v3892, %v3907
          %v3918 = vunpack.c.l.s4 1934713408
          %v3919 = vunpack.c.0.s8 %v3918
          %v3920 = vlaneseq
          %v3921 = vshrl.u32 %v3920, 7
          %v3922 = vsub.s32 %v3919, %v3921
          %v3923 = vrot.slane %v3915, %v3922
          %v3925 = vunpack.c.l.s4 1934713408
          %v3926 = vunpack.c.0.s8 %v3925
          %v3927 = vlaneseq
          %v3928 = vshrl.u32 %v3927, 7
          %v3929 = vsub.s32 %v3926, %v3928
          %v3930 = vrot.slane %v3916, %v3929
          %v3931 = vcombine.low %v3899, %v3914
          %v3932 = vcombine.high %v3899, %v3914
          %v3934 = vunpack.c.l.s4 1934713408
          %v3935 = vunpack.c.0.s8 %v3934
          %v3936 = vlaneseq
          %v3937 = vshrl.u32 %v3936, 7
          %v3938 = vsub.s32 %v3935, %v3937
          %v3939 = vrot.slane %v3931, %v3938
          %v3941 = vunpack.c.l.s4 1934713408
          %v3942 = vunpack.c.0.s8 %v3941
          %v3943 = vlaneseq
          %v3944 = vshrl.u32 %v3943, 7
          %v3945 = vsub.s32 %v3942, %v3944
          %v3946 = vrot.slane %v3932, %v3945
          %v3947 = vcombine.high %v3923, 0.0
          %v3948 = vcombine.high %v3930, 0.0
          %v3949 = vcombine.high %v3939, 0.0
          %v3950 = vcombine.high %v3946, 0.0
          %v3951 = vcombine.high %v3798, 0.0
          %v3953 = vunpack.c.l.s4 1983009808
          %v3954 = vunpack.c.0.s8 %v3953
          %v3955 = vlaneseq
          %v3956 = vshrl.u32 %v3955, 7
          %v3957 = vsub.s32 %v3954, %v3956
          %v3958 = vrot.slane %v3798, %v3957
          %v3960 = vunpack.c.l.s4 1983009808
          %v3961 = vunpack.c.0.s8 %v3960
          %v3962 = vlaneseq
          %v3963 = vshrl.u32 %v3962, 7
          %v3964 = vsub.s32 %v3961, %v3963
          %v3965 = vrot.slane %v3951, %v3964
          %v3966 = vcombine.high %v3814, 0.0
          %v3968 = vunpack.c.l.s4 1983009808
          %v3969 = vunpack.c.0.s8 %v3968
          %v3970 = vlaneseq
          %v3971 = vshrl.u32 %v3970, 7
          %v3972 = vsub.s32 %v3969, %v3971
          %v3973 = vrot.slane %v3814, %v3972
          %v3975 = vunpack.c.l.s4 1983009808
          %v3976 = vunpack.c.0.s8 %v3975
          %v3977 = vlaneseq
          %v3978 = vshrl.u32 %v3977, 7
          %v3979 = vsub.s32 %v3976, %v3978
          %v3980 = vrot.slane %v3966, %v3979
          %v3981 = vcombine.low %v3958, %v3973
          %v3982 = vcombine.high %v3958, %v3973
          %v3984 = vunpack.c.l.s4 1934713408
          %v3985 = vunpack.c.0.s8 %v3984
          %v3986 = vlaneseq
          %v3987 = vshrl.u32 %v3986, 7
          %v3988 = vsub.s32 %v3985, %v3987
          %v3989 = vrot.slane %v3981, %v3988
          %v3991 = vunpack.c.l.s4 1934713408
          %v3992 = vunpack.c.0.s8 %v3991
          %v3993 = vlaneseq
          %v3994 = vshrl.u32 %v3993, 7
          %v3995 = vsub.s32 %v3992, %v3994
          %v3996 = vrot.slane %v3982, %v3995
          %v3997 = vcombine.low %v3965, %v3980
          %v3998 = vcombine.high %v3965, %v3980
          %v4000 = vunpack.c.l.s4 1934713408
          %v4001 = vunpack.c.0.s8 %v4000
          %v4002 = vlaneseq
          %v4003 = vshrl.u32 %v4002, 7
          %v4004 = vsub.s32 %v4001, %v4003
          %v4005 = vrot.slane %v3997, %v4004
          %v4007 = vunpack.c.l.s4 1934713408
          %v4008 = vunpack.c.0.s8 %v4007
          %v4009 = vlaneseq
          %v4010 = vshrl.u32 %v4009, 7
          %v4011 = vsub.s32 %v4008, %v4010
          %v4012 = vrot.slane %v3998, %v4011
          %v4013 = vcombine.high %v3989, 0.0
          %v4014 = vcombine.high %v3996, 0.0
          %v4015 = vcombine.high %v4005, 0.0
          %v4016 = vcombine.high %v4012, 0.0
          %v4017 = vcombine.high %v3802, 0.0
          %v4019 = vunpack.c.l.s4 1983009808
          %v4020 = vunpack.c.0.s8 %v4019
          %v4021 = vlaneseq
          %v4022 = vshrl.u32 %v4021, 7
          %v4023 = vsub.s32 %v4020, %v4022
          %v4024 = vrot.slane %v3802, %v4023
          %v4026 = vunpack.c.l.s4 1983009808
          %v4027 = vunpack.c.0.s8 %v4026
          %v4028 = vlaneseq
          %v4029 = vshrl.u32 %v4028, 7
          %v4030 = vsub.s32 %v4027, %v4029
          %v4031 = vrot.slane %v4017, %v4030
          %v4032 = vcombine.high %v3818, 0.0
          %v4034 = vunpack.c.l.s4 1983009808
          %v4035 = vunpack.c.0.s8 %v4034
          %v4036 = vlaneseq
          %v4037 = vshrl.u32 %v4036, 7
          %v4038 = vsub.s32 %v4035, %v4037
          %v4039 = vrot.slane %v3818, %v4038
          %v4041 = vunpack.c.l.s4 1983009808
          %v4042 = vunpack.c.0.s8 %v4041
          %v4043 = vlaneseq
          %v4044 = vshrl.u32 %v4043, 7
          %v4045 = vsub.s32 %v4042, %v4044
          %v4046 = vrot.slane %v4032, %v4045
          %v4047 = vcombine.low %v4024, %v4039
          %v4048 = vcombine.high %v4024, %v4039
          %v4050 = vunpack.c.l.s4 1934713408
          %v4051 = vunpack.c.0.s8 %v4050
          %v4052 = vlaneseq
          %v4053 = vshrl.u32 %v4052, 7
          %v4054 = vsub.s32 %v4051, %v4053
          %v4055 = vrot.slane %v4047, %v4054
          %v4057 = vunpack.c.l.s4 1934713408
          %v4058 = vunpack.c.0.s8 %v4057
          %v4059 = vlaneseq
          %v4060 = vshrl.u32 %v4059, 7
          %v4061 = vsub.s32 %v4058, %v4060
          %v4062 = vrot.slane %v4048, %v4061
          %v4063 = vcombine.low %v4031, %v4046
          %v4064 = vcombine.high %v4031, %v4046
          %v4066 = vunpack.c.l.s4 1934713408
          %v4067 = vunpack.c.0.s8 %v4066
          %v4068 = vlaneseq
          %v4069 = vshrl.u32 %v4068, 7
          %v4070 = vsub.s32 %v4067, %v4069
          %v4071 = vrot.slane %v4063, %v4070
          %v4073 = vunpack.c.l.s4 1934713408
          %v4074 = vunpack.c.0.s8 %v4073
          %v4075 = vlaneseq
          %v4076 = vshrl.u32 %v4075, 7
          %v4077 = vsub.s32 %v4074, %v4076
          %v4078 = vrot.slane %v4064, %v4077
          %v4079 = vcombine.high %v4055, 0.0
          %v4080 = vcombine.high %v4062, 0.0
          %v4081 = vcombine.high %v4071, 0.0
          %v4082 = vcombine.high %v4078, 0.0
          %4084 = vrot.lane.b32.xlu0 %v3881, 4
          %v4085 = vpop.permute.xlu0 %4084
          %4088 = vrot.lane.b32.xlu0 %v3864, 8
          %v4089 = vpop.permute.xlu0 %4088
          %4092 = vrot.lane.b32.xlu0 %v3882, 12
          %v4093 = vpop.permute.xlu0 %4092
          %4096 = vrot.lane.b32.xlu0 %v3873, 16
          %v4097 = vpop.permute.xlu0 %4096
          %4100 = vrot.lane.b32.xlu0 %v3883, 20
          %v4101 = vpop.permute.xlu0 %4100
          %4104 = vrot.lane.b32.xlu0 %v3880, 24
          %v4105 = vpop.permute.xlu0 %4104
          %4108 = vrot.lane.b32.xlu0 %v3884, 28
          %v4109 = vpop.permute.xlu0 %4108
          %4112 = vrot.lane.b32.xlu0 %v3923, 32
          %v4113 = vpop.permute.xlu0 %4112
          %4116 = vrot.lane.b32.xlu0 %v3947, 36
          %v4117 = vpop.permute.xlu0 %4116
          %4120 = vrot.lane.b32.xlu0 %v3930, 40
          %v4121 = vpop.permute.xlu0 %4120
          %4124 = vrot.lane.b32.xlu0 %v3948, 44
          %v4125 = vpop.permute.xlu0 %4124
          %4128 = vrot.lane.b32.xlu0 %v3939, 48
          %v4129 = vpop.permute.xlu0 %4128
          %4132 = vrot.lane.b32.xlu0 %v3949, 52
          %v4133 = vpop.permute.xlu0 %4132
          %4136 = vrot.lane.b32.xlu0 %v3946, 56
          %v4137 = vpop.permute.xlu0 %4136
          %4140 = vrot.lane.b32.xlu0 %v3950, 60
          %v4141 = vpop.permute.xlu0 %4140
          %4144 = vrot.lane.b32.xlu0 %v3989, 64
          %v4145 = vpop.permute.xlu0 %4144
          %4148 = vrot.lane.b32.xlu0 %v4013, 68
          %v4149 = vpop.permute.xlu0 %4148
          %4152 = vrot.lane.b32.xlu0 %v3996, 72
          %v4153 = vpop.permute.xlu0 %4152
          %4156 = vrot.lane.b32.xlu0 %v4014, 76
          %v4157 = vpop.permute.xlu0 %4156
          %4160 = vrot.lane.b32.xlu0 %v4005, 80
          %v4161 = vpop.permute.xlu0 %4160
          %4164 = vrot.lane.b32.xlu0 %v4015, 84
          %v4165 = vpop.permute.xlu0 %4164
          %4168 = vrot.lane.b32.xlu0 %v4012, 88
          %v4169 = vpop.permute.xlu0 %4168
          %4172 = vrot.lane.b32.xlu0 %v4016, 92
          %v4173 = vpop.permute.xlu0 %4172
          %4176 = vrot.lane.b32.xlu0 %v4055, 96
          %v4177 = vpop.permute.xlu0 %4176
          %4180 = vrot.lane.b32.xlu0 %v4079, 100
          %v4181 = vpop.permute.xlu0 %4180
          %4184 = vrot.lane.b32.xlu0 %v4062, 104
          %v4185 = vpop.permute.xlu0 %4184
          %4188 = vrot.lane.b32.xlu0 %v4080, 108
          %v4189 = vpop.permute.xlu0 %4188
          %4192 = vrot.lane.b32.xlu0 %v4071, 112
          %v4193 = vpop.permute.xlu0 %4192
          %4196 = vrot.lane.b32.xlu0 %v4081, 116
          %v4197 = vpop.permute.xlu0 %4196
          %4200 = vrot.lane.b32.xlu0 %v4078, 120
          %v4201 = vpop.permute.xlu0 %4200
          %4204 = vrot.lane.b32.xlu0 %v4082, 124
          %v4205 = vpop.permute.xlu0 %4204
          %v4207 = vsel %vm2817, %v3857, %v4085
          %v4208 = vsel %vm2819, %v4207, %v4089
          %v4209 = vsel %vm2821, %v4208, %v4093
          %v4210 = vsel %vm2823, %v4209, %v4097
          %v4211 = vsel %vm2825, %v4210, %v4101
          %v4212 = vsel %vm2827, %v4211, %v4105
          %v4213 = vsel %vm2829, %v4212, %v4109
          %v4214 = vsel %vm2831, %v4213, %v4113
          %v4215 = vsel %vm2833, %v4214, %v4117
          %v4216 = vsel %vm2835, %v4215, %v4121
          %v4217 = vsel %vm2837, %v4216, %v4125
          %v4218 = vsel %vm2839, %v4217, %v4129
          %v4219 = vsel %vm2841, %v4218, %v4133
          %v4220 = vsel %vm2843, %v4219, %v4137
          %v4221 = vsel %vm2845, %v4220, %v4141
          %v4222 = vsel %vm2847, %v4221, %v4145
          %v4223 = vsel %vm2849, %v4222, %v4149
          %v4224 = vsel %vm2851, %v4223, %v4153
          %v4225 = vsel %vm2853, %v4224, %v4157
          %v4226 = vsel %vm2855, %v4225, %v4161
          %v4227 = vsel %vm2857, %v4226, %v4165
          %v4228 = vsel %vm2859, %v4227, %v4169
          %v4229 = vsel %vm2861, %v4228, %v4173
          %v4230 = vsel %vm2863, %v4229, %v4177
          %v4231 = vsel %vm2865, %v4230, %v4181
          %v4232 = vsel %vm2867, %v4231, %v4185
          %v4233 = vsel %vm2869, %v4232, %v4189
          %v4234 = vsel %vm2871, %v4233, %v4193
          %v4235 = vsel %vm2873, %v4234, %v4197
          %v4236 = vsel %vm2875, %v4235, %v4201
          %v4237 = vsel %vm2877, %v4236, %v4205
          %v4238 = vmul.f32 %v4237, %v2386
          %v4239 = vadd.f32 %v3786, %v4238
          %4240 = vst [vmem:[#allocation19] sm:$0x3] %v4239
        $region92: #{tpu_custom_call.1} parent=51 // pred_fallthru
          _
        // Predicated region
        $region93: #{tpu_custom_call.1} parent=51 // pred_check
          %p4241 = pneg %p225
        $region94: #{tpu_custom_call.1} parent=51 // pred_check_branch
          %4243 = sbr.rel (%p4241) target = $region96
        $region95: #{tpu_custom_call.1} parent=51 // pred_region
          %s4245 = ssub.s32 32, 32
          %4246 = vsyncadd [#allocation7], %s4245
          %s4248 = sshll.u32 [#allocation19], 4
          %s4249 = int_to_ptr.vmem [resolvable:$true] %s4248
          %4251 = dma.vmem_to_hbm [thread:$0]  %s4249, 32, %s8, [#allocation7]
        $region96: #{tpu_custom_call.1} parent=51 // pred_fallthru
          _
        // Predicated region
        $region97: #{tpu_custom_call.1} parent=51 // pred_check
          %p4252 = pneg %p225
        $region98: #{tpu_custom_call.1} parent=51 // pred_check_branch
          %4254 = sbr.rel (%p4252) target = $region100
        $region99: #{tpu_custom_call.1} parent=51 // pred_region
          %4255 = dma.done [#allocation7], 32
        $region100: #{tpu_custom_call.1} parent=51 // pred_fallthru
          _
      $region52: #{tpu_custom_call.1} parent=5 // pred_fallthru
        _
      %p4256 = scmp.le.s32.totalorder 2, %s24
      // Predicated region
      $region101: #{tpu_custom_call.1} parent=5 // pred_check
        %p4257 = pneg %p4256
      $region102: #{tpu_custom_call.1} parent=5 // pred_check_branch
        %4259 = sbr.rel (%p4257) target = $region104
      $region103: #{tpu_custom_call.1} parent=5 // pred_region
        %s4260 = ssub.s32 %s24, 2
      $region104: #{tpu_custom_call.1} parent=5 // pred_fallthru
        _
    $region6: #{tpu_custom_call.1} parent=1 // loop_footer
      %s28 = sadd.s32 1, %s24
    $region7: #{tpu_custom_call.1} parent=1 // loop_footer_branch
      %23 = sbr.rel target = $region3
    $region8: #{tpu_custom_call.1} parent=1 // loop_exit
      _
    %4261 = vsyncpa [#allocation6], 1
    %s4262 = scalar_lea.sflag [#allocation6], 1
    %4263 = vsyncpa %s4262, 1
    %4264 = vsyncpa [#allocation9], 1
    %4265 = vsyncpa [#allocation12], 1
    %4266 = vsyncpa [#allocation15], 1
    %s4267 = scalar_lea.sflag [#allocation15], 1
    %4268 = vsyncpa %s4267, 1
    %4269 = vsyncpa [#allocation18], 1
    %s4270 = scalar_lea.sflag [#allocation18], 1
    %4271 = vsyncpa %s4270, 1
    %4272 = vsyncpa [#allocation7], 1
    %s4273 = scalar_lea.sflag [#allocation7], 1
    %4274 = vsyncpa %s4273, 1

</llo_original>
